<compile_context>
chip_gen: v7x
topology: tpu7x:2x2x1
jax: 0.10.0
libtpu: 0.0.40
codegen_flags: <defaults>
</compile_context>

<pallas_src>
import functools
import math

import jax
import jax.numpy as jnp
from jax.experimental import pallas as pl
from jax.experimental.pallas import tpu as pltpu

BN_EPS = 1e-5
ACT_DTYPE = jnp.bfloat16
VMEM_LIMIT = 48 * 1024 * 1024


def _round_up(x, m):
    return (x + m - 1) // m * m


# ----------------------------------------------------------------------------
# Fused matmul (+ BN affine + optional residual + ReLU) kernels
# ----------------------------------------------------------------------------
def _mm_kernel(x_ref, w_ref, s_ref, b_ref, o_ref, acc_ref, *, relu):
    k = pl.program_id(2)

    @pl.when(k == 0)
    def _():
        acc_ref[...] = jnp.zeros_like(acc_ref)

    acc_ref[...] += jnp.dot(x_ref[...], w_ref[...],
                            preferred_element_type=jnp.float32)

    @pl.when(k == pl.num_programs(2) - 1)
    def _():
        out = acc_ref[...] * s_ref[...] + b_ref[...]
        if relu:
            out = jnp.maximum(out, 0.0)
        o_ref[...] = out.astype(o_ref.dtype)


def _mm_res_kernel(x_ref, w_ref, s_ref, b_ref, r_ref, o_ref, acc_ref, *, relu):
    k = pl.program_id(2)

    @pl.when(k == 0)
    def _():
        acc_ref[...] = jnp.zeros_like(acc_ref)

    acc_ref[...] += jnp.dot(x_ref[...], w_ref[...],
                            preferred_element_type=jnp.float32)

    @pl.when(k == pl.num_programs(2) - 1)
    def _():
        out = (acc_ref[...] * s_ref[...] + b_ref[...]
               + r_ref[...].astype(jnp.float32))
        if relu:
            out = jnp.maximum(out, 0.0)
        o_ref[...] = out.astype(o_ref.dtype)


def fused_matmul(x, w, scale, bias, residual=None, relu=False,
                 out_dtype=ACT_DTYPE):
    """maybe_relu((x @ w) * scale + bias [+ residual]); scale/bias per column."""
    M, K = x.shape
    K2, N = w.shape
    assert K == K2

    # ---- tile selection -----------------------------------------------------
    Mp8 = _round_up(M, 8)
    if Mp8 >= 4096:
        bm = 1024
    elif Mp8 >= 1024:
        bm = 512
    elif Mp8 >= 512:
        bm = 256
    else:
        bm = Mp8

    if N <= 512 or N % 128 != 0:
        bn = N                                  # single lane block, full dim
    elif N % 512 == 0:
        bn = 512
    elif N % 256 == 0:
        bn = 256
    else:
        bn = 128

    if K <= 4608:
        bk = K                                  # single K step, no K padding
    else:
        bk = 128
        for cand in (2048, 1024, 512, 256, 128):
            if K % cand == 0:
                bk = cand
                break

    # crude VMEM guard (bf16 double-buffered tiles + f32 accumulator)
    def _est(bm_):
        e = 2 * 2 * (bm_ * bk + bk * bn + bm_ * bn) + 4 * bm_ * bn
        if residual is not None:
            e += 2 * 2 * bm_ * bn
        return e
    while bm > 8 and _est(bm) > 24 * 1024 * 1024:
        bm //= 2

    Mp = _round_up(M, bm)
    Np = _round_up(N, bn)
    Kp = _round_up(K, bk)

    xp = x.astype(ACT_DTYPE)
    if (Mp, Kp) != (M, K):
        xp = jnp.pad(xp, ((0, Mp - M), (0, Kp - K)))
    wp = w.astype(ACT_DTYPE)
    if (Kp, Np) != (K, N):
        wp = jnp.pad(wp, ((0, Kp - K), (0, Np - N)))
    sp = scale.reshape(1, N).astype(jnp.float32)
    bp = bias.reshape(1, N).astype(jnp.float32)
    if Np != N:
        sp = jnp.pad(sp, ((0, 0), (0, Np - N)))
        bp = jnp.pad(bp, ((0, 0), (0, Np - N)))

    grid = (Mp // bm, Np // bn, Kp // bk)
    x_spec = pl.BlockSpec((bm, bk), lambda i, j, k: (i, k))
    w_spec = pl.BlockSpec((bk, bn), lambda i, j, k: (k, j))
    v_spec = pl.BlockSpec((1, bn), lambda i, j, k: (0, j))
    o_spec = pl.BlockSpec((bm, bn), lambda i, j, k: (i, j))

    if residual is None:
        kernel = functools.partial(_mm_kernel, relu=relu)
        in_specs = [x_spec, w_spec, v_spec, v_spec]
        args = (xp, wp, sp, bp)
    else:
        rp = residual.astype(ACT_DTYPE)
        if (Mp, Np) != (M, N):
            rp = jnp.pad(rp, ((0, Mp - M), (0, Np - N)))
        kernel = functools.partial(_mm_res_kernel, relu=relu)
        in_specs = [x_spec, w_spec, v_spec, v_spec, o_spec]
        args = (xp, wp, sp, bp, rp)

    out = pl.pallas_call(
        kernel,
        out_shape=jax.ShapeDtypeStruct((Mp, Np), out_dtype),
        grid_spec=pltpu.PrefetchScalarGridSpec(
            num_scalar_prefetch=0,
            grid=grid,
            in_specs=in_specs,
            out_specs=o_spec,
            scratch_shapes=[pltpu.VMEM((bm, bn), jnp.float32)],
        ),
        compiler_params=pltpu.CompilerParams(
            dimension_semantics=("parallel", "parallel", "arbitrary"),
            vmem_limit_bytes=VMEM_LIMIT),
    )(*args)
    if (Mp, Np) != (M, N):
        out = out[:M, :N]
    return out


# ----------------------------------------------------------------------------
# Direct 3x3 stride-1 conv kernel (no HBM im2col): full padded image resident
# in VMEM, 9 shifted windows sliced in-kernel, one row-band per grid step.
# ----------------------------------------------------------------------------
def _conv3x3_kernel(x_ref, w_ref, s_ref, b_ref, o_ref, *, relu, bh):
    # x_ref: (1, OH+2, OW+2, Cin)  padded input (resident across row-bands)
    # w_ref: (9, Cin, Cout); s_ref/b_ref: (1, Cout) f32; o_ref: (1, bh, OW, Cout)
    OW = o_ref.shape[2]
    Cin = x_ref.shape[3]
    Cout = o_ref.shape[3]
    r0 = pl.program_id(1) * bh
    acc = jnp.zeros((bh * OW, Cout), jnp.float32)
    for di in range(3):
        for dj in range(3):
            win = x_ref[0, pl.ds(r0 + di, bh), pl.ds(dj, OW), :]   # (bh, OW, Cin)
            acc = acc + jnp.dot(win.reshape(bh * OW, Cin), w_ref[di * 3 + dj],
                                preferred_element_type=jnp.float32)
    out = acc * s_ref[...] + b_ref[...]
    if relu:
        out = jnp.maximum(out, 0.0)
    o_ref[...] = out.reshape(1, bh, OW, Cout).astype(o_ref.dtype)


def conv3x3_s1_direct(x, w, scale, bias, relu=True):
    """3x3 conv, stride 1, padding 1 on NHWC bf16 input; BN affine + ReLU fused."""
    N, H, W, Cin = x.shape
    Cout = w.shape[3]
    bh = 8
    assert H % bh == 0 and W % 16 == 0
    xp = jnp.pad(x.astype(ACT_DTYPE), ((0, 0), (1, 1), (1, 1), (0, 0)))
    wr = w.reshape(9, Cin, Cout).astype(ACT_DTYPE)
    sp = scale.reshape(1, Cout).astype(jnp.float32)
    bp = bias.reshape(1, Cout).astype(jnp.float32)
    grid = (N, H // bh)
    return pl.pallas_call(
        functools.partial(_conv3x3_kernel, relu=relu, bh=bh),
        out_shape=jax.ShapeDtypeStruct((N, H, W, Cout), ACT_DTYPE),
        grid_spec=pltpu.PrefetchScalarGridSpec(
            num_scalar_prefetch=0,
            grid=grid,
            in_specs=[
                pl.BlockSpec((1, H + 2, W + 2, Cin), lambda n, b: (n, 0, 0, 0)),
                pl.BlockSpec((9, Cin, Cout), lambda n, b: (0, 0, 0)),
                pl.BlockSpec((1, Cout), lambda n, b: (0, 0)),
                pl.BlockSpec((1, Cout), lambda n, b: (0, 0)),
            ],
            out_specs=pl.BlockSpec((1, bh, W, Cout), lambda n, b: (n, b, 0, 0)),
        ),
        compiler_params=pltpu.CompilerParams(
            dimension_semantics=("parallel", "parallel"),
            vmem_limit_bytes=VMEM_LIMIT),
    )(xp, wr, sp, bp)


# ----------------------------------------------------------------------------
# MaxPool2d(kernel_size=3, stride=2, padding=1): padded input split into 4
# stride-2 phases (input-sized, no 9x stack); 3x3 max taken in-kernel.
# ----------------------------------------------------------------------------
def _maxpool_kernel(x_ref, o_ref, *, bh):
    # x_ref: (4, PH, PW, C) phases for one image; o_ref: (1, bh, OW, C)
    OW = o_ref.shape[2]
    r0 = pl.program_id(1) * bh
    acc = None
    for di in range(3):
        for dj in range(3):
            ph = (di % 2) * 2 + (dj % 2)
            win = x_ref[ph, pl.ds(r0 + di // 2, bh), pl.ds(dj // 2, OW), :]
            acc = win if acc is None else jnp.maximum(acc, win)
    o_ref[...] = acc.reshape(o_ref.shape).astype(o_ref.dtype)


def maxpool_3x3_s2(x):
    N, H, W, C = x.shape          # H, W even
    OH, OW = H // 2, W // 2
    xp = jnp.pad(x, ((0, 0), (1, 1), (1, 1), (0, 0)), constant_values=-jnp.inf)
    # 4 stride-2 phases so the kernel only does contiguous slicing.
    phases = jnp.stack([xp[:, a::2, b::2, :] for a in range(2) for b in range(2)],
                       axis=1)                                  # (N,4,PH,PW,C)
    PH, PW = phases.shape[2], phases.shape[3]
    phases = phases.reshape(N * 4, PH, PW, C)
    bh = 8 if OH % 8 == 0 else OH
    grid = (N, OH // bh)
    return pl.pallas_call(
        functools.partial(_maxpool_kernel, bh=bh),
        out_shape=jax.ShapeDtypeStruct((N, OH, OW, C), x.dtype),
        grid_spec=pltpu.PrefetchScalarGridSpec(
            num_scalar_prefetch=0,
            grid=grid,
            in_specs=[pl.BlockSpec((4, PH, PW, C), lambda n, b: (n, 0, 0, 0))],
            out_specs=pl.BlockSpec((1, bh, OW, C), lambda n, b: (n, b, 0, 0)),
        ),
        compiler_params=pltpu.CompilerParams(
            dimension_semantics=("parallel", "parallel"),
            vmem_limit_bytes=VMEM_LIMIT),
    )(phases)


# ----------------------------------------------------------------------------
# Spatial mean over H,W of an NHWC tensor -> (N, C)
# ----------------------------------------------------------------------------
def _mean_kernel(x_ref, o_ref):
    o_ref[...] = jnp.mean(x_ref[...].astype(jnp.float32), axis=1)


def spatial_mean(x):
    N, H, W, C = x.shape
    x3 = x.reshape(N, H * W, C)
    return pl.pallas_call(
        _mean_kernel,
        out_shape=jax.ShapeDtypeStruct((N, C), jnp.float32),
    )(x3)


# ----------------------------------------------------------------------------
# Conv dispatch: 1x1 -> plain fused matmul; 3x3/s1 -> direct kernel; rest ->
# im2col (only used for conv1, the 4 stride-2 3x3 convs, layer5 and conv_features
# — all small) + fused matmul.
# ----------------------------------------------------------------------------
def im2col(x, kh, kw, stride, pad):
    N, H, W, C = x.shape
    OH = (H + 2 * pad - kh) // stride + 1
    OW = (W + 2 * pad - kw) // stride + 1
    xp = jnp.pad(x, ((0, 0), (pad, pad), (pad, pad), (0, 0)))
    cols = []
    for i in range(kh):
        for j in range(kw):
            cols.append(xp[:, i:i + stride * (OH - 1) + 1:stride,
                           j:j + stride * (OW - 1) + 1:stride, :])
    patches = jnp.stack(cols, axis=3)            # (N, OH, OW, kh*kw, C)
    return patches.reshape(N * OH * OW, kh * kw * C), (N, OH, OW)


def conv_bn(x, w, scale, bias, stride=1, pad=0, relu=False, residual=None):
    kh, kw, cin, cout = w.shape
    N, H, W, _ = x.shape
    if kh == 1 and kw == 1:
        # 1x1 conv: (strided) spatial subsample + matmul -- no im2col blow-up.
        xs = x if stride == 1 else x[:, ::stride, ::stride, :]
        _, OH, OW, _ = xs.shape
        res2 = None if residual is None else residual.reshape(N * OH * OW, cout)
        out = fused_matmul(xs.reshape(N * OH * OW, cin), w.reshape(cin, cout),
                           scale, bias, residual=res2, relu=relu)
        return out.reshape(N, OH, OW, cout)
    if (kh, kw) == (3, 3) and stride == 1 and pad == 1 and residual is None \
            and H % 8 == 0 and W % 16 == 0:
        return conv3x3_s1_direct(x, w, scale, bias, relu=relu)
    patches, (N, OH, OW) = im2col(x, kh, kw, stride, pad)
    res2 = None if residual is None else residual.reshape(N * OH * OW, cout)
    out = fused_matmul(patches, w.reshape(kh * kw * cin, cout), scale, bias,
                       residual=res2, relu=relu)
    return out.reshape(N, OH, OW, cout)


# ----------------------------------------------------------------------------
# Parameters (deterministic, shapes match the PyTorch module __init__)
# ----------------------------------------------------------------------------
class KeyGen:
    def __init__(self, key):
        self.key = key

    def __call__(self):
        self.key, sub = jax.random.split(self.key)
        return sub


def kaiming_conv(key, kh, kw, cin, cout):
    fan_out = kh * kw * cout     # kaiming_normal_(mode='fan_out', relu)
    w = jax.random.normal(key, (kh, kw, cin, cout), jnp.float32) * math.sqrt(2.0 / fan_out)
    return w.astype(ACT_DTYPE)


def bn_params(c):
    # eval-mode BN at default init: weight=1, bias=0, running_mean=0, running_var=1
    scale = jnp.full((c,), 1.0 / math.sqrt(1.0 + BN_EPS), jnp.float32)
    bias = jnp.zeros((c,), jnp.float32)
    return scale, bias


def linear_params(key, fin, fout):
    k1, k2 = jax.random.split(key)
    lim = 1.0 / math.sqrt(fin)
    w = jax.random.uniform(k1, (fin, fout), jnp.float32, -lim, lim).astype(ACT_DTYPE)
    b = jax.random.uniform(k2, (fout,), jnp.float32, -lim, lim)
    return w, b


def make_bottleneck_params(kg, inplanes, planes, stride):
    exp = 4
    p = {'stride': stride}
    p['w1'] = kaiming_conv(kg(), 1, 1, inplanes, planes)
    p['s1'], p['b1'] = bn_params(planes)
    p['w2'] = kaiming_conv(kg(), 3, 3, planes, planes)
    p['s2'], p['b2'] = bn_params(planes)
    p['w3'] = kaiming_conv(kg(), 1, 1, planes, planes * exp)
    p['s3'], p['b3'] = bn_params(planes * exp)
    if stride != 1 or inplanes != planes * exp:
        p['wd'] = kaiming_conv(kg(), 1, 1, inplanes, planes * exp)
        p['sd'], p['bd'] = bn_params(planes * exp)
    return p


def build_resnet_params(key, num_classes=65, width_per_group=64, groups=1,
                        layers=(3, 4, 6, 3)):
    kg = KeyGen(key)
    planes = [int(width_per_group * groups * 2 ** i) for i in range(4)]
    params = {}
    params['conv1_w'] = kaiming_conv(kg(), 7, 7, 3, planes[0])
    params['bn1'] = bn_params(planes[0])

    inplanes = planes[0]
    layer_cfg = [(planes[0], layers[0], 1),
                 (planes[1], layers[1], 2),
                 (planes[2], layers[2], 2),
                 (planes[3], layers[3], 2),
                 (planes[3], layers[3], 2)]   # layer5 duplicates layer4 config
    all_layers = []
    for pln, blocks, stride in layer_cfg:
        blks = [make_bottleneck_params(kg, inplanes, pln, stride)]
        inplanes = pln * 4
        for _ in range(1, blocks):
            blks.append(make_bottleneck_params(kg, inplanes, pln, 1))
        all_layers.append(blks)
    params['layers'] = all_layers

    params['convf_w'] = kaiming_conv(kg(), 4, 4, 2048, 1024)   # conv_features
    params['fc'] = linear_params(kg(), 1024, num_classes * 4)
    params['fc2'] = linear_params(kg(), 2048, num_classes)
    params['num_classes'] = num_classes
    return params


# ----------------------------------------------------------------------------
# Forward pass
# ----------------------------------------------------------------------------
def bottleneck_forward(x, p):
    out = conv_bn(x, p['w1'], p['s1'], p['b1'], stride=1, pad=0, relu=True)
    out = conv_bn(out, p['w2'], p['s2'], p['b2'], stride=p['stride'], pad=1, relu=True)
    if 'wd' in p:
        identity = conv_bn(x, p['wd'], p['sd'], p['bd'], stride=p['stride'],
                           pad=0, relu=False)
    else:
        identity = x
    # bn3 affine + residual add + relu fused into the expand-1x1 matmul epilogue
    out = conv_bn(out, p['w3'], p['s3'], p['b3'], stride=1, pad=0, relu=True,
                  residual=identity)
    return out


def resnet_forward(params, x_nchw):
    # layout: PyTorch NCHW in -> NHWC (lane-dense) bf16 inside the kernels.
    x = jnp.transpose(x_nchw, (0, 2, 3, 1)).astype(ACT_DTYPE)
    x = conv_bn(x, params['conv1_w'], *params['bn1'], stride=2, pad=3, relu=True)
    x = maxpool_3x3_s2(x)

    x2_feat = None
    for li, blks in enumerate(params['layers']):
        for p in blks:
            x = bottleneck_forward(x, p)
        if li == 3:
            x2_feat = x   # layer4 output (N, 8, 8, 2048)
    # x is now the layer5 output (N, 4, 4, 2048)

    N = x.shape[0]
    nc = params['num_classes']

    # branch 2: spatial mean of layer4 features -> fc2
    x2 = spatial_mean(x2_feat)                                   # (N, 2048) f32
    w2, b2 = params['fc2']
    x2 = fused_matmul(x2, w2, jnp.ones((w2.shape[1],), jnp.float32), b2,
                      out_dtype=jnp.float32)
    x2 = x2.reshape(N, nc, 1)

    # branch 1: conv_features (4x4 conv, ReLU; Dropout is identity in eval) -> fc
    # TODO(synk): Dropout(p=0.5) layers are identity in inference mode.
    cf = params['convf_w']
    x = conv_bn(x, cf, jnp.ones((cf.shape[3],), jnp.float32),
                jnp.zeros((cf.shape[3],), jnp.float32), stride=1, pad=0, relu=True)
    x = x.reshape(N, -1)                                         # (N, 1024)
    wfc, bfc = params['fc']
    x = fused_matmul(x, wfc, jnp.ones((wfc.shape[1],), jnp.float32), bfc,
                     out_dtype=jnp.float32)
    x = x.reshape(N, nc, 4)

    # tiny (N x 65 x 5) concat + max: plain JAX glue
    x = jnp.concatenate([x, x2], axis=2)
    x = jnp.max(x, axis=2)                                       # (N, num_classes)
    return x


if __name__ == "__main__":
    key = jax.random.PRNGKey(0)
    kp, kx = jax.random.split(key)
    params = build_resnet_params(kp)
    # 256x256 is the smallest input for which conv_features -> fc shapes line up
    # (spatial /64 must equal the 4x4 conv_features kernel).
    x = jax.random.normal(kx, (2, 3, 256, 256), jnp.float32)  # NCHW, like PyTorch
    out = resnet_forward(params, x)
    out = jax.block_until_ready(out)
    assert out.shape == (2, 65), out.shape
    assert bool(jnp.all(jnp.isfinite(out)))
    print("KERNEL_OK")
</pallas_src>

<mosaic_0001>
module attributes {stable_mosaic.version = 11 : i64} {
  func.func @_mm_kernel(%arg0: i32, %arg1: i32, %arg2: i32, %arg3: memref<1024x147xbf16, #tpu.memory_space<vmem>>, %arg4: memref<147x64xbf16, #tpu.memory_space<vmem>>, %arg5: memref<1x64xf32, #tpu.memory_space<vmem>>, %arg6: memref<1x64xf32, #tpu.memory_space<vmem>>, %arg7: memref<1024x64xbf16, #tpu.memory_space<vmem>>, %arg8: memref<1024x64xf32, #tpu.memory_space<vmem>>) attributes {dimension_semantics = [#tpu.dimension_semantics<parallel>, #tpu.dimension_semantics<parallel>, #tpu.dimension_semantics<arbitrary>], iteration_bounds = array<i64: 32, 1, 1>, scalar_prefetch = 0 : i64, scratch_operands = 1 : i64, tpu.core_type = #tpu.core_type<tc>, window_params = [{transform_indices = @transform_0, window_bounds = array<i64: 1024, 147>}, {transform_indices = @transform_1, window_bounds = array<i64: 147, 64>}, {transform_indices = @transform_2, window_bounds = array<i64: 1, 64>}, {transform_indices = @transform_3, window_bounds = array<i64: 1, 64>}, {transform_indices = @transform_4, window_bounds = array<i64: 1024, 64>}]} {
    %c0_i32 = arith.constant 0 : i32
    %0 = arith.cmpi eq, %arg2, %c0_i32 : i32
    %1 = arith.extui %0 : i1 to i32
    %c0_i32_0 = arith.constant 0 : i32
    %2 = arith.cmpi ne, %1, %c0_i32_0 : i32
    scf.if %2 {
      %cst_10 = arith.constant 0.000000e+00 : f32
      %12 = vector.broadcast %cst_10 : f32 to vector<1024x64xf32>
      %c0_11 = arith.constant 0 : index
      %c0_12 = arith.constant 0 : index
      %13 = vector.load %arg8[%c0_11, %c0_12] : memref<1024x64xf32, #tpu.memory_space<vmem>>, vector<1024x64xf32>
      tpu.vector_store %arg8[%c0_11, %c0_12], %12 {strides = array<i32>} : memref<1024x64xf32, #tpu.memory_space<vmem>>, vector<1024x64xf32>,
    } else {
    }
    %c0 = arith.constant 0 : index
    %c0_1 = arith.constant 0 : index
    %3 = vector.load %arg8[%c0, %c0_1] : memref<1024x64xf32, #tpu.memory_space<vmem>>, vector<1024x64xf32>
    %c0_2 = arith.constant 0 : index
    %c0_3 = arith.constant 0 : index
    %4 = vector.load %arg3[%c0_2, %c0_3] : memref<1024x147xbf16, #tpu.memory_space<vmem>>, vector<1024x147xbf16>
    %c0_4 = arith.constant 0 : index
    %c0_5 = arith.constant 0 : index
    %5 = vector.load %arg4[%c0_4, %c0_5] : memref<147x64xbf16, #tpu.memory_space<vmem>>, vector<147x64xbf16>
    %cst = arith.constant dense<0.000000e+00> : vector<1024x64xf32>
    %6 = tpu.matmul %4, %5, %cst {dimension_numbers = #tpu.dot_dimension_numbers<[1], [0], [0], [1], [0, 0, 1, 1], [], []>} : vector<1024x147xbf16>, vector<147x64xbf16>, vector<1024x64xf32> -> vector<1024x64xf32>
    %7 = arith.addf %3, %6 : vector<1024x64xf32>
    %c0_6 = arith.constant 0 : index
    %c0_7 = arith.constant 0 : index
    %8 = vector.load %arg8[%c0_6, %c0_7] : memref<1024x64xf32, #tpu.memory_space<vmem>>, vector<1024x64xf32>
    tpu.vector_store %arg8[%c0_6, %c0_7], %7 {strides = array<i32>} : memref<1024x64xf32, #tpu.memory_space<vmem>>, vector<1024x64xf32>,
    %c0_i32_8 = arith.constant 0 : i32
    %9 = arith.cmpi eq, %arg2, %c0_i32_8 : i32
    %10 = arith.extui %9 : i1 to i32
    %c0_i32_9 = arith.constant 0 : i32
    %11 = arith.cmpi ne, %10, %c0_i32_9 : i32
    scf.if %11 {
      %c0_10 = arith.constant 0 : index
      %c0_11 = arith.constant 0 : index
      %12 = vector.load %arg8[%c0_10, %c0_11] : memref<1024x64xf32, #tpu.memory_space<vmem>>, vector<1024x64xf32>
      %c0_12 = arith.constant 0 : index
      %c0_13 = arith.constant 0 : index
      %13 = vector.load %arg5[%c0_12, %c0_13] : memref<1x64xf32, #tpu.memory_space<vmem>>, vector<1x64xf32>
      %14 = vector.broadcast %13 : vector<1x64xf32> to vector<1024x64xf32>
      %15 = arith.mulf %12, %14 : vector<1024x64xf32>
      %c0_14 = arith.constant 0 : index
      %c0_15 = arith.constant 0 : index
      %16 = vector.load %arg6[%c0_14, %c0_15] : memref<1x64xf32, #tpu.memory_space<vmem>>, vector<1x64xf32>
      %17 = vector.broadcast %16 : vector<1x64xf32> to vector<1024x64xf32>
      %18 = arith.addf %15, %17 : vector<1024x64xf32>
      %cst_16 = arith.constant 0.000000e+00 : f32
      %19 = vector.broadcast %cst_16 : f32 to vector<1024x64xf32>
      %20 = arith.maximumf %18, %19 : vector<1024x64xf32>
      %21 = arith.truncf %20 : vector<1024x64xf32> to vector<1024x64xbf16>
      %c0_17 = arith.constant 0 : index
      %c0_18 = arith.constant 0 : index
      %22 = vector.load %arg7[%c0_17, %c0_18] : memref<1024x64xbf16, #tpu.memory_space<vmem>>, vector<1024x64xbf16>
      tpu.vector_store %arg7[%c0_17, %c0_18], %21 {strides = array<i32>} : memref<1024x64xbf16, #tpu.memory_space<vmem>>, vector<1024x64xbf16>,
    } else {
    }
    return
  }
  func.func @transform_0(%arg0: i32, %arg1: i32, %arg2: i32) -> (i32, i32) {
    %c0_i32 = arith.constant 0 : i32
    return %arg0, %arg2 : i32, i32
  }
  func.func @transform_1(%arg0: i32, %arg1: i32, %arg2: i32) -> (i32, i32) {
    %c0_i32 = arith.constant 0 : i32
    return %arg2, %arg1 : i32, i32
  }
  func.func @transform_2(%arg0: i32, %arg1: i32, %arg2: i32) -> (i32, i32) {
    %c0_i32 = arith.constant 0 : i32
    %c0_i32_0 = arith.constant 0 : i32
    return %c0_i32, %arg1 : i32, i32
  }
  func.func @transform_3(%arg0: i32, %arg1: i32, %arg2: i32) -> (i32, i32) {
    %c0_i32 = arith.constant 0 : i32
    %c0_i32_0 = arith.constant 0 : i32
    return %c0_i32, %arg1 : i32, i32
  }
  func.func @transform_4(%arg0: i32, %arg1: i32, %arg2: i32) -> (i32, i32) {
    %c0_i32 = arith.constant 0 : i32
    return %arg0, %arg1 : i32, i32
  }
}

</mosaic_0001>

<llo_original>
// kernel: tpu_custom_call.1
$region0: #{tpu_custom_call.1}
  #allocation0 [shape = 'u32[]', space=smem, size = 0x4, offset = 0x4, fixed_abs, tag = 'smem constant byte address 0x4 - core index']
  #allocation1 [shape = 'u32[144,128]{1,0:T(1,128)}', space=vmem, size = 0x12000, scoped, tag = 'internal scratch']
  #allocation2 [shape = 'f32[1024,64]{1,0:T(8,128)}', space=vmem, size = 0x80000, scoped, tag = 'scratch operand']
  %s0 = inlined_call_operand.vmem [shape: bf16[32768,147], index: 0, kind: input, shape index: {}]
  %s1 = inlined_call_operand.hbm [shape: bf16[147,64], index: 1, kind: input, shape index: {}]
  %s2 = inlined_call_operand.hbm [shape: f32[1,64], index: 2, kind: input, shape index: {}]
  %s3 = inlined_call_operand.hbm [shape: f32[1,64], index: 3, kind: input, shape index: {}]
  %s4 = inlined_call_operand.hbm [shape: bf16[32768,64], index: 4, kind: output, shape index: {}]
  %s5 = sld [smem:[#allocation0]]
  $region69: #{tpu_custom_call.1} parent=0
    _
  %s7 = ssub.s32 1, %s5
  %s8 = scalar_select 0, %s7, %s5
  $region1: #{tpu_custom_call.1} parent=0
    #allocation3 [shape = 'u8[38912]{0}', space=vmem, size = 0x9800, scoped, tag = 'input window, operand 1, single buffered']
    #allocation4 [shape = 's32[2]{0}', space=sflag, size = 0x8, scoped, tag = 'scoped memory for tpu_custom_call.1']
    #allocation5 [shape = 's32[2]{0}', space=sflag, size = 0x8, scoped, tag = 'scoped memory for tpu_custom_call.1']
    #allocation6 [shape = 'u8[512]{0}', space=vmem, size = 0x400, scoped, tag = 'input window, operand 2, single buffered']
    #allocation7 [shape = 's32[1]{0}', space=sflag, size = 0x4, scoped, tag = 'scoped memory for tpu_custom_call.1']
    #allocation8 [shape = 'u8[512]{0}', space=vmem, size = 0x400, scoped, tag = 'input window, operand 3, single buffered']
    #allocation9 [shape = 'u8[524288]{0}', space=vmem, size = 0x80000, scoped, tag = 'output window, operand 0']
    %9 = vsyncpa [#allocation4], 0
    %10 = vsyncpa [#allocation7], 0
    %11 = vsyncpa [#allocation5], 0
    %s12 = scalar_lea.sflag [#allocation5], 1
    %13 = vsyncpa %s12, 0
    loop: start=0, step=1, limit=34
    $region2: #{tpu_custom_call.1} parent=1 // loop_pre_header
      _
    $region3: #{tpu_custom_call.1} parent=1 // loop_header
      %s15 = sphi 0, %s19
      %p16 = scmp.ge.s32.totalorder %s15, 34
      %s22 = sphi 0, %s41
      %s23 = sphi 0, %s37
      %s24 = sphi 0, %s33
      %s25 = sphi 0, %s22
      %s26 = sphi 0, %s23
      %s27 = sphi 0, %s24
      %s28 = sphi 0, %s25
      %s29 = sphi 0, %s26
      %s30 = sphi 0, %s27
      %s46 = sphi 0, %s48
      %s49 = sphi 0, %s46
      %s50 = sphi 0, %s49
      %s66 = sphi 0, %s50
      %s74 = sphi 0, %s76
      %s77 = sphi 0, %s74
      %s78 = sphi 0, %s77
      %s94 = sphi 0, %s78
      %s100 = sphi 0, %s102
      %s103 = sphi 0, %s100
      %s104 = sphi 0, %s103
      %s120 = sphi 0, %s104
      %s126 = sphi 0, %s128
      %s129 = sphi 0, %s126
      %s130 = sphi 0, %s129
      %s146 = sphi 0, %s130
      %s154 = sphi 0, %s156
      %s157 = sphi 0, %s154
      %s158 = sphi 0, %s157
      %s174 = sphi 0, %s158
    $region4: #{tpu_custom_call.1} parent=1 // loop_header_branch
      %18 = sbr.rel (%p16) target = $region8
    $region5: #{tpu_custom_call.1} parent=1 // loop_body
      %s20 = ssub.s32 %s15, 1
      %s21 = ssub.s32 %s15, 2
      %s31 = sadd.s32 1, %s24
      %p32 = scmp.ge.s32.totalorder %s31, 1
      %s33 = scalar_select %p32, 0, %s31
      %s34 = sadd.s32 1, %s23
      %s35 = scalar_select %p32, %s34, %s23
      %p36 = scmp.ge.s32.totalorder %s35, 1
      %s37 = scalar_select %p36, 0, %s35
      %s38 = sadd.s32 1, %s22
      %s39 = scalar_select %p36, %s38, %s22
      %p40 = scmp.ge.s32.totalorder %s39, 32
      %s41 = scalar_select %p40, 0, %s39
      %s42 = ssub.s32 %s22, %s41
      %s43 = ssub.s32 %s24, %s33
      %s44 = sor.u32 %s42, %s43
      %p45 = scmp.eq.s32.totalorder %s44, 0
      %s47 = sadd.s32 %s46, 1
      %s48 = scalar_select %p45, %s46, %s47
      %p51 = pneg %p45
      %p52 = scmp.eq.s32.totalorder %s15, 31
      %p53 = por %p51, %p52
      %p54 = scmp.ne.s32.totalorder %s46, %s49
      %p55 = scmp.eq.s32.totalorder %s15, 0
      %p56 = por %p54, %p55
      %p57 = scmp.ne.s32.totalorder %s46, %s49
      %p58 = scmp.eq.s32.totalorder %s20, 31
      %p59 = por %p57, %p58
      %p60 = scmp.ne.s32.totalorder %s49, %s50
      %p61 = scmp.eq.s32.totalorder %s20, 0
      %p62 = por %p60, %p61
      %p63 = scmp.ne.s32.totalorder %s49, %s50
      %p64 = scmp.eq.s32.totalorder %s21, 31
      %p65 = por %p63, %p64
      %p67 = scmp.ne.s32.totalorder %s50, %s66
      %p68 = scmp.eq.s32.totalorder %s21, 0
      %p69 = por %p67, %p68
      %s70 = ssub.s32 %s24, %s33
      %s71 = ssub.s32 %s23, %s37
      %s72 = sor.u32 %s70, %s71
      %p73 = scmp.eq.s32.totalorder %s72, 0
      %s75 = sadd.s32 %s74, 1
      %s76 = scalar_select %p73, %s74, %s75
      %p79 = pneg %p73
      %p80 = scmp.eq.s32.totalorder %s15, 31
      %p81 = por %p79, %p80
      %p82 = scmp.ne.s32.totalorder %s74, %s77
      %p83 = scmp.eq.s32.totalorder %s15, 0
      %p84 = por %p82, %p83
      %p85 = scmp.ne.s32.totalorder %s74, %s77
      %p86 = scmp.eq.s32.totalorder %s20, 31
      %p87 = por %p85, %p86
      %p88 = scmp.ne.s32.totalorder %s77, %s78
      %p89 = scmp.eq.s32.totalorder %s20, 0
      %p90 = por %p88, %p89
      %p91 = scmp.ne.s32.totalorder %s77, %s78
      %p92 = scmp.eq.s32.totalorder %s21, 31
      %p93 = por %p91, %p92
      %p95 = scmp.ne.s32.totalorder %s78, %s94
      %p96 = scmp.eq.s32.totalorder %s21, 0
      %p97 = por %p95, %p96
      %s98 = ssub.s32 %s23, %s37
      %p99 = scmp.eq.s32.totalorder %s98, 0
      %s101 = sadd.s32 %s100, 1
      %s102 = scalar_select %p99, %s100, %s101
      %p105 = pneg %p99
      %p106 = scmp.eq.s32.totalorder %s15, 31
      %p107 = por %p105, %p106
      %p108 = scmp.ne.s32.totalorder %s100, %s103
      %p109 = scmp.eq.s32.totalorder %s15, 0
      %p110 = por %p108, %p109
      %p111 = scmp.ne.s32.totalorder %s100, %s103
      %p112 = scmp.eq.s32.totalorder %s20, 31
      %p113 = por %p111, %p112
      %p114 = scmp.ne.s32.totalorder %s103, %s104
      %p115 = scmp.eq.s32.totalorder %s20, 0
      %p116 = por %p114, %p115
      %p117 = scmp.ne.s32.totalorder %s103, %s104
      %p118 = scmp.eq.s32.totalorder %s21, 31
      %p119 = por %p117, %p118
      %p121 = scmp.ne.s32.totalorder %s104, %s120
      %p122 = scmp.eq.s32.totalorder %s21, 0
      %p123 = por %p121, %p122
      %s124 = ssub.s32 %s23, %s37
      %p125 = scmp.eq.s32.totalorder %s124, 0
      %s127 = sadd.s32 %s126, 1
      %s128 = scalar_select %p125, %s126, %s127
      %p131 = pneg %p125
      %p132 = scmp.eq.s32.totalorder %s15, 31
      %p133 = por %p131, %p132
      %p134 = scmp.ne.s32.totalorder %s126, %s129
      %p135 = scmp.eq.s32.totalorder %s15, 0
      %p136 = por %p134, %p135
      %p137 = scmp.ne.s32.totalorder %s126, %s129
      %p138 = scmp.eq.s32.totalorder %s20, 31
      %p139 = por %p137, %p138
      %p140 = scmp.ne.s32.totalorder %s129, %s130
      %p141 = scmp.eq.s32.totalorder %s20, 0
      %p142 = por %p140, %p141
      %p143 = scmp.ne.s32.totalorder %s129, %s130
      %p144 = scmp.eq.s32.totalorder %s21, 31
      %p145 = por %p143, %p144
      %p147 = scmp.ne.s32.totalorder %s130, %s146
      %p148 = scmp.eq.s32.totalorder %s21, 0
      %p149 = por %p147, %p148
      %s150 = ssub.s32 %s22, %s41
      %s151 = ssub.s32 %s23, %s37
      %s152 = sor.u32 %s150, %s151
      %p153 = scmp.eq.s32.totalorder %s152, 0
      %s155 = sadd.s32 %s154, 1
      %s156 = scalar_select %p153, %s154, %s155
      %p159 = pneg %p153
      %p160 = scmp.eq.s32.totalorder %s15, 31
      %p161 = por %p159, %p160
      %p162 = scmp.ne.s32.totalorder %s154, %s157
      %p163 = scmp.eq.s32.totalorder %s15, 0
      %p164 = por %p162, %p163
      %p165 = scmp.ne.s32.totalorder %s154, %s157
      %p166 = scmp.eq.s32.totalorder %s20, 31
      %p167 = por %p165, %p166
      %p168 = scmp.ne.s32.totalorder %s157, %s158
      %p169 = scmp.eq.s32.totalorder %s20, 0
      %p170 = por %p168, %p169
      %p171 = scmp.ne.s32.totalorder %s157, %s158
      %p172 = scmp.eq.s32.totalorder %s21, 31
      %p173 = por %p171, %p172
      %p175 = scmp.ne.s32.totalorder %s158, %s174
      %p176 = scmp.eq.s32.totalorder %s21, 0
      %p177 = por %p175, %p176
      %p178 = scmp.le.s32.totalorder 1, %s15
      %p179 = scmp.lt.s32.totalorder %s15, 33
      %p180 = pnand %p178, %p179
      %p181 = pneg %p180
      // Predicated region
      $region9: #{tpu_custom_call.1} parent=5 // pred_check
        _
      $region10: #{tpu_custom_call.1} parent=5 // pred_check_branch
        %183 = sbr.rel (%p180) target = $region12
      $region11: #{tpu_custom_call.1} parent=5 // pred_region
        %s184 = ssub.s32 %s15, 1
        // Predicated region
        $region13: #{tpu_custom_call.1} parent=11 // pred_check
          %p185 = pneg %p90
        $region14: #{tpu_custom_call.1} parent=11 // pred_check_branch
          %187 = sbr.rel (%p185) target = $region16
        $region15: #{tpu_custom_call.1} parent=11 // pred_region
          %s188 = smul.u32 19, %s27
          %s190 = ssub.s32 1216, 1216
          %191 = vsyncadd [#allocation4], %s190
          %s192 = sadd.s32 %s26, %s188
          %s193 = smul.addr %s192, 64
          %s194 = scalar_lea.hbm %s1, %s193
          %s195 = sshll.u32 [#allocation3], 4
          %s196 = int_to_ptr.vmem [resolvable:$true] %s195
          %201 = dma.hbm_to_vmem [thread:$0]  %s194, 1216, %s196, [#allocation4], 64, 64, 4
        $region16: #{tpu_custom_call.1} parent=11 // pred_fallthru
          _
        // Predicated region
        $region17: #{tpu_custom_call.1} parent=11 // pred_check
          %p202 = pneg %p116
        $region18: #{tpu_custom_call.1} parent=11 // pred_check_branch
          %204 = sbr.rel (%p202) target = $region20
        $region19: #{tpu_custom_call.1} parent=11 // pred_region
          %s206 = ssub.s32 16, 16
          %207 = vsyncadd [#allocation7], %s206
          %s208 = smul.addr %s26, 16
          %s209 = scalar_lea.hbm %s2, %s208
          %s211 = sshll.u32 [#allocation6], 4
          %s212 = int_to_ptr.vmem [resolvable:$true] %s211
          %214 = dma.hbm_to_vmem [thread:$0]  %s209, 16, %s212, [#allocation7]
        $region20: #{tpu_custom_call.1} parent=11 // pred_fallthru
          _
        // Predicated region
        $region21: #{tpu_custom_call.1} parent=11 // pred_check
          %p215 = pneg %p142
        $region22: #{tpu_custom_call.1} parent=11 // pred_check_branch
          %217 = sbr.rel (%p215) target = $region24
        $region23: #{tpu_custom_call.1} parent=11 // pred_region
          %s219 = ssub.s32 16, 16
          %220 = vsyncadd [#allocation7], %s219
          %s221 = smul.addr %s26, 16
          %s222 = scalar_lea.hbm %s3, %s221
          %s224 = sshll.u32 [#allocation8], 4
          %s225 = int_to_ptr.vmem [resolvable:$true] %s224
          %227 = dma.hbm_to_vmem [thread:$0]  %s222, 16, %s225, [#allocation7]
        $region24: #{tpu_custom_call.1} parent=11 // pred_fallthru
          _
      $region12: #{tpu_custom_call.1} parent=5 // pred_fallthru
        _
      %p228 = scmp.lt.s32.totalorder %s15, 32
      // Predicated region
      $region25: #{tpu_custom_call.1} parent=5 // pred_check
        %p229 = pneg %p228
      $region26: #{tpu_custom_call.1} parent=5 // pred_check_branch
        %231 = sbr.rel (%p229) target = $region28
      $region27: #{tpu_custom_call.1} parent=5 // pred_region
        // Predicated region
        $region29: #{tpu_custom_call.1} parent=27 // pred_check
          %p232 = pneg %p56
        $region30: #{tpu_custom_call.1} parent=27 // pred_check_branch
          %234 = sbr.rel (%p232) target = $region32
        $region31: #{tpu_custom_call.1} parent=27 // pred_region
          %s235 = smul.u32 128, %s22
          %s236 = smul.u32 2, %s24
          %p237 = scmp.lt.s32.totalorder %s235, 4095
          %s238 = scalar_select %p237, %s235, 4095
          %p239 = scmp.lt.s32.totalorder %s236, 1
          %s240 = scalar_select %p239, %s236, 1
          %s241 = smul.addr %s238, 2
          %s242 = sadd.s32 %s240, %s241
          %s243 = smul.addr %s242, 4
          %s244 = scalar_lea.vmem %s0, %s243
          %s245 = smul.u32 128, %s22
          %s246 = smul.u32 2, %s24
        $region32: #{tpu_custom_call.1} parent=27 // pred_fallthru
          _
      $region28: #{tpu_custom_call.1} parent=5 // pred_fallthru
        _
      %p247 = scmp.le.s32.totalorder 1, %s15
      %p248 = scmp.lt.s32.totalorder %s15, 33
      %p249 = pnand %p247, %p248
      %p250 = pneg %p249
      // Predicated region
      $region33: #{tpu_custom_call.1} parent=5 // pred_check
        _
      $region34: #{tpu_custom_call.1} parent=5 // pred_check_branch
        %252 = sbr.rel (%p249) target = $region36
      $region35: #{tpu_custom_call.1} parent=5 // pred_region
        %s253 = ssub.s32 %s15, 1
        // Predicated region
        $region37: #{tpu_custom_call.1} parent=35 // pred_check
          %p254 = pneg %p90
        $region38: #{tpu_custom_call.1} parent=35 // pred_check_branch
          %256 = sbr.rel (%p254) target = $region40
        $region39: #{tpu_custom_call.1} parent=35 // pred_region
          %257 = dma.done [#allocation4], 1216
        $region40: #{tpu_custom_call.1} parent=35 // pred_fallthru
          _
        // Predicated region
        $region41: #{tpu_custom_call.1} parent=35 // pred_check
          %p258 = pneg %p116
        $region42: #{tpu_custom_call.1} parent=35 // pred_check_branch
          %260 = sbr.rel (%p258) target = $region44
        $region43: #{tpu_custom_call.1} parent=35 // pred_region
          %261 = dma.done [#allocation7], 16
        $region44: #{tpu_custom_call.1} parent=35 // pred_fallthru
          _
        // Predicated region
        $region45: #{tpu_custom_call.1} parent=35 // pred_check
          %p262 = pneg %p142
        $region46: #{tpu_custom_call.1} parent=35 // pred_check_branch
          %264 = sbr.rel (%p262) target = $region48
        $region47: #{tpu_custom_call.1} parent=35 // pred_region
          %265 = dma.done [#allocation7], 16
        $region48: #{tpu_custom_call.1} parent=35 // pred_fallthru
          _
        %s266 = smul.u32 128, %s25
        %s267 = smul.u32 2, %s27
        %p268 = scmp.lt.s32.totalorder %s266, 4095
        %s269 = scalar_select %p268, %s266, 4095
        %p270 = scmp.lt.s32.totalorder %s267, 1
        %s271 = scalar_select %p270, %s267, 1
        %s272 = smul.addr %s269, 2
        %s273 = sadd.s32 %s271, %s272
        %s274 = smul.addr %s273, 4
        %s275 = scalar_lea.vmem %s0, %s274
        %p276 = pneg %p62
        %p277 = pneg %p59
        %p278 = pneg %p90
        %p279 = pneg %p87
        %p280 = pneg %p116
        %p281 = pneg %p113
        %p282 = pneg %p142
        %p283 = pneg %p139
        %p284 = pneg %p170
        %p285 = pneg %p167
        %s286 = sand.u32 %s157, 1
        %s287 = scalar_lea.sflag [#allocation5], %s286
        %s288 = sand.u32 %s157, 1
        %s289 = smul.addr %s288, 512
        %s290 = scalar_lea.vmem [#allocation9], %s289
        %s291 = smul.u32 128, %s25
        %s292 = smul.u32 2, %s27
        %p293 = scmp.lt.s32.totalorder %s291, 4095
        %s294 = scalar_select %p293, %s291, 4095
        %p295 = scmp.lt.s32.totalorder %s292, 1
        %s296 = scalar_select %p295, %s292, 1
        %s297 = smul.addr %s294, 2
        %s298 = sadd.s32 %s296, %s297
        %s299 = smul.addr %s298, 4
        %s300 = scalar_lea.vmem %s0, %s299
        %s301 = smul.u32 128, %s25
        %s302 = smul.u32 2, %s27
        %s303 = smul.u32 19, %s27
        %s304 = smul.u32 128, %s25
        %p306 = scmp.eq.s32.totalorder %s27, 0
        // Predicated region
        $region49: #{tpu_custom_call.1} parent=35 // pred_check
          %p307 = pneg %p306
        $region50: #{tpu_custom_call.1} parent=35 // pred_check_branch
          %309 = sbr.rel (%p307) target = $region52
        $region51: #{tpu_custom_call.1} parent=35 // pred_region
          %vm310 = vcmask 523264
          %311 = vst.msk [vmem:[#allocation2] sm:$0xff] %vm310, 0.0
          %312 = vst.msk [vmem:[#allocation2 + $0x8] sm:$0xff] %vm310, 0.0
          %313 = vst.msk [vmem:[#allocation2 + $0x10] sm:$0xff] %vm310, 0.0
          %314 = vst.msk [vmem:[#allocation2 + $0x18] sm:$0xff] %vm310, 0.0
          %315 = vst.msk [vmem:[#allocation2 + $0x20] sm:$0xff] %vm310, 0.0
          %316 = vst.msk [vmem:[#allocation2 + $0x28] sm:$0xff] %vm310, 0.0
          %317 = vst.msk [vmem:[#allocation2 + $0x30] sm:$0xff] %vm310, 0.0
          %318 = vst.msk [vmem:[#allocation2 + $0x38] sm:$0xff] %vm310, 0.0
          %319 = vst.msk [vmem:[#allocation2 + $0x40] sm:$0xff] %vm310, 0.0
          %320 = vst.msk [vmem:[#allocation2 + $0x48] sm:$0xff] %vm310, 0.0
          %321 = vst.msk [vmem:[#allocation2 + $0x50] sm:$0xff] %vm310, 0.0
          %322 = vst.msk [vmem:[#allocation2 + $0x58] sm:$0xff] %vm310, 0.0
          %323 = vst.msk [vmem:[#allocation2 + $0x60] sm:$0xff] %vm310, 0.0
          %324 = vst.msk [vmem:[#allocation2 + $0x68] sm:$0xff] %vm310, 0.0
          %325 = vst.msk [vmem:[#allocation2 + $0x70] sm:$0xff] %vm310, 0.0
          %326 = vst.msk [vmem:[#allocation2 + $0x78] sm:$0xff] %vm310, 0.0
          %327 = vst.msk [vmem:[#allocation2 + $0x80] sm:$0xff] %vm310, 0.0
          %328 = vst.msk [vmem:[#allocation2 + $0x88] sm:$0xff] %vm310, 0.0
          %329 = vst.msk [vmem:[#allocation2 + $0x90] sm:$0xff] %vm310, 0.0
          %330 = vst.msk [vmem:[#allocation2 + $0x98] sm:$0xff] %vm310, 0.0
          %331 = vst.msk [vmem:[#allocation2 + $0xa0] sm:$0xff] %vm310, 0.0
          %332 = vst.msk [vmem:[#allocation2 + $0xa8] sm:$0xff] %vm310, 0.0
          %333 = vst.msk [vmem:[#allocation2 + $0xb0] sm:$0xff] %vm310, 0.0
          %334 = vst.msk [vmem:[#allocation2 + $0xb8] sm:$0xff] %vm310, 0.0
          %335 = vst.msk [vmem:[#allocation2 + $0xc0] sm:$0xff] %vm310, 0.0
          %336 = vst.msk [vmem:[#allocation2 + $0xc8] sm:$0xff] %vm310, 0.0
          %337 = vst.msk [vmem:[#allocation2 + $0xd0] sm:$0xff] %vm310, 0.0
          %338 = vst.msk [vmem:[#allocation2 + $0xd8] sm:$0xff] %vm310, 0.0
          %339 = vst.msk [vmem:[#allocation2 + $0xe0] sm:$0xff] %vm310, 0.0
          %340 = vst.msk [vmem:[#allocation2 + $0xe8] sm:$0xff] %vm310, 0.0
          %341 = vst.msk [vmem:[#allocation2 + $0xf0] sm:$0xff] %vm310, 0.0
          %342 = vst.msk [vmem:[#allocation2 + $0xf8] sm:$0xff] %vm310, 0.0
          %343 = vst.msk [vmem:[#allocation2 + $0x100] sm:$0xff] %vm310, 0.0
          %344 = vst.msk [vmem:[#allocation2 + $0x108] sm:$0xff] %vm310, 0.0
          %345 = vst.msk [vmem:[#allocation2 + $0x110] sm:$0xff] %vm310, 0.0
          %346 = vst.msk [vmem:[#allocation2 + $0x118] sm:$0xff] %vm310, 0.0
          %347 = vst.msk [vmem:[#allocation2 + $0x120] sm:$0xff] %vm310, 0.0
          %348 = vst.msk [vmem:[#allocation2 + $0x128] sm:$0xff] %vm310, 0.0
          %349 = vst.msk [vmem:[#allocation2 + $0x130] sm:$0xff] %vm310, 0.0
          %350 = vst.msk [vmem:[#allocation2 + $0x138] sm:$0xff] %vm310, 0.0
          %351 = vst.msk [vmem:[#allocation2 + $0x140] sm:$0xff] %vm310, 0.0
          %352 = vst.msk [vmem:[#allocation2 + $0x148] sm:$0xff] %vm310, 0.0
          %353 = vst.msk [vmem:[#allocation2 + $0x150] sm:$0xff] %vm310, 0.0
          %354 = vst.msk [vmem:[#allocation2 + $0x158] sm:$0xff] %vm310, 0.0
          %355 = vst.msk [vmem:[#allocation2 + $0x160] sm:$0xff] %vm310, 0.0
          %356 = vst.msk [vmem:[#allocation2 + $0x168] sm:$0xff] %vm310, 0.0
          %357 = vst.msk [vmem:[#allocation2 + $0x170] sm:$0xff] %vm310, 0.0
          %358 = vst.msk [vmem:[#allocation2 + $0x178] sm:$0xff] %vm310, 0.0
          %359 = vst.msk [vmem:[#allocation2 + $0x180] sm:$0xff] %vm310, 0.0
          %360 = vst.msk [vmem:[#allocation2 + $0x188] sm:$0xff] %vm310, 0.0
          %361 = vst.msk [vmem:[#allocation2 + $0x190] sm:$0xff] %vm310, 0.0
          %362 = vst.msk [vmem:[#allocation2 + $0x198] sm:$0xff] %vm310, 0.0
          %363 = vst.msk [vmem:[#allocation2 + $0x1a0] sm:$0xff] %vm310, 0.0
          %364 = vst.msk [vmem:[#allocation2 + $0x1a8] sm:$0xff] %vm310, 0.0
          %365 = vst.msk [vmem:[#allocation2 + $0x1b0] sm:$0xff] %vm310, 0.0
          %366 = vst.msk [vmem:[#allocation2 + $0x1b8] sm:$0xff] %vm310, 0.0
          %367 = vst.msk [vmem:[#allocation2 + $0x1c0] sm:$0xff] %vm310, 0.0
          %368 = vst.msk [vmem:[#allocation2 + $0x1c8] sm:$0xff] %vm310, 0.0
          %369 = vst.msk [vmem:[#allocation2 + $0x1d0] sm:$0xff] %vm310, 0.0
          %370 = vst.msk [vmem:[#allocation2 + $0x1d8] sm:$0xff] %vm310, 0.0
          %371 = vst.msk [vmem:[#allocation2 + $0x1e0] sm:$0xff] %vm310, 0.0
          %372 = vst.msk [vmem:[#allocation2 + $0x1e8] sm:$0xff] %vm310, 0.0
          %373 = vst.msk [vmem:[#allocation2 + $0x1f0] sm:$0xff] %vm310, 0.0
          %374 = vst.msk [vmem:[#allocation2 + $0x1f8] sm:$0xff] %vm310, 0.0
          %375 = vst.msk [vmem:[#allocation2 + $0x200] sm:$0xff] %vm310, 0.0
          %376 = vst.msk [vmem:[#allocation2 + $0x208] sm:$0xff] %vm310, 0.0
          %377 = vst.msk [vmem:[#allocation2 + $0x210] sm:$0xff] %vm310, 0.0
          %378 = vst.msk [vmem:[#allocation2 + $0x218] sm:$0xff] %vm310, 0.0
          %379 = vst.msk [vmem:[#allocation2 + $0x220] sm:$0xff] %vm310, 0.0
          %380 = vst.msk [vmem:[#allocation2 + $0x228] sm:$0xff] %vm310, 0.0
          %381 = vst.msk [vmem:[#allocation2 + $0x230] sm:$0xff] %vm310, 0.0
          %382 = vst.msk [vmem:[#allocation2 + $0x238] sm:$0xff] %vm310, 0.0
          %383 = vst.msk [vmem:[#allocation2 + $0x240] sm:$0xff] %vm310, 0.0
          %384 = vst.msk [vmem:[#allocation2 + $0x248] sm:$0xff] %vm310, 0.0
          %385 = vst.msk [vmem:[#allocation2 + $0x250] sm:$0xff] %vm310, 0.0
          %386 = vst.msk [vmem:[#allocation2 + $0x258] sm:$0xff] %vm310, 0.0
          %387 = vst.msk [vmem:[#allocation2 + $0x260] sm:$0xff] %vm310, 0.0
          %388 = vst.msk [vmem:[#allocation2 + $0x268] sm:$0xff] %vm310, 0.0
          %389 = vst.msk [vmem:[#allocation2 + $0x270] sm:$0xff] %vm310, 0.0
          %390 = vst.msk [vmem:[#allocation2 + $0x278] sm:$0xff] %vm310, 0.0
          %391 = vst.msk [vmem:[#allocation2 + $0x280] sm:$0xff] %vm310, 0.0
          %392 = vst.msk [vmem:[#allocation2 + $0x288] sm:$0xff] %vm310, 0.0
          %393 = vst.msk [vmem:[#allocation2 + $0x290] sm:$0xff] %vm310, 0.0
          %394 = vst.msk [vmem:[#allocation2 + $0x298] sm:$0xff] %vm310, 0.0
          %395 = vst.msk [vmem:[#allocation2 + $0x2a0] sm:$0xff] %vm310, 0.0
          %396 = vst.msk [vmem:[#allocation2 + $0x2a8] sm:$0xff] %vm310, 0.0
          %397 = vst.msk [vmem:[#allocation2 + $0x2b0] sm:$0xff] %vm310, 0.0
          %398 = vst.msk [vmem:[#allocation2 + $0x2b8] sm:$0xff] %vm310, 0.0
          %399 = vst.msk [vmem:[#allocation2 + $0x2c0] sm:$0xff] %vm310, 0.0
          %400 = vst.msk [vmem:[#allocation2 + $0x2c8] sm:$0xff] %vm310, 0.0
          %401 = vst.msk [vmem:[#allocation2 + $0x2d0] sm:$0xff] %vm310, 0.0
          %402 = vst.msk [vmem:[#allocation2 + $0x2d8] sm:$0xff] %vm310, 0.0
          %403 = vst.msk [vmem:[#allocation2 + $0x2e0] sm:$0xff] %vm310, 0.0
          %404 = vst.msk [vmem:[#allocation2 + $0x2e8] sm:$0xff] %vm310, 0.0
          %405 = vst.msk [vmem:[#allocation2 + $0x2f0] sm:$0xff] %vm310, 0.0
          %406 = vst.msk [vmem:[#allocation2 + $0x2f8] sm:$0xff] %vm310, 0.0
          %407 = vst.msk [vmem:[#allocation2 + $0x300] sm:$0xff] %vm310, 0.0
          %408 = vst.msk [vmem:[#allocation2 + $0x308] sm:$0xff] %vm310, 0.0
          %409 = vst.msk [vmem:[#allocation2 + $0x310] sm:$0xff] %vm310, 0.0
          %410 = vst.msk [vmem:[#allocation2 + $0x318] sm:$0xff] %vm310, 0.0
          %411 = vst.msk [vmem:[#allocation2 + $0x320] sm:$0xff] %vm310, 0.0
          %412 = vst.msk [vmem:[#allocation2 + $0x328] sm:$0xff] %vm310, 0.0
          %413 = vst.msk [vmem:[#allocation2 + $0x330] sm:$0xff] %vm310, 0.0
          %414 = vst.msk [vmem:[#allocation2 + $0x338] sm:$0xff] %vm310, 0.0
          %415 = vst.msk [vmem:[#allocation2 + $0x340] sm:$0xff] %vm310, 0.0
          %416 = vst.msk [vmem:[#allocation2 + $0x348] sm:$0xff] %vm310, 0.0
          %417 = vst.msk [vmem:[#allocation2 + $0x350] sm:$0xff] %vm310, 0.0
          %418 = vst.msk [vmem:[#allocation2 + $0x358] sm:$0xff] %vm310, 0.0
          %419 = vst.msk [vmem:[#allocation2 + $0x360] sm:$0xff] %vm310, 0.0
          %420 = vst.msk [vmem:[#allocation2 + $0x368] sm:$0xff] %vm310, 0.0
          %421 = vst.msk [vmem:[#allocation2 + $0x370] sm:$0xff] %vm310, 0.0
          %422 = vst.msk [vmem:[#allocation2 + $0x378] sm:$0xff] %vm310, 0.0
          %423 = vst.msk [vmem:[#allocation2 + $0x380] sm:$0xff] %vm310, 0.0
          %424 = vst.msk [vmem:[#allocation2 + $0x388] sm:$0xff] %vm310, 0.0
          %425 = vst.msk [vmem:[#allocation2 + $0x390] sm:$0xff] %vm310, 0.0
          %426 = vst.msk [vmem:[#allocation2 + $0x398] sm:$0xff] %vm310, 0.0
          %427 = vst.msk [vmem:[#allocation2 + $0x3a0] sm:$0xff] %vm310, 0.0
          %428 = vst.msk [vmem:[#allocation2 + $0x3a8] sm:$0xff] %vm310, 0.0
          %429 = vst.msk [vmem:[#allocation2 + $0x3b0] sm:$0xff] %vm310, 0.0
          %430 = vst.msk [vmem:[#allocation2 + $0x3b8] sm:$0xff] %vm310, 0.0
          %431 = vst.msk [vmem:[#allocation2 + $0x3c0] sm:$0xff] %vm310, 0.0
          %432 = vst.msk [vmem:[#allocation2 + $0x3c8] sm:$0xff] %vm310, 0.0
          %433 = vst.msk [vmem:[#allocation2 + $0x3d0] sm:$0xff] %vm310, 0.0
          %434 = vst.msk [vmem:[#allocation2 + $0x3d8] sm:$0xff] %vm310, 0.0
          %435 = vst.msk [vmem:[#allocation2 + $0x3e0] sm:$0xff] %vm310, 0.0
          %436 = vst.msk [vmem:[#allocation2 + $0x3e8] sm:$0xff] %vm310, 0.0
          %437 = vst.msk [vmem:[#allocation2 + $0x3f0] sm:$0xff] %vm310, 0.0
          %438 = vst.msk [vmem:[#allocation2 + $0x3f8] sm:$0xff] %vm310, 0.0
        $region52: #{tpu_custom_call.1} parent=35 // pred_fallthru
          _
        %v439 = vld [vmem:[#allocation2] sm:$0xff]
        %v440 = vld [vmem:[#allocation2 + $0x8] sm:$0xff]
        %v441 = vld [vmem:[#allocation2 + $0x10] sm:$0xff]
        %v442 = vld [vmem:[#allocation2 + $0x18] sm:$0xff]
        %v443 = vld [vmem:[#allocation2 + $0x20] sm:$0xff]
        %v444 = vld [vmem:[#allocation2 + $0x28] sm:$0xff]
        %v445 = vld [vmem:[#allocation2 + $0x30] sm:$0xff]
        %v446 = vld [vmem:[#allocation2 + $0x38] sm:$0xff]
        %v447 = vld [vmem:[#allocation2 + $0x40] sm:$0xff]
        %v448 = vld [vmem:[#allocation2 + $0x48] sm:$0xff]
        %v449 = vld [vmem:[#allocation2 + $0x50] sm:$0xff]
        %v450 = vld [vmem:[#allocation2 + $0x58] sm:$0xff]
        %v451 = vld [vmem:[#allocation2 + $0x60] sm:$0xff]
        %v452 = vld [vmem:[#allocation2 + $0x68] sm:$0xff]
        %v453 = vld [vmem:[#allocation2 + $0x70] sm:$0xff]
        %v454 = vld [vmem:[#allocation2 + $0x78] sm:$0xff]
        %v455 = vld [vmem:[#allocation2 + $0x80] sm:$0xff]
        %v456 = vld [vmem:[#allocation2 + $0x88] sm:$0xff]
        %v457 = vld [vmem:[#allocation2 + $0x90] sm:$0xff]
        %v458 = vld [vmem:[#allocation2 + $0x98] sm:$0xff]
        %v459 = vld [vmem:[#allocation2 + $0xa0] sm:$0xff]
        %v460 = vld [vmem:[#allocation2 + $0xa8] sm:$0xff]
        %v461 = vld [vmem:[#allocation2 + $0xb0] sm:$0xff]
        %v462 = vld [vmem:[#allocation2 + $0xb8] sm:$0xff]
        %v463 = vld [vmem:[#allocation2 + $0xc0] sm:$0xff]
        %v464 = vld [vmem:[#allocation2 + $0xc8] sm:$0xff]
        %v465 = vld [vmem:[#allocation2 + $0xd0] sm:$0xff]
        %v466 = vld [vmem:[#allocation2 + $0xd8] sm:$0xff]
        %v467 = vld [vmem:[#allocation2 + $0xe0] sm:$0xff]
        %v468 = vld [vmem:[#allocation2 + $0xe8] sm:$0xff]
        %v469 = vld [vmem:[#allocation2 + $0xf0] sm:$0xff]
        %v470 = vld [vmem:[#allocation2 + $0xf8] sm:$0xff]
        %v471 = vld [vmem:[#allocation2 + $0x100] sm:$0xff]
        %v472 = vld [vmem:[#allocation2 + $0x108] sm:$0xff]
        %v473 = vld [vmem:[#allocation2 + $0x110] sm:$0xff]
        %v474 = vld [vmem:[#allocation2 + $0x118] sm:$0xff]
        %v475 = vld [vmem:[#allocation2 + $0x120] sm:$0xff]
        %v476 = vld [vmem:[#allocation2 + $0x128] sm:$0xff]
        %v477 = vld [vmem:[#allocation2 + $0x130] sm:$0xff]
        %v478 = vld [vmem:[#allocation2 + $0x138] sm:$0xff]
        %v479 = vld [vmem:[#allocation2 + $0x140] sm:$0xff]
        %v480 = vld [vmem:[#allocation2 + $0x148] sm:$0xff]
        %v481 = vld [vmem:[#allocation2 + $0x150] sm:$0xff]
        %v482 = vld [vmem:[#allocation2 + $0x158] sm:$0xff]
        %v483 = vld [vmem:[#allocation2 + $0x160] sm:$0xff]
        %v484 = vld [vmem:[#allocation2 + $0x168] sm:$0xff]
        %v485 = vld [vmem:[#allocation2 + $0x170] sm:$0xff]
        %v486 = vld [vmem:[#allocation2 + $0x178] sm:$0xff]
        %v487 = vld [vmem:[#allocation2 + $0x180] sm:$0xff]
        %v488 = vld [vmem:[#allocation2 + $0x188] sm:$0xff]
        %v489 = vld [vmem:[#allocation2 + $0x190] sm:$0xff]
        %v490 = vld [vmem:[#allocation2 + $0x198] sm:$0xff]
        %v491 = vld [vmem:[#allocation2 + $0x1a0] sm:$0xff]
        %v492 = vld [vmem:[#allocation2 + $0x1a8] sm:$0xff]
        %v493 = vld [vmem:[#allocation2 + $0x1b0] sm:$0xff]
        %v494 = vld [vmem:[#allocation2 + $0x1b8] sm:$0xff]
        %v495 = vld [vmem:[#allocation2 + $0x1c0] sm:$0xff]
        %v496 = vld [vmem:[#allocation2 + $0x1c8] sm:$0xff]
        %v497 = vld [vmem:[#allocation2 + $0x1d0] sm:$0xff]
        %v498 = vld [vmem:[#allocation2 + $0x1d8] sm:$0xff]
        %v499 = vld [vmem:[#allocation2 + $0x1e0] sm:$0xff]
        %v500 = vld [vmem:[#allocation2 + $0x1e8] sm:$0xff]
        %v501 = vld [vmem:[#allocation2 + $0x1f0] sm:$0xff]
        %v502 = vld [vmem:[#allocation2 + $0x1f8] sm:$0xff]
        %v503 = vld [vmem:[#allocation2 + $0x200] sm:$0xff]
        %v504 = vld [vmem:[#allocation2 + $0x208] sm:$0xff]
        %v505 = vld [vmem:[#allocation2 + $0x210] sm:$0xff]
        %v506 = vld [vmem:[#allocation2 + $0x218] sm:$0xff]
        %v507 = vld [vmem:[#allocation2 + $0x220] sm:$0xff]
        %v508 = vld [vmem:[#allocation2 + $0x228] sm:$0xff]
        %v509 = vld [vmem:[#allocation2 + $0x230] sm:$0xff]
        %v510 = vld [vmem:[#allocation2 + $0x238] sm:$0xff]
        %v511 = vld [vmem:[#allocation2 + $0x240] sm:$0xff]
        %v512 = vld [vmem:[#allocation2 + $0x248] sm:$0xff]
        %v513 = vld [vmem:[#allocation2 + $0x250] sm:$0xff]
        %v514 = vld [vmem:[#allocation2 + $0x258] sm:$0xff]
        %v515 = vld [vmem:[#allocation2 + $0x260] sm:$0xff]
        %v516 = vld [vmem:[#allocation2 + $0x268] sm:$0xff]
        %v517 = vld [vmem:[#allocation2 + $0x270] sm:$0xff]
        %v518 = vld [vmem:[#allocation2 + $0x278] sm:$0xff]
        %v519 = vld [vmem:[#allocation2 + $0x280] sm:$0xff]
        %v520 = vld [vmem:[#allocation2 + $0x288] sm:$0xff]
        %v521 = vld [vmem:[#allocation2 + $0x290] sm:$0xff]
        %v522 = vld [vmem:[#allocation2 + $0x298] sm:$0xff]
        %v523 = vld [vmem:[#allocation2 + $0x2a0] sm:$0xff]
        %v524 = vld [vmem:[#allocation2 + $0x2a8] sm:$0xff]
        %v525 = vld [vmem:[#allocation2 + $0x2b0] sm:$0xff]
        %v526 = vld [vmem:[#allocation2 + $0x2b8] sm:$0xff]
        %v527 = vld [vmem:[#allocation2 + $0x2c0] sm:$0xff]
        %v528 = vld [vmem:[#allocation2 + $0x2c8] sm:$0xff]
        %v529 = vld [vmem:[#allocation2 + $0x2d0] sm:$0xff]
        %v530 = vld [vmem:[#allocation2 + $0x2d8] sm:$0xff]
        %v531 = vld [vmem:[#allocation2 + $0x2e0] sm:$0xff]
        %v532 = vld [vmem:[#allocation2 + $0x2e8] sm:$0xff]
        %v533 = vld [vmem:[#allocation2 + $0x2f0] sm:$0xff]
        %v534 = vld [vmem:[#allocation2 + $0x2f8] sm:$0xff]
        %v535 = vld [vmem:[#allocation2 + $0x300] sm:$0xff]
        %v536 = vld [vmem:[#allocation2 + $0x308] sm:$0xff]
        %v537 = vld [vmem:[#allocation2 + $0x310] sm:$0xff]
        %v538 = vld [vmem:[#allocation2 + $0x318] sm:$0xff]
        %v539 = vld [vmem:[#allocation2 + $0x320] sm:$0xff]
        %v540 = vld [vmem:[#allocation2 + $0x328] sm:$0xff]
        %v541 = vld [vmem:[#allocation2 + $0x330] sm:$0xff]
        %v542 = vld [vmem:[#allocation2 + $0x338] sm:$0xff]
        %v543 = vld [vmem:[#allocation2 + $0x340] sm:$0xff]
        %v544 = vld [vmem:[#allocation2 + $0x348] sm:$0xff]
        %v545 = vld [vmem:[#allocation2 + $0x350] sm:$0xff]
        %v546 = vld [vmem:[#allocation2 + $0x358] sm:$0xff]
        %v547 = vld [vmem:[#allocation2 + $0x360] sm:$0xff]
        %v548 = vld [vmem:[#allocation2 + $0x368] sm:$0xff]
        %v549 = vld [vmem:[#allocation2 + $0x370] sm:$0xff]
        %v550 = vld [vmem:[#allocation2 + $0x378] sm:$0xff]
        %v551 = vld [vmem:[#allocation2 + $0x380] sm:$0xff]
        %v552 = vld [vmem:[#allocation2 + $0x388] sm:$0xff]
        %v553 = vld [vmem:[#allocation2 + $0x390] sm:$0xff]
        %v554 = vld [vmem:[#allocation2 + $0x398] sm:$0xff]
        %v555 = vld [vmem:[#allocation2 + $0x3a0] sm:$0xff]
        %v556 = vld [vmem:[#allocation2 + $0x3a8] sm:$0xff]
        %v557 = vld [vmem:[#allocation2 + $0x3b0] sm:$0xff]
        %v558 = vld [vmem:[#allocation2 + $0x3b8] sm:$0xff]
        %v559 = vld [vmem:[#allocation2 + $0x3c0] sm:$0xff]
        %v560 = vld [vmem:[#allocation2 + $0x3c8] sm:$0xff]
        %v561 = vld [vmem:[#allocation2 + $0x3d0] sm:$0xff]
        %v562 = vld [vmem:[#allocation2 + $0x3d8] sm:$0xff]
        %v563 = vld [vmem:[#allocation2 + $0x3e0] sm:$0xff]
        %v564 = vld [vmem:[#allocation2 + $0x3e8] sm:$0xff]
        %v565 = vld [vmem:[#allocation2 + $0x3f0] sm:$0xff]
        %v566 = vld [vmem:[#allocation2 + $0x3f8] sm:$0xff]
        %v567 = vld [vmem:[%s300] sm:$0xff]
        %v568 = vld [vmem:[%s300 + $0x8] sm:$0xff]
        %v569 = vld [vmem:[%s300 + $0x10] sm:$0xff]
        %v570 = vld [vmem:[%s300 + $0x18] sm:$0xff]
        %v571 = vld [vmem:[%s300 + $0x20] sm:$0xff]
        %v572 = vld [vmem:[%s300 + $0x28] sm:$0xff]
        %v573 = vld [vmem:[%s300 + $0x30] sm:$0xff]
        %v574 = vld [vmem:[%s300 + $0x38] sm:$0xff]
        %v575 = vld [vmem:[%s300 + $0x40] sm:$0xff]
        %v576 = vld [vmem:[%s300 + $0x48] sm:$0xff]
        %v577 = vld [vmem:[%s300 + $0x50] sm:$0xff]
        %v578 = vld [vmem:[%s300 + $0x58] sm:$0xff]
        %v579 = vld [vmem:[%s300 + $0x60] sm:$0xff]
        %v580 = vld [vmem:[%s300 + $0x68] sm:$0xff]
        %v581 = vld [vmem:[%s300 + $0x70] sm:$0xff]
        %v582 = vld [vmem:[%s300 + $0x78] sm:$0xff]
        %v583 = vld [vmem:[%s300 + $0x80] sm:$0xff]
        %v584 = vld [vmem:[%s300 + $0x88] sm:$0xff]
        %v585 = vld [vmem:[%s300 + $0x90] sm:$0xff]
        %v586 = vld [vmem:[%s300 + $0x98] sm:$0xff]
        %v587 = vld [vmem:[%s300 + $0xa0] sm:$0xff]
        %v588 = vld [vmem:[%s300 + $0xa8] sm:$0xff]
        %v589 = vld [vmem:[%s300 + $0xb0] sm:$0xff]
        %v590 = vld [vmem:[%s300 + $0xb8] sm:$0xff]
        %v591 = vld [vmem:[%s300 + $0xc0] sm:$0xff]
        %v592 = vld [vmem:[%s300 + $0xc8] sm:$0xff]
        %v593 = vld [vmem:[%s300 + $0xd0] sm:$0xff]
        %v594 = vld [vmem:[%s300 + $0xd8] sm:$0xff]
        %v595 = vld [vmem:[%s300 + $0xe0] sm:$0xff]
        %v596 = vld [vmem:[%s300 + $0xe8] sm:$0xff]
        %v597 = vld [vmem:[%s300 + $0xf0] sm:$0xff]
        %v598 = vld [vmem:[%s300 + $0xf8] sm:$0xff]
        %v599 = vld [vmem:[%s300 + $0x100] sm:$0xff]
        %v600 = vld [vmem:[%s300 + $0x108] sm:$0xff]
        %v601 = vld [vmem:[%s300 + $0x110] sm:$0xff]
        %v602 = vld [vmem:[%s300 + $0x118] sm:$0xff]
        %v603 = vld [vmem:[%s300 + $0x120] sm:$0xff]
        %v604 = vld [vmem:[%s300 + $0x128] sm:$0xff]
        %v605 = vld [vmem:[%s300 + $0x130] sm:$0xff]
        %v606 = vld [vmem:[%s300 + $0x138] sm:$0xff]
        %v607 = vld [vmem:[%s300 + $0x140] sm:$0xff]
        %v608 = vld [vmem:[%s300 + $0x148] sm:$0xff]
        %v609 = vld [vmem:[%s300 + $0x150] sm:$0xff]
        %v610 = vld [vmem:[%s300 + $0x158] sm:$0xff]
        %v611 = vld [vmem:[%s300 + $0x160] sm:$0xff]
        %v612 = vld [vmem:[%s300 + $0x168] sm:$0xff]
        %v613 = vld [vmem:[%s300 + $0x170] sm:$0xff]
        %v614 = vld [vmem:[%s300 + $0x178] sm:$0xff]
        %v615 = vld [vmem:[%s300 + $0x180] sm:$0xff]
        %v616 = vld [vmem:[%s300 + $0x188] sm:$0xff]
        %v617 = vld [vmem:[%s300 + $0x190] sm:$0xff]
        %v618 = vld [vmem:[%s300 + $0x198] sm:$0xff]
        %v619 = vld [vmem:[%s300 + $0x1a0] sm:$0xff]
        %v620 = vld [vmem:[%s300 + $0x1a8] sm:$0xff]
        %v621 = vld [vmem:[%s300 + $0x1b0] sm:$0xff]
        %v622 = vld [vmem:[%s300 + $0x1b8] sm:$0xff]
        %v623 = vld [vmem:[%s300 + $0x1c0] sm:$0xff]
        %v624 = vld [vmem:[%s300 + $0x1c8] sm:$0xff]
        %v625 = vld [vmem:[%s300 + $0x1d0] sm:$0xff]
        %v626 = vld [vmem:[%s300 + $0x1d8] sm:$0xff]
        %v627 = vld [vmem:[%s300 + $0x1e0] sm:$0xff]
        %v628 = vld [vmem:[%s300 + $0x1e8] sm:$0xff]
        %v629 = vld [vmem:[%s300 + $0x1f0] sm:$0xff]
        %v630 = vld [vmem:[%s300 + $0x1f8] sm:$0xff]
        %v631 = vld [vmem:[%s300 + $0x200] sm:$0xff]
        %v632 = vld [vmem:[%s300 + $0x208] sm:$0xff]
        %v633 = vld [vmem:[%s300 + $0x210] sm:$0xff]
        %v634 = vld [vmem:[%s300 + $0x218] sm:$0xff]
        %v635 = vld [vmem:[%s300 + $0x220] sm:$0xff]
        %v636 = vld [vmem:[%s300 + $0x228] sm:$0xff]
        %v637 = vld [vmem:[%s300 + $0x230] sm:$0xff]
        %v638 = vld [vmem:[%s300 + $0x238] sm:$0xff]
        %v639 = vld [vmem:[%s300 + $0x240] sm:$0xff]
        %v640 = vld [vmem:[%s300 + $0x248] sm:$0xff]
        %v641 = vld [vmem:[%s300 + $0x250] sm:$0xff]
        %v642 = vld [vmem:[%s300 + $0x258] sm:$0xff]
        %v643 = vld [vmem:[%s300 + $0x260] sm:$0xff]
        %v644 = vld [vmem:[%s300 + $0x268] sm:$0xff]
        %v645 = vld [vmem:[%s300 + $0x270] sm:$0xff]
        %v646 = vld [vmem:[%s300 + $0x278] sm:$0xff]
        %v647 = vld [vmem:[%s300 + $0x280] sm:$0xff]
        %v648 = vld [vmem:[%s300 + $0x288] sm:$0xff]
        %v649 = vld [vmem:[%s300 + $0x290] sm:$0xff]
        %v650 = vld [vmem:[%s300 + $0x298] sm:$0xff]
        %v651 = vld [vmem:[%s300 + $0x2a0] sm:$0xff]
        %v652 = vld [vmem:[%s300 + $0x2a8] sm:$0xff]
        %v653 = vld [vmem:[%s300 + $0x2b0] sm:$0xff]
        %v654 = vld [vmem:[%s300 + $0x2b8] sm:$0xff]
        %v655 = vld [vmem:[%s300 + $0x2c0] sm:$0xff]
        %v656 = vld [vmem:[%s300 + $0x2c8] sm:$0xff]
        %v657 = vld [vmem:[%s300 + $0x2d0] sm:$0xff]
        %v658 = vld [vmem:[%s300 + $0x2d8] sm:$0xff]
        %v659 = vld [vmem:[%s300 + $0x2e0] sm:$0xff]
        %v660 = vld [vmem:[%s300 + $0x2e8] sm:$0xff]
        %v661 = vld [vmem:[%s300 + $0x2f0] sm:$0xff]
        %v662 = vld [vmem:[%s300 + $0x2f8] sm:$0xff]
        %v663 = vld [vmem:[%s300 + $0x300] sm:$0xff]
        %v664 = vld [vmem:[%s300 + $0x308] sm:$0xff]
        %v665 = vld [vmem:[%s300 + $0x310] sm:$0xff]
        %v666 = vld [vmem:[%s300 + $0x318] sm:$0xff]
        %v667 = vld [vmem:[%s300 + $0x320] sm:$0xff]
        %v668 = vld [vmem:[%s300 + $0x328] sm:$0xff]
        %v669 = vld [vmem:[%s300 + $0x330] sm:$0xff]
        %v670 = vld [vmem:[%s300 + $0x338] sm:$0xff]
        %v671 = vld [vmem:[%s300 + $0x340] sm:$0xff]
        %v672 = vld [vmem:[%s300 + $0x348] sm:$0xff]
        %v673 = vld [vmem:[%s300 + $0x350] sm:$0xff]
        %v674 = vld [vmem:[%s300 + $0x358] sm:$0xff]
        %v675 = vld [vmem:[%s300 + $0x360] sm:$0xff]
        %v676 = vld [vmem:[%s300 + $0x368] sm:$0xff]
        %v677 = vld [vmem:[%s300 + $0x370] sm:$0xff]
        %v678 = vld [vmem:[%s300 + $0x378] sm:$0xff]
        %v679 = vld [vmem:[%s300 + $0x380] sm:$0xff]
        %v680 = vld [vmem:[%s300 + $0x388] sm:$0xff]
        %v681 = vld [vmem:[%s300 + $0x390] sm:$0xff]
        %v682 = vld [vmem:[%s300 + $0x398] sm:$0xff]
        %v683 = vld [vmem:[%s300 + $0x3a0] sm:$0xff]
        %v684 = vld [vmem:[%s300 + $0x3a8] sm:$0xff]
        %v685 = vld [vmem:[%s300 + $0x3b0] sm:$0xff]
        %v686 = vld [vmem:[%s300 + $0x3b8] sm:$0xff]
        %v687 = vld [vmem:[%s300 + $0x3c0] sm:$0xff]
        %v688 = vld [vmem:[%s300 + $0x3c8] sm:$0xff]
        %v689 = vld [vmem:[%s300 + $0x3d0] sm:$0xff]
        %v690 = vld [vmem:[%s300 + $0x3d8] sm:$0xff]
        %v691 = vld [vmem:[%s300 + $0x3e0] sm:$0xff]
        %v692 = vld [vmem:[%s300 + $0x3e8] sm:$0xff]
        %v693 = vld [vmem:[%s300 + $0x3f0] sm:$0xff]
        %v694 = vld [vmem:[%s300 + $0x3f8] sm:$0xff]
        %v695 = vld [vmem:[#allocation3] sm:$0xf]
        %v696 = vld [vmem:[#allocation3 + $0x4] sm:$0xf]
        %v697 = vld [vmem:[#allocation3 + $0x8] sm:$0xf]
        %v698 = vld [vmem:[#allocation3 + $0xc] sm:$0xf]
        %v699 = vld [vmem:[#allocation3 + $0x10] sm:$0xf]
        %v700 = vld [vmem:[#allocation3 + $0x14] sm:$0xf]
        %v701 = vld [vmem:[#allocation3 + $0x18] sm:$0xf]
        %v702 = vld [vmem:[#allocation3 + $0x1c] sm:$0xf]
        %v703 = vld [vmem:[#allocation3 + $0x20] sm:$0xf]
        %v704 = vld [vmem:[#allocation3 + $0x24] sm:$0xf]
        %v705 = vld [vmem:[#allocation3 + $0x28] sm:$0xf]
        %v706 = vld [vmem:[#allocation3 + $0x2c] sm:$0xf]
        %v707 = vld [vmem:[#allocation3 + $0x30] sm:$0xf]
        %v708 = vld [vmem:[#allocation3 + $0x34] sm:$0xf]
        %v709 = vld [vmem:[#allocation3 + $0x38] sm:$0xf]
        %v710 = vld [vmem:[#allocation3 + $0x3c] sm:$0xf]
        %v711 = vld [vmem:[#allocation3 + $0x40] sm:$0xf]
        %v712 = vld [vmem:[#allocation3 + $0x44] sm:$0xf]
        %v713 = vld [vmem:[#allocation3 + $0x48] sm:$0x3]
        %v842 = vunpack.c.l.b16 %v567
        %v843 = vunpack.c.h.b16 %v567
        %v844 = vunpack.c.l.b16 %v568
        %v845 = vunpack.c.h.b16 %v568
        %v846 = vunpack.c.l.b16 %v569
        %v847 = vunpack.c.h.b16 %v569
        %v848 = vunpack.c.l.b16 %v570
        %v849 = vunpack.c.h.b16 %v570
        %v850 = vunpack.c.l.b16 %v571
        %v851 = vunpack.c.h.b16 %v571
        %v852 = vunpack.c.l.b16 %v572
        %v853 = vunpack.c.h.b16 %v572
        %v854 = vunpack.c.l.b16 %v573
        %v855 = vunpack.c.h.b16 %v573
        %v856 = vunpack.c.l.b16 %v574
        %v857 = vunpack.c.h.b16 %v574
        %v858 = vunpack.c.l.b16 %v575
        %v859 = vunpack.c.h.b16 %v575
        %v860 = vunpack.c.l.b16 %v576
        %v861 = vunpack.c.h.b16 %v576
        %v862 = vunpack.c.l.b16 %v577
        %v863 = vunpack.c.h.b16 %v577
        %v864 = vunpack.c.l.b16 %v578
        %v865 = vunpack.c.h.b16 %v578
        %v866 = vunpack.c.l.b16 %v579
        %v867 = vunpack.c.h.b16 %v579
        %v868 = vunpack.c.l.b16 %v580
        %v869 = vunpack.c.h.b16 %v580
        %v870 = vunpack.c.l.b16 %v581
        %v871 = vunpack.c.h.b16 %v581
        %v872 = vunpack.c.l.b16 %v582
        %v873 = vunpack.c.h.b16 %v582
        %v874 = vunpack.c.l.b16 %v583
        %v875 = vunpack.c.h.b16 %v583
        %v876 = vunpack.c.l.b16 %v584
        %v877 = vunpack.c.h.b16 %v584
        %v878 = vunpack.c.l.b16 %v585
        %v879 = vunpack.c.h.b16 %v585
        %v880 = vunpack.c.l.b16 %v586
        %v881 = vunpack.c.h.b16 %v586
        %v882 = vunpack.c.l.b16 %v587
        %v883 = vunpack.c.h.b16 %v587
        %v884 = vunpack.c.l.b16 %v588
        %v885 = vunpack.c.h.b16 %v588
        %v886 = vunpack.c.l.b16 %v589
        %v887 = vunpack.c.h.b16 %v589
        %v888 = vunpack.c.l.b16 %v590
        %v889 = vunpack.c.h.b16 %v590
        %v890 = vunpack.c.l.b16 %v591
        %v891 = vunpack.c.h.b16 %v591
        %v892 = vunpack.c.l.b16 %v592
        %v893 = vunpack.c.h.b16 %v592
        %v894 = vunpack.c.l.b16 %v593
        %v895 = vunpack.c.h.b16 %v593
        %v896 = vunpack.c.l.b16 %v594
        %v897 = vunpack.c.h.b16 %v594
        %v898 = vunpack.c.l.b16 %v595
        %v899 = vunpack.c.h.b16 %v595
        %v900 = vunpack.c.l.b16 %v596
        %v901 = vunpack.c.h.b16 %v596
        %v902 = vunpack.c.l.b16 %v597
        %v903 = vunpack.c.h.b16 %v597
        %v904 = vunpack.c.l.b16 %v598
        %v905 = vunpack.c.h.b16 %v598
        %v906 = vunpack.c.l.b16 %v599
        %v907 = vunpack.c.h.b16 %v599
        %v908 = vunpack.c.l.b16 %v600
        %v909 = vunpack.c.h.b16 %v600
        %v910 = vunpack.c.l.b16 %v601
        %v911 = vunpack.c.h.b16 %v601
        %v912 = vunpack.c.l.b16 %v602
        %v913 = vunpack.c.h.b16 %v602
        %v914 = vunpack.c.l.b16 %v603
        %v915 = vunpack.c.h.b16 %v603
        %v916 = vunpack.c.l.b16 %v604
        %v917 = vunpack.c.h.b16 %v604
        %v918 = vunpack.c.l.b16 %v605
        %v919 = vunpack.c.h.b16 %v605
        %v920 = vunpack.c.l.b16 %v606
        %v921 = vunpack.c.h.b16 %v606
        %v922 = vunpack.c.l.b16 %v607
        %v923 = vunpack.c.h.b16 %v607
        %v924 = vunpack.c.l.b16 %v608
        %v925 = vunpack.c.h.b16 %v608
        %v926 = vunpack.c.l.b16 %v609
        %v927 = vunpack.c.h.b16 %v609
        %v928 = vunpack.c.l.b16 %v610
        %v929 = vunpack.c.h.b16 %v610
        %v930 = vunpack.c.l.b16 %v611
        %v931 = vunpack.c.h.b16 %v611
        %v932 = vunpack.c.l.b16 %v612
        %v933 = vunpack.c.h.b16 %v612
        %v934 = vunpack.c.l.b16 %v613
        %v935 = vunpack.c.h.b16 %v613
        %v936 = vunpack.c.l.b16 %v614
        %v937 = vunpack.c.h.b16 %v614
        %v938 = vunpack.c.l.b16 %v615
        %v939 = vunpack.c.h.b16 %v615
        %v940 = vunpack.c.l.b16 %v616
        %v941 = vunpack.c.h.b16 %v616
        %v942 = vunpack.c.l.b16 %v617
        %v943 = vunpack.c.h.b16 %v617
        %v944 = vunpack.c.l.b16 %v618
        %v945 = vunpack.c.h.b16 %v618
        %v946 = vunpack.c.l.b16 %v619
        %v947 = vunpack.c.h.b16 %v619
        %v948 = vunpack.c.l.b16 %v620
        %v949 = vunpack.c.h.b16 %v620
        %v950 = vunpack.c.l.b16 %v621
        %v951 = vunpack.c.h.b16 %v621
        %v952 = vunpack.c.l.b16 %v622
        %v953 = vunpack.c.h.b16 %v622
        %v954 = vunpack.c.l.b16 %v623
        %v955 = vunpack.c.h.b16 %v623
        %v956 = vunpack.c.l.b16 %v624
        %v957 = vunpack.c.h.b16 %v624
        %v958 = vunpack.c.l.b16 %v625
        %v959 = vunpack.c.h.b16 %v625
        %v960 = vunpack.c.l.b16 %v626
        %v961 = vunpack.c.h.b16 %v626
        %v962 = vunpack.c.l.b16 %v627
        %v963 = vunpack.c.h.b16 %v627
        %v964 = vunpack.c.l.b16 %v628
        %v965 = vunpack.c.h.b16 %v628
        %v966 = vunpack.c.l.b16 %v629
        %v967 = vunpack.c.h.b16 %v629
        %v968 = vunpack.c.l.b16 %v630
        %v969 = vunpack.c.h.b16 %v630
        %v970 = vunpack.c.l.b16 %v631
        %v971 = vunpack.c.h.b16 %v631
        %v972 = vunpack.c.l.b16 %v632
        %v973 = vunpack.c.h.b16 %v632
        %v974 = vunpack.c.l.b16 %v633
        %v975 = vunpack.c.h.b16 %v633
        %v976 = vunpack.c.l.b16 %v634
        %v977 = vunpack.c.h.b16 %v634
        %v978 = vunpack.c.l.b16 %v635
        %v979 = vunpack.c.h.b16 %v635
        %v980 = vunpack.c.l.b16 %v636
        %v981 = vunpack.c.h.b16 %v636
        %v982 = vunpack.c.l.b16 %v637
        %v983 = vunpack.c.h.b16 %v637
        %v984 = vunpack.c.l.b16 %v638
        %v985 = vunpack.c.h.b16 %v638
        %v986 = vunpack.c.l.b16 %v639
        %v987 = vunpack.c.h.b16 %v639
        %v988 = vunpack.c.l.b16 %v640
        %v989 = vunpack.c.h.b16 %v640
        %v990 = vunpack.c.l.b16 %v641
        %v991 = vunpack.c.h.b16 %v641
        %v992 = vunpack.c.l.b16 %v642
        %v993 = vunpack.c.h.b16 %v642
        %v994 = vunpack.c.l.b16 %v643
        %v995 = vunpack.c.h.b16 %v643
        %v996 = vunpack.c.l.b16 %v644
        %v997 = vunpack.c.h.b16 %v644
        %v998 = vunpack.c.l.b16 %v645
        %v999 = vunpack.c.h.b16 %v645
        %v1000 = vunpack.c.l.b16 %v646
        %v1001 = vunpack.c.h.b16 %v646
        %v1002 = vunpack.c.l.b16 %v647
        %v1003 = vunpack.c.h.b16 %v647
        %v1004 = vunpack.c.l.b16 %v648
        %v1005 = vunpack.c.h.b16 %v648
        %v1006 = vunpack.c.l.b16 %v649
        %v1007 = vunpack.c.h.b16 %v649
        %v1008 = vunpack.c.l.b16 %v650
        %v1009 = vunpack.c.h.b16 %v650
        %v1010 = vunpack.c.l.b16 %v651
        %v1011 = vunpack.c.h.b16 %v651
        %v1012 = vunpack.c.l.b16 %v652
        %v1013 = vunpack.c.h.b16 %v652
        %v1014 = vunpack.c.l.b16 %v653
        %v1015 = vunpack.c.h.b16 %v653
        %v1016 = vunpack.c.l.b16 %v654
        %v1017 = vunpack.c.h.b16 %v654
        %v1018 = vunpack.c.l.b16 %v655
        %v1019 = vunpack.c.h.b16 %v655
        %v1020 = vunpack.c.l.b16 %v656
        %v1021 = vunpack.c.h.b16 %v656
        %v1022 = vunpack.c.l.b16 %v657
        %v1023 = vunpack.c.h.b16 %v657
        %v1024 = vunpack.c.l.b16 %v658
        %v1025 = vunpack.c.h.b16 %v658
        %v1026 = vunpack.c.l.b16 %v659
        %v1027 = vunpack.c.h.b16 %v659
        %v1028 = vunpack.c.l.b16 %v660
        %v1029 = vunpack.c.h.b16 %v660
        %v1030 = vunpack.c.l.b16 %v661
        %v1031 = vunpack.c.h.b16 %v661
        %v1032 = vunpack.c.l.b16 %v662
        %v1033 = vunpack.c.h.b16 %v662
        %v1034 = vunpack.c.l.b16 %v663
        %v1035 = vunpack.c.h.b16 %v663
        %v1036 = vunpack.c.l.b16 %v664
        %v1037 = vunpack.c.h.b16 %v664
        %v1038 = vunpack.c.l.b16 %v665
        %v1039 = vunpack.c.h.b16 %v665
        %v1040 = vunpack.c.l.b16 %v666
        %v1041 = vunpack.c.h.b16 %v666
        %v1042 = vunpack.c.l.b16 %v667
        %v1043 = vunpack.c.h.b16 %v667
        %v1044 = vunpack.c.l.b16 %v668
        %v1045 = vunpack.c.h.b16 %v668
        %v1046 = vunpack.c.l.b16 %v669
        %v1047 = vunpack.c.h.b16 %v669
        %v1048 = vunpack.c.l.b16 %v670
        %v1049 = vunpack.c.h.b16 %v670
        %v1050 = vunpack.c.l.b16 %v671
        %v1051 = vunpack.c.h.b16 %v671
        %v1052 = vunpack.c.l.b16 %v672
        %v1053 = vunpack.c.h.b16 %v672
        %v1054 = vunpack.c.l.b16 %v673
        %v1055 = vunpack.c.h.b16 %v673
        %v1056 = vunpack.c.l.b16 %v674
        %v1057 = vunpack.c.h.b16 %v674
        %v1058 = vunpack.c.l.b16 %v675
        %v1059 = vunpack.c.h.b16 %v675
        %v1060 = vunpack.c.l.b16 %v676
        %v1061 = vunpack.c.h.b16 %v676
        %v1062 = vunpack.c.l.b16 %v677
        %v1063 = vunpack.c.h.b16 %v677
        %v1064 = vunpack.c.l.b16 %v678
        %v1065 = vunpack.c.h.b16 %v678
        %v1066 = vunpack.c.l.b16 %v679
        %v1067 = vunpack.c.h.b16 %v679
        %v1068 = vunpack.c.l.b16 %v680
        %v1069 = vunpack.c.h.b16 %v680
        %v1070 = vunpack.c.l.b16 %v681
        %v1071 = vunpack.c.h.b16 %v681
        %v1072 = vunpack.c.l.b16 %v682
        %v1073 = vunpack.c.h.b16 %v682
        %v1074 = vunpack.c.l.b16 %v683
        %v1075 = vunpack.c.h.b16 %v683
        %v1076 = vunpack.c.l.b16 %v684
        %v1077 = vunpack.c.h.b16 %v684
        %v1078 = vunpack.c.l.b16 %v685
        %v1079 = vunpack.c.h.b16 %v685
        %v1080 = vunpack.c.l.b16 %v686
        %v1081 = vunpack.c.h.b16 %v686
        %v1082 = vunpack.c.l.b16 %v687
        %v1083 = vunpack.c.h.b16 %v687
        %v1084 = vunpack.c.l.b16 %v688
        %v1085 = vunpack.c.h.b16 %v688
        %v1086 = vunpack.c.l.b16 %v689
        %v1087 = vunpack.c.h.b16 %v689
        %v1088 = vunpack.c.l.b16 %v690
        %v1089 = vunpack.c.h.b16 %v690
        %v1090 = vunpack.c.l.b16 %v691
        %v1091 = vunpack.c.h.b16 %v691
        %v1092 = vunpack.c.l.b16 %v692
        %v1093 = vunpack.c.h.b16 %v692
        %v1094 = vunpack.c.l.b16 %v693
        %v1095 = vunpack.c.h.b16 %v693
        %v1096 = vunpack.c.l.b16 %v694
        %v1097 = vunpack.c.h.b16 %v694
        %v1098 = vpack.c.b16 %v844, %v842
        %v1099 = vpack.c.b16 %v845, %v843
        %v1100 = vpack.c.b16 %v848, %v846
        %v1101 = vpack.c.b16 %v849, %v847
        %v1102 = vpack.c.b16 %v852, %v850
        %v1103 = vpack.c.b16 %v853, %v851
        %v1104 = vpack.c.b16 %v856, %v854
        %v1105 = vpack.c.b16 %v857, %v855
        %v1106 = vpack.c.b16 %v860, %v858
        %v1107 = vpack.c.b16 %v861, %v859
        %v1108 = vpack.c.b16 %v864, %v862
        %v1109 = vpack.c.b16 %v865, %v863
        %v1110 = vpack.c.b16 %v868, %v866
        %v1111 = vpack.c.b16 %v869, %v867
        %v1112 = vpack.c.b16 %v872, %v870
        %v1113 = vpack.c.b16 %v873, %v871
        %v1114 = vpack.c.b16 %v876, %v874
        %v1115 = vpack.c.b16 %v877, %v875
        %v1116 = vpack.c.b16 %v880, %v878
        %v1117 = vpack.c.b16 %v881, %v879
        %v1118 = vpack.c.b16 %v884, %v882
        %v1119 = vpack.c.b16 %v885, %v883
        %v1120 = vpack.c.b16 %v888, %v886
        %v1121 = vpack.c.b16 %v889, %v887
        %v1122 = vpack.c.b16 %v892, %v890
        %v1123 = vpack.c.b16 %v893, %v891
        %v1124 = vpack.c.b16 %v896, %v894
        %v1125 = vpack.c.b16 %v897, %v895
        %v1126 = vpack.c.b16 %v900, %v898
        %v1127 = vpack.c.b16 %v901, %v899
        %v1128 = vpack.c.b16 %v904, %v902
        %v1129 = vpack.c.b16 %v905, %v903
        %v1130 = vpack.c.b16 %v908, %v906
        %v1131 = vpack.c.b16 %v909, %v907
        %v1132 = vpack.c.b16 %v912, %v910
        %v1133 = vpack.c.b16 %v913, %v911
        %v1134 = vpack.c.b16 %v916, %v914
        %v1135 = vpack.c.b16 %v917, %v915
        %v1136 = vpack.c.b16 %v920, %v918
        %v1137 = vpack.c.b16 %v921, %v919
        %v1138 = vpack.c.b16 %v924, %v922
        %v1139 = vpack.c.b16 %v925, %v923
        %v1140 = vpack.c.b16 %v928, %v926
        %v1141 = vpack.c.b16 %v929, %v927
        %v1142 = vpack.c.b16 %v932, %v930
        %v1143 = vpack.c.b16 %v933, %v931
        %v1144 = vpack.c.b16 %v936, %v934
        %v1145 = vpack.c.b16 %v937, %v935
        %v1146 = vpack.c.b16 %v940, %v938
        %v1147 = vpack.c.b16 %v941, %v939
        %v1148 = vpack.c.b16 %v944, %v942
        %v1149 = vpack.c.b16 %v945, %v943
        %v1150 = vpack.c.b16 %v948, %v946
        %v1151 = vpack.c.b16 %v949, %v947
        %v1152 = vpack.c.b16 %v952, %v950
        %v1153 = vpack.c.b16 %v953, %v951
        %v1154 = vpack.c.b16 %v956, %v954
        %v1155 = vpack.c.b16 %v957, %v955
        %v1156 = vpack.c.b16 %v960, %v958
        %v1157 = vpack.c.b16 %v961, %v959
        %v1158 = vpack.c.b16 %v964, %v962
        %v1159 = vpack.c.b16 %v965, %v963
        %v1160 = vpack.c.b16 %v968, %v966
        %v1161 = vpack.c.b16 %v969, %v967
        %v1162 = vpack.c.b16 %v972, %v970
        %v1163 = vpack.c.b16 %v973, %v971
        %v1164 = vpack.c.b16 %v976, %v974
        %v1165 = vpack.c.b16 %v977, %v975
        %v1166 = vpack.c.b16 %v980, %v978
        %v1167 = vpack.c.b16 %v981, %v979
        %v1168 = vpack.c.b16 %v984, %v982
        %v1169 = vpack.c.b16 %v985, %v983
        %v1170 = vpack.c.b16 %v988, %v986
        %v1171 = vpack.c.b16 %v989, %v987
        %v1172 = vpack.c.b16 %v992, %v990
        %v1173 = vpack.c.b16 %v993, %v991
        %v1174 = vpack.c.b16 %v996, %v994
        %v1175 = vpack.c.b16 %v997, %v995
        %v1176 = vpack.c.b16 %v1000, %v998
        %v1177 = vpack.c.b16 %v1001, %v999
        %v1178 = vpack.c.b16 %v1004, %v1002
        %v1179 = vpack.c.b16 %v1005, %v1003
        %v1180 = vpack.c.b16 %v1008, %v1006
        %v1181 = vpack.c.b16 %v1009, %v1007
        %v1182 = vpack.c.b16 %v1012, %v1010
        %v1183 = vpack.c.b16 %v1013, %v1011
        %v1184 = vpack.c.b16 %v1016, %v1014
        %v1185 = vpack.c.b16 %v1017, %v1015
        %v1186 = vpack.c.b16 %v1020, %v1018
        %v1187 = vpack.c.b16 %v1021, %v1019
        %v1188 = vpack.c.b16 %v1024, %v1022
        %v1189 = vpack.c.b16 %v1025, %v1023
        %v1190 = vpack.c.b16 %v1028, %v1026
        %v1191 = vpack.c.b16 %v1029, %v1027
        %v1192 = vpack.c.b16 %v1032, %v1030
        %v1193 = vpack.c.b16 %v1033, %v1031
        %v1194 = vpack.c.b16 %v1036, %v1034
        %v1195 = vpack.c.b16 %v1037, %v1035
        %v1196 = vpack.c.b16 %v1040, %v1038
        %v1197 = vpack.c.b16 %v1041, %v1039
        %v1198 = vpack.c.b16 %v1044, %v1042
        %v1199 = vpack.c.b16 %v1045, %v1043
        %v1200 = vpack.c.b16 %v1048, %v1046
        %v1201 = vpack.c.b16 %v1049, %v1047
        %v1202 = vpack.c.b16 %v1052, %v1050
        %v1203 = vpack.c.b16 %v1053, %v1051
        %v1204 = vpack.c.b16 %v1056, %v1054
        %v1205 = vpack.c.b16 %v1057, %v1055
        %v1206 = vpack.c.b16 %v1060, %v1058
        %v1207 = vpack.c.b16 %v1061, %v1059
        %v1208 = vpack.c.b16 %v1064, %v1062
        %v1209 = vpack.c.b16 %v1065, %v1063
        %v1210 = vpack.c.b16 %v1068, %v1066
        %v1211 = vpack.c.b16 %v1069, %v1067
        %v1212 = vpack.c.b16 %v1072, %v1070
        %v1213 = vpack.c.b16 %v1073, %v1071
        %v1214 = vpack.c.b16 %v1076, %v1074
        %v1215 = vpack.c.b16 %v1077, %v1075
        %v1216 = vpack.c.b16 %v1080, %v1078
        %v1217 = vpack.c.b16 %v1081, %v1079
        %v1218 = vpack.c.b16 %v1084, %v1082
        %v1219 = vpack.c.b16 %v1085, %v1083
        %v1220 = vpack.c.b16 %v1088, %v1086
        %v1221 = vpack.c.b16 %v1089, %v1087
        %v1222 = vpack.c.b16 %v1092, %v1090
        %v1223 = vpack.c.b16 %v1093, %v1091
        %v1224 = vpack.c.b16 %v1096, %v1094
        %v1225 = vpack.c.b16 %v1097, %v1095
        %v1309 = vunpack.c.l.b16 %v695
        %v1310 = vunpack.c.l.b16 %v696
        %v1311 = vunpack.c.l.b16 %v697
        %v1312 = vunpack.c.l.b16 %v698
        %v1313 = vunpack.c.l.b16 %v699
        %v1314 = vunpack.c.l.b16 %v700
        %v1315 = vunpack.c.l.b16 %v701
        %v1316 = vunpack.c.l.b16 %v702
        %v1317 = vunpack.c.l.b16 %v703
        %v1318 = vunpack.c.l.b16 %v704
        %v1319 = vunpack.c.l.b16 %v705
        %v1320 = vunpack.c.l.b16 %v706
        %v1321 = vunpack.c.l.b16 %v707
        %v1322 = vunpack.c.l.b16 %v708
        %v1323 = vunpack.c.l.b16 %v709
        %v1324 = vunpack.c.l.b16 %v710
        %v1325 = vunpack.c.l.b16 %v711
        %v1326 = vunpack.c.l.b16 %v712
        %v1327 = vunpack.c.l.b16 %v713
        %v1328 = vpack.c.b16 %v1310, %v1309
        %v1329 = vpack.c.b16 %v1312, %v1311
        %v1330 = vpack.c.b16 %v1314, %v1313
        %v1331 = vpack.c.b16 %v1316, %v1315
        %v1332 = vpack.c.b16 %v1318, %v1317
        %v1333 = vpack.c.b16 %v1320, %v1319
        %v1334 = vpack.c.b16 %v1322, %v1321
        %v1335 = vpack.c.b16 %v1324, %v1323
        %v1336 = vpack.c.b16 %v1326, %v1325
        %v1337 = vpack.c.b16 %v1327, %v1327
        %vm1347 = vcmask 154624
        %v1349 = vsel %vm1347, %v1099, 0
        %v1352 = vsel %vm1347, %v1101, 0
        %v1355 = vsel %vm1347, %v1103, 0
        %v1358 = vsel %vm1347, %v1105, 0
        %v1361 = vsel %vm1347, %v1107, 0
        %v1364 = vsel %vm1347, %v1109, 0
        %v1367 = vsel %vm1347, %v1111, 0
        %v1370 = vsel %vm1347, %v1113, 0
        %v1373 = vsel %vm1347, %v1115, 0
        %v1376 = vsel %vm1347, %v1117, 0
        %v1379 = vsel %vm1347, %v1119, 0
        %v1382 = vsel %vm1347, %v1121, 0
        %v1385 = vsel %vm1347, %v1123, 0
        %v1388 = vsel %vm1347, %v1125, 0
        %v1391 = vsel %vm1347, %v1127, 0
        %v1394 = vsel %vm1347, %v1129, 0
        %v1397 = vsel %vm1347, %v1131, 0
        %v1400 = vsel %vm1347, %v1133, 0
        %v1403 = vsel %vm1347, %v1135, 0
        %v1406 = vsel %vm1347, %v1137, 0
        %v1409 = vsel %vm1347, %v1139, 0
        %v1412 = vsel %vm1347, %v1141, 0
        %v1415 = vsel %vm1347, %v1143, 0
        %v1418 = vsel %vm1347, %v1145, 0
        %v1421 = vsel %vm1347, %v1147, 0
        %v1424 = vsel %vm1347, %v1149, 0
        %v1427 = vsel %vm1347, %v1151, 0
        %v1430 = vsel %vm1347, %v1153, 0
        %v1433 = vsel %vm1347, %v1155, 0
        %v1436 = vsel %vm1347, %v1157, 0
        %v1439 = vsel %vm1347, %v1159, 0
        %v1442 = vsel %vm1347, %v1161, 0
        %v1445 = vsel %vm1347, %v1163, 0
        %v1448 = vsel %vm1347, %v1165, 0
        %v1451 = vsel %vm1347, %v1167, 0
        %v1454 = vsel %vm1347, %v1169, 0
        %v1457 = vsel %vm1347, %v1171, 0
        %v1460 = vsel %vm1347, %v1173, 0
        %v1463 = vsel %vm1347, %v1175, 0
        %v1466 = vsel %vm1347, %v1177, 0
        %v1469 = vsel %vm1347, %v1179, 0
        %v1472 = vsel %vm1347, %v1181, 0
        %v1475 = vsel %vm1347, %v1183, 0
        %v1478 = vsel %vm1347, %v1185, 0
        %v1481 = vsel %vm1347, %v1187, 0
        %v1484 = vsel %vm1347, %v1189, 0
        %v1487 = vsel %vm1347, %v1191, 0
        %v1490 = vsel %vm1347, %v1193, 0
        %v1493 = vsel %vm1347, %v1195, 0
        %v1496 = vsel %vm1347, %v1197, 0
        %v1499 = vsel %vm1347, %v1199, 0
        %v1502 = vsel %vm1347, %v1201, 0
        %v1505 = vsel %vm1347, %v1203, 0
        %v1508 = vsel %vm1347, %v1205, 0
        %v1511 = vsel %vm1347, %v1207, 0
        %v1514 = vsel %vm1347, %v1209, 0
        %v1517 = vsel %vm1347, %v1211, 0
        %v1520 = vsel %vm1347, %v1213, 0
        %v1523 = vsel %vm1347, %v1215, 0
        %v1526 = vsel %vm1347, %v1217, 0
        %v1529 = vsel %vm1347, %v1219, 0
        %v1532 = vsel %vm1347, %v1221, 0
        %v1535 = vsel %vm1347, %v1223, 0
        %v1538 = vsel %vm1347, %v1225, 0
        %vm1540 = vcmask 1040384
        %vm1541 = vcmask 1041408
        %v1542 = vsel %vm1540, 4294967295, 65535
        %v1543 = vsel %vm1541, %v1542, 0
        %v1545 = vand.u32 %v1337, %v1543
        %1547 = vmatprep.subr.bf16.mxu0 0
        %1548 = vmatpush1.bf16.msra.mxu0 %v1328
        %1549 = vmatprep.subr.bf16.mxu0 0
        %1550 = vmatpush1.bf16.msra.mxu0 %v1329
        %1551 = vmatprep.subr.bf16.mxu0 0
        %1552 = vmatpush1.bf16.msra.mxu0 %v1330
        %1553 = vmatprep.subr.bf16.mxu0 0
        %1554 = vmatpush1.bf16.msra.mxu0 %v1331
        %1555 = vmatprep.subr.bf16.mxu0 0
        %1556 = vmatpush1.bf16.msra.mxu0 %v1332
        %1557 = vmatprep.subr.bf16.mxu0 0
        %1558 = vmatpush1.bf16.msra.mxu0 %v1333
        %1559 = vmatprep.subr.bf16.mxu0 0
        %1560 = vmatpush1.bf16.msra.mxu0 %v1334
        %1561 = vmatprep.subr.bf16.mxu0 0
        %1562 = vmatpush1.bf16.msra.mxu0 %v1335
        %1563 = vmatprep.subr.bf16.mxu0 0
        %1564 = vmatpush1.bf16.msra.mxu0 %v1336
        %1565 = vmatprep.subr.bf16.mxu0 0
        %1566 = vmatpush1.bf16.msra.mxu0 %v1545
        %1567 = vmatprep.subr.bf16.mxu0 0
        %1568 = vmatpush1.bf16.msra.mxu0 0
        %1569 = vmatprep.subr.bf16.mxu0 0
        %1570 = vmatpush1.bf16.msra.mxu0 0
        %1571 = vmatprep.subr.bf16.mxu0 0
        %1572 = vmatpush1.bf16.msra.mxu0 0
        %1573 = vmatprep.subr.bf16.mxu0 0
        %1574 = vmatpush1.bf16.msra.mxu0 0
        %1575 = vmatprep.subr.bf16.mxu0 0
        %1576 = vmatpush1.bf16.msra.mxu0 0
        %1577 = vmatprep.subr.bf16.mxu0 0
        %1578 = vmatpush1.bf16.msra.mxu0 0
        %1579 = vmatprep.mubr.bf16.mxu0 %v1349
        %1580 = vmatmul.mubr.bf16.gmra.mrb[0].mxu0 %v1098
        %v1581 = vpop.f32.mrb[0].mxu0
        %v1582 = vadd.f32 0.0, %v1581
        %v1583 = vpop.f32.mrb[0].mxu0
        %v1584 = vpop.f32.mrb[0].mxu0
        %v1585 = vadd.f32 0.0, %v1584
        %v1586 = vpop.f32.mrb[0].mxu0
        %1587 = vmatprep.mubr.bf16.mxu0 %v1352
        %1588 = vmatmul.mubr.bf16.gmra.mrb[0].mxu0 %v1100
        %v1589 = vpop.f32.mrb[0].mxu0
        %v1590 = vadd.f32 0.0, %v1589
        %v1591 = vpop.f32.mrb[0].mxu0
        %v1592 = vpop.f32.mrb[0].mxu0
        %v1593 = vadd.f32 0.0, %v1592
        %v1594 = vpop.f32.mrb[0].mxu0
        %1595 = vmatprep.mubr.bf16.mxu0 %v1355
        %1596 = vmatmul.mubr.bf16.gmra.mrb[0].mxu0 %v1102
        %v1597 = vpop.f32.mrb[0].mxu0
        %v1598 = vadd.f32 0.0, %v1597
        %v1599 = vpop.f32.mrb[0].mxu0
        %v1600 = vpop.f32.mrb[0].mxu0
        %v1601 = vadd.f32 0.0, %v1600
        %v1602 = vpop.f32.mrb[0].mxu0
        %1603 = vmatprep.mubr.bf16.mxu0 %v1358
        %1604 = vmatmul.mubr.bf16.gmra.mrb[0].mxu0 %v1104
        %v1605 = vpop.f32.mrb[0].mxu0
        %v1606 = vadd.f32 0.0, %v1605
        %v1607 = vpop.f32.mrb[0].mxu0
        %v1608 = vpop.f32.mrb[0].mxu0
        %v1609 = vadd.f32 0.0, %v1608
        %v1610 = vpop.f32.mrb[0].mxu0
        %1611 = vmatprep.mubr.bf16.mxu0 %v1361
        %1612 = vmatmul.mubr.bf16.gmra.mrb[0].mxu0 %v1106
        %v1613 = vpop.f32.mrb[0].mxu0
        %v1614 = vadd.f32 0.0, %v1613
        %v1615 = vpop.f32.mrb[0].mxu0
        %v1616 = vpop.f32.mrb[0].mxu0
        %v1617 = vadd.f32 0.0, %v1616
        %v1618 = vpop.f32.mrb[0].mxu0
        %1619 = vmatprep.mubr.bf16.mxu0 %v1364
        %1620 = vmatmul.mubr.bf16.gmra.mrb[0].mxu0 %v1108
        %v1621 = vpop.f32.mrb[0].mxu0
        %v1622 = vadd.f32 0.0, %v1621
        %v1623 = vpop.f32.mrb[0].mxu0
        %v1624 = vpop.f32.mrb[0].mxu0
        %v1625 = vadd.f32 0.0, %v1624
        %v1626 = vpop.f32.mrb[0].mxu0
        %1627 = vmatprep.mubr.bf16.mxu0 %v1367
        %1628 = vmatmul.mubr.bf16.gmra.mrb[0].mxu0 %v1110
        %v1629 = vpop.f32.mrb[0].mxu0
        %v1630 = vadd.f32 0.0, %v1629
        %v1631 = vpop.f32.mrb[0].mxu0
        %v1632 = vpop.f32.mrb[0].mxu0
        %v1633 = vadd.f32 0.0, %v1632
        %v1634 = vpop.f32.mrb[0].mxu0
        %1635 = vmatprep.mubr.bf16.mxu0 %v1370
        %1636 = vmatmul.mubr.bf16.gmra.mrb[0].mxu0 %v1112
        %v1637 = vpop.f32.mrb[0].mxu0
        %v1638 = vadd.f32 0.0, %v1637
        %v1639 = vpop.f32.mrb[0].mxu0
        %v1640 = vpop.f32.mrb[0].mxu0
        %v1641 = vadd.f32 0.0, %v1640
        %v1642 = vpop.f32.mrb[0].mxu0
        %1643 = vmatprep.mubr.bf16.mxu0 %v1373
        %1644 = vmatmul.mubr.bf16.gmra.mrb[0].mxu0 %v1114
        %v1645 = vpop.f32.mrb[0].mxu0
        %v1646 = vadd.f32 0.0, %v1645
        %v1647 = vpop.f32.mrb[0].mxu0
        %v1648 = vpop.f32.mrb[0].mxu0
        %v1649 = vadd.f32 0.0, %v1648
        %v1650 = vpop.f32.mrb[0].mxu0
        %1651 = vmatprep.mubr.bf16.mxu0 %v1376
        %1652 = vmatmul.mubr.bf16.gmra.mrb[0].mxu0 %v1116
        %v1653 = vpop.f32.mrb[0].mxu0
        %v1654 = vadd.f32 0.0, %v1653
        %v1655 = vpop.f32.mrb[0].mxu0
        %v1656 = vpop.f32.mrb[0].mxu0
        %v1657 = vadd.f32 0.0, %v1656
        %v1658 = vpop.f32.mrb[0].mxu0
        %1659 = vmatprep.mubr.bf16.mxu0 %v1379
        %1660 = vmatmul.mubr.bf16.gmra.mrb[0].mxu0 %v1118
        %v1661 = vpop.f32.mrb[0].mxu0
        %v1662 = vadd.f32 0.0, %v1661
        %v1663 = vpop.f32.mrb[0].mxu0
        %v1664 = vpop.f32.mrb[0].mxu0
        %v1665 = vadd.f32 0.0, %v1664
        %v1666 = vpop.f32.mrb[0].mxu0
        %1667 = vmatprep.mubr.bf16.mxu0 %v1382
        %1668 = vmatmul.mubr.bf16.gmra.mrb[0].mxu0 %v1120
        %v1669 = vpop.f32.mrb[0].mxu0
        %v1670 = vadd.f32 0.0, %v1669
        %v1671 = vpop.f32.mrb[0].mxu0
        %v1672 = vpop.f32.mrb[0].mxu0
        %v1673 = vadd.f32 0.0, %v1672
        %v1674 = vpop.f32.mrb[0].mxu0
        %1675 = vmatprep.mubr.bf16.mxu0 %v1385
        %1676 = vmatmul.mubr.bf16.gmra.mrb[0].mxu0 %v1122
        %v1677 = vpop.f32.mrb[0].mxu0
        %v1678 = vadd.f32 0.0, %v1677
        %v1679 = vpop.f32.mrb[0].mxu0
        %v1680 = vpop.f32.mrb[0].mxu0
        %v1681 = vadd.f32 0.0, %v1680
        %v1682 = vpop.f32.mrb[0].mxu0
        %1683 = vmatprep.mubr.bf16.mxu0 %v1388
        %1684 = vmatmul.mubr.bf16.gmra.mrb[0].mxu0 %v1124
        %v1685 = vpop.f32.mrb[0].mxu0
        %v1686 = vadd.f32 0.0, %v1685
        %v1687 = vpop.f32.mrb[0].mxu0
        %v1688 = vpop.f32.mrb[0].mxu0
        %v1689 = vadd.f32 0.0, %v1688
        %v1690 = vpop.f32.mrb[0].mxu0
        %1691 = vmatprep.mubr.bf16.mxu0 %v1391
        %1692 = vmatmul.mubr.bf16.gmra.mrb[0].mxu0 %v1126
        %v1693 = vpop.f32.mrb[0].mxu0
        %v1694 = vadd.f32 0.0, %v1693
        %v1695 = vpop.f32.mrb[0].mxu0
        %v1696 = vpop.f32.mrb[0].mxu0
        %v1697 = vadd.f32 0.0, %v1696
        %v1698 = vpop.f32.mrb[0].mxu0
        %1699 = vmatprep.mubr.bf16.mxu0 %v1394
        %1700 = vmatmul.mubr.bf16.gmra.mrb[0].mxu0 %v1128
        %v1701 = vpop.f32.mrb[0].mxu0
        %v1702 = vadd.f32 0.0, %v1701
        %v1703 = vpop.f32.mrb[0].mxu0
        %v1704 = vpop.f32.mrb[0].mxu0
        %v1705 = vadd.f32 0.0, %v1704
        %v1706 = vpop.f32.mrb[0].mxu0
        %1707 = vmatprep.mubr.bf16.mxu0 %v1397
        %1708 = vmatmul.mubr.bf16.gmra.mrb[0].mxu0 %v1130
        %v1709 = vpop.f32.mrb[0].mxu0
        %v1710 = vadd.f32 0.0, %v1709
        %v1711 = vpop.f32.mrb[0].mxu0
        %v1712 = vpop.f32.mrb[0].mxu0
        %v1713 = vadd.f32 0.0, %v1712
        %v1714 = vpop.f32.mrb[0].mxu0
        %1715 = vmatprep.mubr.bf16.mxu0 %v1400
        %1716 = vmatmul.mubr.bf16.gmra.mrb[0].mxu0 %v1132
        %v1717 = vpop.f32.mrb[0].mxu0
        %v1718 = vadd.f32 0.0, %v1717
        %v1719 = vpop.f32.mrb[0].mxu0
        %v1720 = vpop.f32.mrb[0].mxu0
        %v1721 = vadd.f32 0.0, %v1720
        %v1722 = vpop.f32.mrb[0].mxu0
        %1723 = vmatprep.mubr.bf16.mxu0 %v1403
        %1724 = vmatmul.mubr.bf16.gmra.mrb[0].mxu0 %v1134
        %v1725 = vpop.f32.mrb[0].mxu0
        %v1726 = vadd.f32 0.0, %v1725
        %v1727 = vpop.f32.mrb[0].mxu0
        %v1728 = vpop.f32.mrb[0].mxu0
        %v1729 = vadd.f32 0.0, %v1728
        %v1730 = vpop.f32.mrb[0].mxu0
        %1731 = vmatprep.mubr.bf16.mxu0 %v1406
        %1732 = vmatmul.mubr.bf16.gmra.mrb[0].mxu0 %v1136
        %v1733 = vpop.f32.mrb[0].mxu0
        %v1734 = vadd.f32 0.0, %v1733
        %v1735 = vpop.f32.mrb[0].mxu0
        %v1736 = vpop.f32.mrb[0].mxu0
        %v1737 = vadd.f32 0.0, %v1736
        %v1738 = vpop.f32.mrb[0].mxu0
        %1739 = vmatprep.mubr.bf16.mxu0 %v1409
        %1740 = vmatmul.mubr.bf16.gmra.mrb[0].mxu0 %v1138
        %v1741 = vpop.f32.mrb[0].mxu0
        %v1742 = vadd.f32 0.0, %v1741
        %v1743 = vpop.f32.mrb[0].mxu0
        %v1744 = vpop.f32.mrb[0].mxu0
        %v1745 = vadd.f32 0.0, %v1744
        %v1746 = vpop.f32.mrb[0].mxu0
        %1747 = vmatprep.mubr.bf16.mxu0 %v1412
        %1748 = vmatmul.mubr.bf16.gmra.mrb[0].mxu0 %v1140
        %v1749 = vpop.f32.mrb[0].mxu0
        %v1750 = vadd.f32 0.0, %v1749
        %v1751 = vpop.f32.mrb[0].mxu0
        %v1752 = vpop.f32.mrb[0].mxu0
        %v1753 = vadd.f32 0.0, %v1752
        %v1754 = vpop.f32.mrb[0].mxu0
        %1755 = vmatprep.mubr.bf16.mxu0 %v1415
        %1756 = vmatmul.mubr.bf16.gmra.mrb[0].mxu0 %v1142
        %v1757 = vpop.f32.mrb[0].mxu0
        %v1758 = vadd.f32 0.0, %v1757
        %v1759 = vpop.f32.mrb[0].mxu0
        %v1760 = vpop.f32.mrb[0].mxu0
        %v1761 = vadd.f32 0.0, %v1760
        %v1762 = vpop.f32.mrb[0].mxu0
        %1763 = vmatprep.mubr.bf16.mxu0 %v1418
        %1764 = vmatmul.mubr.bf16.gmra.mrb[0].mxu0 %v1144
        %v1765 = vpop.f32.mrb[0].mxu0
        %v1766 = vadd.f32 0.0, %v1765
        %v1767 = vpop.f32.mrb[0].mxu0
        %v1768 = vpop.f32.mrb[0].mxu0
        %v1769 = vadd.f32 0.0, %v1768
        %v1770 = vpop.f32.mrb[0].mxu0
        %1771 = vmatprep.mubr.bf16.mxu0 %v1421
        %1772 = vmatmul.mubr.bf16.gmra.mrb[0].mxu0 %v1146
        %v1773 = vpop.f32.mrb[0].mxu0
        %v1774 = vadd.f32 0.0, %v1773
        %v1775 = vpop.f32.mrb[0].mxu0
        %v1776 = vpop.f32.mrb[0].mxu0
        %v1777 = vadd.f32 0.0, %v1776
        %v1778 = vpop.f32.mrb[0].mxu0
        %1779 = vmatprep.mubr.bf16.mxu0 %v1424
        %1780 = vmatmul.mubr.bf16.gmra.mrb[0].mxu0 %v1148
        %v1781 = vpop.f32.mrb[0].mxu0
        %v1782 = vadd.f32 0.0, %v1781
        %v1783 = vpop.f32.mrb[0].mxu0
        %v1784 = vpop.f32.mrb[0].mxu0
        %v1785 = vadd.f32 0.0, %v1784
        %v1786 = vpop.f32.mrb[0].mxu0
        %1787 = vmatprep.mubr.bf16.mxu0 %v1427
        %1788 = vmatmul.mubr.bf16.gmra.mrb[0].mxu0 %v1150
        %v1789 = vpop.f32.mrb[0].mxu0
        %v1790 = vadd.f32 0.0, %v1789
        %v1791 = vpop.f32.mrb[0].mxu0
        %v1792 = vpop.f32.mrb[0].mxu0
        %v1793 = vadd.f32 0.0, %v1792
        %v1794 = vpop.f32.mrb[0].mxu0
        %1795 = vmatprep.mubr.bf16.mxu0 %v1430
        %1796 = vmatmul.mubr.bf16.gmra.mrb[0].mxu0 %v1152
        %v1797 = vpop.f32.mrb[0].mxu0
        %v1798 = vadd.f32 0.0, %v1797
        %v1799 = vpop.f32.mrb[0].mxu0
        %v1800 = vpop.f32.mrb[0].mxu0
        %v1801 = vadd.f32 0.0, %v1800
        %v1802 = vpop.f32.mrb[0].mxu0
        %1803 = vmatprep.mubr.bf16.mxu0 %v1433
        %1804 = vmatmul.mubr.bf16.gmra.mrb[0].mxu0 %v1154
        %v1805 = vpop.f32.mrb[0].mxu0
        %v1806 = vadd.f32 0.0, %v1805
        %v1807 = vpop.f32.mrb[0].mxu0
        %v1808 = vpop.f32.mrb[0].mxu0
        %v1809 = vadd.f32 0.0, %v1808
        %v1810 = vpop.f32.mrb[0].mxu0
        %1811 = vmatprep.mubr.bf16.mxu0 %v1436
        %1812 = vmatmul.mubr.bf16.gmra.mrb[0].mxu0 %v1156
        %v1813 = vpop.f32.mrb[0].mxu0
        %v1814 = vadd.f32 0.0, %v1813
        %v1815 = vpop.f32.mrb[0].mxu0
        %v1816 = vpop.f32.mrb[0].mxu0
        %v1817 = vadd.f32 0.0, %v1816
        %v1818 = vpop.f32.mrb[0].mxu0
        %1819 = vmatprep.mubr.bf16.mxu0 %v1439
        %1820 = vmatmul.mubr.bf16.gmra.mrb[0].mxu0 %v1158
        %v1821 = vpop.f32.mrb[0].mxu0
        %v1822 = vadd.f32 0.0, %v1821
        %v1823 = vpop.f32.mrb[0].mxu0
        %v1824 = vpop.f32.mrb[0].mxu0
        %v1825 = vadd.f32 0.0, %v1824
        %v1826 = vpop.f32.mrb[0].mxu0
        %1827 = vmatprep.mubr.bf16.mxu0 %v1442
        %1828 = vmatmul.mubr.bf16.gmra.mrb[0].mxu0 %v1160
        %v1829 = vpop.f32.mrb[0].mxu0
        %v1830 = vadd.f32 0.0, %v1829
        %v1831 = vpop.f32.mrb[0].mxu0
        %v1832 = vpop.f32.mrb[0].mxu0
        %v1833 = vadd.f32 0.0, %v1832
        %v1834 = vpop.f32.mrb[0].mxu0
        %1835 = vmatprep.mubr.bf16.mxu0 %v1445
        %1836 = vmatmul.mubr.bf16.gmra.mrb[0].mxu0 %v1162
        %v1837 = vpop.f32.mrb[0].mxu0
        %v1838 = vadd.f32 0.0, %v1837
        %v1839 = vpop.f32.mrb[0].mxu0
        %v1840 = vpop.f32.mrb[0].mxu0
        %v1841 = vadd.f32 0.0, %v1840
        %v1842 = vpop.f32.mrb[0].mxu0
        %1843 = vmatprep.mubr.bf16.mxu0 %v1448
        %1844 = vmatmul.mubr.bf16.gmra.mrb[0].mxu0 %v1164
        %v1845 = vpop.f32.mrb[0].mxu0
        %v1846 = vadd.f32 0.0, %v1845
        %v1847 = vpop.f32.mrb[0].mxu0
        %v1848 = vpop.f32.mrb[0].mxu0
        %v1849 = vadd.f32 0.0, %v1848
        %v1850 = vpop.f32.mrb[0].mxu0
        %1851 = vmatprep.mubr.bf16.mxu0 %v1451
        %1852 = vmatmul.mubr.bf16.gmra.mrb[0].mxu0 %v1166
        %v1853 = vpop.f32.mrb[0].mxu0
        %v1854 = vadd.f32 0.0, %v1853
        %v1855 = vpop.f32.mrb[0].mxu0
        %v1856 = vpop.f32.mrb[0].mxu0
        %v1857 = vadd.f32 0.0, %v1856
        %v1858 = vpop.f32.mrb[0].mxu0
        %1859 = vmatprep.mubr.bf16.mxu0 %v1454
        %1860 = vmatmul.mubr.bf16.gmra.mrb[0].mxu0 %v1168
        %v1861 = vpop.f32.mrb[0].mxu0
        %v1862 = vadd.f32 0.0, %v1861
        %v1863 = vpop.f32.mrb[0].mxu0
        %v1864 = vpop.f32.mrb[0].mxu0
        %v1865 = vadd.f32 0.0, %v1864
        %v1866 = vpop.f32.mrb[0].mxu0
        %1867 = vmatprep.mubr.bf16.mxu0 %v1457
        %1868 = vmatmul.mubr.bf16.gmra.mrb[0].mxu0 %v1170
        %v1869 = vpop.f32.mrb[0].mxu0
        %v1870 = vadd.f32 0.0, %v1869
        %v1871 = vpop.f32.mrb[0].mxu0
        %v1872 = vpop.f32.mrb[0].mxu0
        %v1873 = vadd.f32 0.0, %v1872
        %v1874 = vpop.f32.mrb[0].mxu0
        %1875 = vmatprep.mubr.bf16.mxu0 %v1460
        %1876 = vmatmul.mubr.bf16.gmra.mrb[0].mxu0 %v1172
        %v1877 = vpop.f32.mrb[0].mxu0
        %v1878 = vadd.f32 0.0, %v1877
        %v1879 = vpop.f32.mrb[0].mxu0
        %v1880 = vpop.f32.mrb[0].mxu0
        %v1881 = vadd.f32 0.0, %v1880
        %v1882 = vpop.f32.mrb[0].mxu0
        %1883 = vmatprep.mubr.bf16.mxu0 %v1463
        %1884 = vmatmul.mubr.bf16.gmra.mrb[0].mxu0 %v1174
        %v1885 = vpop.f32.mrb[0].mxu0
        %v1886 = vadd.f32 0.0, %v1885
        %v1887 = vpop.f32.mrb[0].mxu0
        %v1888 = vpop.f32.mrb[0].mxu0
        %v1889 = vadd.f32 0.0, %v1888
        %v1890 = vpop.f32.mrb[0].mxu0
        %1891 = vmatprep.mubr.bf16.mxu0 %v1466
        %1892 = vmatmul.mubr.bf16.gmra.mrb[0].mxu0 %v1176
        %v1893 = vpop.f32.mrb[0].mxu0
        %v1894 = vadd.f32 0.0, %v1893
        %v1895 = vpop.f32.mrb[0].mxu0
        %v1896 = vpop.f32.mrb[0].mxu0
        %v1897 = vadd.f32 0.0, %v1896
        %v1898 = vpop.f32.mrb[0].mxu0
        %1899 = vmatprep.mubr.bf16.mxu0 %v1469
        %1900 = vmatmul.mubr.bf16.gmra.mrb[0].mxu0 %v1178
        %v1901 = vpop.f32.mrb[0].mxu0
        %v1902 = vadd.f32 0.0, %v1901
        %v1903 = vpop.f32.mrb[0].mxu0
        %v1904 = vpop.f32.mrb[0].mxu0
        %v1905 = vadd.f32 0.0, %v1904
        %v1906 = vpop.f32.mrb[0].mxu0
        %1907 = vmatprep.mubr.bf16.mxu0 %v1472
        %1908 = vmatmul.mubr.bf16.gmra.mrb[0].mxu0 %v1180
        %v1909 = vpop.f32.mrb[0].mxu0
        %v1910 = vadd.f32 0.0, %v1909
        %v1911 = vpop.f32.mrb[0].mxu0
        %v1912 = vpop.f32.mrb[0].mxu0
        %v1913 = vadd.f32 0.0, %v1912
        %v1914 = vpop.f32.mrb[0].mxu0
        %1915 = vmatprep.mubr.bf16.mxu0 %v1475
        %1916 = vmatmul.mubr.bf16.gmra.mrb[0].mxu0 %v1182
        %v1917 = vpop.f32.mrb[0].mxu0
        %v1918 = vadd.f32 0.0, %v1917
        %v1919 = vpop.f32.mrb[0].mxu0
        %v1920 = vpop.f32.mrb[0].mxu0
        %v1921 = vadd.f32 0.0, %v1920
        %v1922 = vpop.f32.mrb[0].mxu0
        %1923 = vmatprep.mubr.bf16.mxu0 %v1478
        %1924 = vmatmul.mubr.bf16.gmra.mrb[0].mxu0 %v1184
        %v1925 = vpop.f32.mrb[0].mxu0
        %v1926 = vadd.f32 0.0, %v1925
        %v1927 = vpop.f32.mrb[0].mxu0
        %v1928 = vpop.f32.mrb[0].mxu0
        %v1929 = vadd.f32 0.0, %v1928
        %v1930 = vpop.f32.mrb[0].mxu0
        %1931 = vmatprep.mubr.bf16.mxu0 %v1481
        %1932 = vmatmul.mubr.bf16.gmra.mrb[0].mxu0 %v1186
        %v1933 = vpop.f32.mrb[0].mxu0
        %v1934 = vadd.f32 0.0, %v1933
        %v1935 = vpop.f32.mrb[0].mxu0
        %v1936 = vpop.f32.mrb[0].mxu0
        %v1937 = vadd.f32 0.0, %v1936
        %v1938 = vpop.f32.mrb[0].mxu0
        %1939 = vmatprep.mubr.bf16.mxu0 %v1484
        %1940 = vmatmul.mubr.bf16.gmra.mrb[0].mxu0 %v1188
        %v1941 = vpop.f32.mrb[0].mxu0
        %v1942 = vadd.f32 0.0, %v1941
        %v1943 = vpop.f32.mrb[0].mxu0
        %v1944 = vpop.f32.mrb[0].mxu0
        %v1945 = vadd.f32 0.0, %v1944
        %v1946 = vpop.f32.mrb[0].mxu0
        %1947 = vmatprep.mubr.bf16.mxu0 %v1487
        %1948 = vmatmul.mubr.bf16.gmra.mrb[0].mxu0 %v1190
        %v1949 = vpop.f32.mrb[0].mxu0
        %v1950 = vadd.f32 0.0, %v1949
        %v1951 = vpop.f32.mrb[0].mxu0
        %v1952 = vpop.f32.mrb[0].mxu0
        %v1953 = vadd.f32 0.0, %v1952
        %v1954 = vpop.f32.mrb[0].mxu0
        %1955 = vmatprep.mubr.bf16.mxu0 %v1490
        %1956 = vmatmul.mubr.bf16.gmra.mrb[0].mxu0 %v1192
        %v1957 = vpop.f32.mrb[0].mxu0
        %v1958 = vadd.f32 0.0, %v1957
        %v1959 = vpop.f32.mrb[0].mxu0
        %v1960 = vpop.f32.mrb[0].mxu0
        %v1961 = vadd.f32 0.0, %v1960
        %v1962 = vpop.f32.mrb[0].mxu0
        %1963 = vmatprep.mubr.bf16.mxu0 %v1493
        %1964 = vmatmul.mubr.bf16.gmra.mrb[0].mxu0 %v1194
        %v1965 = vpop.f32.mrb[0].mxu0
        %v1966 = vadd.f32 0.0, %v1965
        %v1967 = vpop.f32.mrb[0].mxu0
        %v1968 = vpop.f32.mrb[0].mxu0
        %v1969 = vadd.f32 0.0, %v1968
        %v1970 = vpop.f32.mrb[0].mxu0
        %1971 = vmatprep.mubr.bf16.mxu0 %v1496
        %1972 = vmatmul.mubr.bf16.gmra.mrb[0].mxu0 %v1196
        %v1973 = vpop.f32.mrb[0].mxu0
        %v1974 = vadd.f32 0.0, %v1973
        %v1975 = vpop.f32.mrb[0].mxu0
        %v1976 = vpop.f32.mrb[0].mxu0
        %v1977 = vadd.f32 0.0, %v1976
        %v1978 = vpop.f32.mrb[0].mxu0
        %1979 = vmatprep.mubr.bf16.mxu0 %v1499
        %1980 = vmatmul.mubr.bf16.gmra.mrb[0].mxu0 %v1198
        %v1981 = vpop.f32.mrb[0].mxu0
        %v1982 = vadd.f32 0.0, %v1981
        %v1983 = vpop.f32.mrb[0].mxu0
        %v1984 = vpop.f32.mrb[0].mxu0
        %v1985 = vadd.f32 0.0, %v1984
        %v1986 = vpop.f32.mrb[0].mxu0
        %1987 = vmatprep.mubr.bf16.mxu0 %v1502
        %1988 = vmatmul.mubr.bf16.gmra.mrb[0].mxu0 %v1200
        %v1989 = vpop.f32.mrb[0].mxu0
        %v1990 = vadd.f32 0.0, %v1989
        %v1991 = vpop.f32.mrb[0].mxu0
        %v1992 = vpop.f32.mrb[0].mxu0
        %v1993 = vadd.f32 0.0, %v1992
        %v1994 = vpop.f32.mrb[0].mxu0
        %1995 = vmatprep.mubr.bf16.mxu0 %v1505
        %1996 = vmatmul.mubr.bf16.gmra.mrb[0].mxu0 %v1202
        %v1997 = vpop.f32.mrb[0].mxu0
        %v1998 = vadd.f32 0.0, %v1997
        %v1999 = vpop.f32.mrb[0].mxu0
        %v2000 = vpop.f32.mrb[0].mxu0
        %v2001 = vadd.f32 0.0, %v2000
        %v2002 = vpop.f32.mrb[0].mxu0
        %2003 = vmatprep.mubr.bf16.mxu0 %v1508
        %2004 = vmatmul.mubr.bf16.gmra.mrb[0].mxu0 %v1204
        %v2005 = vpop.f32.mrb[0].mxu0
        %v2006 = vadd.f32 0.0, %v2005
        %v2007 = vpop.f32.mrb[0].mxu0
        %v2008 = vpop.f32.mrb[0].mxu0
        %v2009 = vadd.f32 0.0, %v2008
        %v2010 = vpop.f32.mrb[0].mxu0
        %2011 = vmatprep.mubr.bf16.mxu0 %v1511
        %2012 = vmatmul.mubr.bf16.gmra.mrb[0].mxu0 %v1206
        %v2013 = vpop.f32.mrb[0].mxu0
        %v2014 = vadd.f32 0.0, %v2013
        %v2015 = vpop.f32.mrb[0].mxu0
        %v2016 = vpop.f32.mrb[0].mxu0
        %v2017 = vadd.f32 0.0, %v2016
        %v2018 = vpop.f32.mrb[0].mxu0
        %2019 = vmatprep.mubr.bf16.mxu0 %v1514
        %2020 = vmatmul.mubr.bf16.gmra.mrb[0].mxu0 %v1208
        %v2021 = vpop.f32.mrb[0].mxu0
        %v2022 = vadd.f32 0.0, %v2021
        %v2023 = vpop.f32.mrb[0].mxu0
        %v2024 = vpop.f32.mrb[0].mxu0
        %v2025 = vadd.f32 0.0, %v2024
        %v2026 = vpop.f32.mrb[0].mxu0
        %2027 = vmatprep.mubr.bf16.mxu0 %v1517
        %2028 = vmatmul.mubr.bf16.gmra.mrb[0].mxu0 %v1210
        %v2029 = vpop.f32.mrb[0].mxu0
        %v2030 = vadd.f32 0.0, %v2029
        %v2031 = vpop.f32.mrb[0].mxu0
        %v2032 = vpop.f32.mrb[0].mxu0
        %v2033 = vadd.f32 0.0, %v2032
        %v2034 = vpop.f32.mrb[0].mxu0
        %2035 = vmatprep.mubr.bf16.mxu0 %v1520
        %2036 = vmatmul.mubr.bf16.gmra.mrb[0].mxu0 %v1212
        %v2037 = vpop.f32.mrb[0].mxu0
        %v2038 = vadd.f32 0.0, %v2037
        %v2039 = vpop.f32.mrb[0].mxu0
        %v2040 = vpop.f32.mrb[0].mxu0
        %v2041 = vadd.f32 0.0, %v2040
        %v2042 = vpop.f32.mrb[0].mxu0
        %2043 = vmatprep.mubr.bf16.mxu0 %v1523
        %2044 = vmatmul.mubr.bf16.gmra.mrb[0].mxu0 %v1214
        %v2045 = vpop.f32.mrb[0].mxu0
        %v2046 = vadd.f32 0.0, %v2045
        %v2047 = vpop.f32.mrb[0].mxu0
        %v2048 = vpop.f32.mrb[0].mxu0
        %v2049 = vadd.f32 0.0, %v2048
        %v2050 = vpop.f32.mrb[0].mxu0
        %2051 = vmatprep.mubr.bf16.mxu0 %v1526
        %2052 = vmatmul.mubr.bf16.gmra.mrb[0].mxu0 %v1216
        %v2053 = vpop.f32.mrb[0].mxu0
        %v2054 = vadd.f32 0.0, %v2053
        %v2055 = vpop.f32.mrb[0].mxu0
        %v2056 = vpop.f32.mrb[0].mxu0
        %v2057 = vadd.f32 0.0, %v2056
        %v2058 = vpop.f32.mrb[0].mxu0
        %2059 = vmatprep.mubr.bf16.mxu0 %v1529
        %2060 = vmatmul.mubr.bf16.gmra.mrb[0].mxu0 %v1218
        %v2061 = vpop.f32.mrb[0].mxu0
        %v2062 = vadd.f32 0.0, %v2061
        %v2063 = vpop.f32.mrb[0].mxu0
        %v2064 = vpop.f32.mrb[0].mxu0
        %v2065 = vadd.f32 0.0, %v2064
        %v2066 = vpop.f32.mrb[0].mxu0
        %2067 = vmatprep.mubr.bf16.mxu0 %v1532
        %2068 = vmatmul.mubr.bf16.gmra.mrb[0].mxu0 %v1220
        %v2069 = vpop.f32.mrb[0].mxu0
        %v2070 = vadd.f32 0.0, %v2069
        %v2071 = vpop.f32.mrb[0].mxu0
        %v2072 = vpop.f32.mrb[0].mxu0
        %v2073 = vadd.f32 0.0, %v2072
        %v2074 = vpop.f32.mrb[0].mxu0
        %2075 = vmatprep.mubr.bf16.mxu0 %v1535
        %2076 = vmatmul.mubr.bf16.gmra.mrb[0].mxu0 %v1222
        %v2077 = vpop.f32.mrb[0].mxu0
        %v2078 = vadd.f32 0.0, %v2077
        %v2079 = vpop.f32.mrb[0].mxu0
        %v2080 = vpop.f32.mrb[0].mxu0
        %v2081 = vadd.f32 0.0, %v2080
        %v2082 = vpop.f32.mrb[0].mxu0
        %2083 = vmatprep.mubr.bf16.mxu0 %v1538
        %2084 = vmatmul.mubr.bf16.gmra.mrb[0].mxu0 %v1224
        %v2085 = vpop.f32.mrb[0].mxu0
        %v2086 = vadd.f32 0.0, %v2085
        %v2087 = vpop.f32.mrb[0].mxu0
        %v2088 = vpop.f32.mrb[0].mxu0
        %v2089 = vadd.f32 0.0, %v2088
        %v2090 = vpop.f32.mrb[0].mxu0
        %2091 = vdwg.mxu0
        %v2092 = vadd.f32 %v439, %v1582
        %v2093 = vadd.f32 %v440, %v1585
        %v2094 = vadd.f32 %v441, %v1590
        %v2095 = vadd.f32 %v442, %v1593
        %v2096 = vadd.f32 %v443, %v1598
        %v2097 = vadd.f32 %v444, %v1601
        %v2098 = vadd.f32 %v445, %v1606
        %v2099 = vadd.f32 %v446, %v1609
        %v2100 = vadd.f32 %v447, %v1614
        %v2101 = vadd.f32 %v448, %v1617
        %v2102 = vadd.f32 %v449, %v1622
        %v2103 = vadd.f32 %v450, %v1625
        %v2104 = vadd.f32 %v451, %v1630
        %v2105 = vadd.f32 %v452, %v1633
        %v2106 = vadd.f32 %v453, %v1638
        %v2107 = vadd.f32 %v454, %v1641
        %v2108 = vadd.f32 %v455, %v1646
        %v2109 = vadd.f32 %v456, %v1649
        %v2110 = vadd.f32 %v457, %v1654
        %v2111 = vadd.f32 %v458, %v1657
        %v2112 = vadd.f32 %v459, %v1662
        %v2113 = vadd.f32 %v460, %v1665
        %v2114 = vadd.f32 %v461, %v1670
        %v2115 = vadd.f32 %v462, %v1673
        %v2116 = vadd.f32 %v463, %v1678
        %v2117 = vadd.f32 %v464, %v1681
        %v2118 = vadd.f32 %v465, %v1686
        %v2119 = vadd.f32 %v466, %v1689
        %v2120 = vadd.f32 %v467, %v1694
        %v2121 = vadd.f32 %v468, %v1697
        %v2122 = vadd.f32 %v469, %v1702
        %v2123 = vadd.f32 %v470, %v1705
        %v2124 = vadd.f32 %v471, %v1710
        %v2125 = vadd.f32 %v472, %v1713
        %v2126 = vadd.f32 %v473, %v1718
        %v2127 = vadd.f32 %v474, %v1721
        %v2128 = vadd.f32 %v475, %v1726
        %v2129 = vadd.f32 %v476, %v1729
        %v2130 = vadd.f32 %v477, %v1734
        %v2131 = vadd.f32 %v478, %v1737
        %v2132 = vadd.f32 %v479, %v1742
        %v2133 = vadd.f32 %v480, %v1745
        %v2134 = vadd.f32 %v481, %v1750
        %v2135 = vadd.f32 %v482, %v1753
        %v2136 = vadd.f32 %v483, %v1758
        %v2137 = vadd.f32 %v484, %v1761
        %v2138 = vadd.f32 %v485, %v1766
        %v2139 = vadd.f32 %v486, %v1769
        %v2140 = vadd.f32 %v487, %v1774
        %v2141 = vadd.f32 %v488, %v1777
        %v2142 = vadd.f32 %v489, %v1782
        %v2143 = vadd.f32 %v490, %v1785
        %v2144 = vadd.f32 %v491, %v1790
        %v2145 = vadd.f32 %v492, %v1793
        %v2146 = vadd.f32 %v493, %v1798
        %v2147 = vadd.f32 %v494, %v1801
        %v2148 = vadd.f32 %v495, %v1806
        %v2149 = vadd.f32 %v496, %v1809
        %v2150 = vadd.f32 %v497, %v1814
        %v2151 = vadd.f32 %v498, %v1817
        %v2152 = vadd.f32 %v499, %v1822
        %v2153 = vadd.f32 %v500, %v1825
        %v2154 = vadd.f32 %v501, %v1830
        %v2155 = vadd.f32 %v502, %v1833
        %v2156 = vadd.f32 %v503, %v1838
        %v2157 = vadd.f32 %v504, %v1841
        %v2158 = vadd.f32 %v505, %v1846
        %v2159 = vadd.f32 %v506, %v1849
        %v2160 = vadd.f32 %v507, %v1854
        %v2161 = vadd.f32 %v508, %v1857
        %v2162 = vadd.f32 %v509, %v1862
        %v2163 = vadd.f32 %v510, %v1865
        %v2164 = vadd.f32 %v511, %v1870
        %v2165 = vadd.f32 %v512, %v1873
        %v2166 = vadd.f32 %v513, %v1878
        %v2167 = vadd.f32 %v514, %v1881
        %v2168 = vadd.f32 %v515, %v1886
        %v2169 = vadd.f32 %v516, %v1889
        %v2170 = vadd.f32 %v517, %v1894
        %v2171 = vadd.f32 %v518, %v1897
        %v2172 = vadd.f32 %v519, %v1902
        %v2173 = vadd.f32 %v520, %v1905
        %v2174 = vadd.f32 %v521, %v1910
        %v2175 = vadd.f32 %v522, %v1913
        %v2176 = vadd.f32 %v523, %v1918
        %v2177 = vadd.f32 %v524, %v1921
        %v2178 = vadd.f32 %v525, %v1926
        %v2179 = vadd.f32 %v526, %v1929
        %v2180 = vadd.f32 %v527, %v1934
        %v2181 = vadd.f32 %v528, %v1937
        %v2182 = vadd.f32 %v529, %v1942
        %v2183 = vadd.f32 %v530, %v1945
        %v2184 = vadd.f32 %v531, %v1950
        %v2185 = vadd.f32 %v532, %v1953
        %v2186 = vadd.f32 %v533, %v1958
        %v2187 = vadd.f32 %v534, %v1961
        %v2188 = vadd.f32 %v535, %v1966
        %v2189 = vadd.f32 %v536, %v1969
        %v2190 = vadd.f32 %v537, %v1974
        %v2191 = vadd.f32 %v538, %v1977
        %v2192 = vadd.f32 %v539, %v1982
        %v2193 = vadd.f32 %v540, %v1985
        %v2194 = vadd.f32 %v541, %v1990
        %v2195 = vadd.f32 %v542, %v1993
        %v2196 = vadd.f32 %v543, %v1998
        %v2197 = vadd.f32 %v544, %v2001
        %v2198 = vadd.f32 %v545, %v2006
        %v2199 = vadd.f32 %v546, %v2009
        %v2200 = vadd.f32 %v547, %v2014
        %v2201 = vadd.f32 %v548, %v2017
        %v2202 = vadd.f32 %v549, %v2022
        %v2203 = vadd.f32 %v550, %v2025
        %v2204 = vadd.f32 %v551, %v2030
        %v2205 = vadd.f32 %v552, %v2033
        %v2206 = vadd.f32 %v553, %v2038
        %v2207 = vadd.f32 %v554, %v2041
        %v2208 = vadd.f32 %v555, %v2046
        %v2209 = vadd.f32 %v556, %v2049
        %v2210 = vadd.f32 %v557, %v2054
        %v2211 = vadd.f32 %v558, %v2057
        %v2212 = vadd.f32 %v559, %v2062
        %v2213 = vadd.f32 %v560, %v2065
        %v2214 = vadd.f32 %v561, %v2070
        %v2215 = vadd.f32 %v562, %v2073
        %v2216 = vadd.f32 %v563, %v2078
        %v2217 = vadd.f32 %v564, %v2081
        %v2218 = vadd.f32 %v565, %v2086
        %v2219 = vadd.f32 %v566, %v2089
        %vm2220 = vcmask 523264
        %2221 = vst.msk [vmem:[#allocation2] sm:$0xff] %vm2220, %v2092
        %2222 = vst.msk [vmem:[#allocation2 + $0x8] sm:$0xff] %vm2220, %v2093
        %2223 = vst.msk [vmem:[#allocation2 + $0x10] sm:$0xff] %vm2220, %v2094
        %2224 = vst.msk [vmem:[#allocation2 + $0x18] sm:$0xff] %vm2220, %v2095
        %2225 = vst.msk [vmem:[#allocation2 + $0x20] sm:$0xff] %vm2220, %v2096
        %2226 = vst.msk [vmem:[#allocation2 + $0x28] sm:$0xff] %vm2220, %v2097
        %2227 = vst.msk [vmem:[#allocation2 + $0x30] sm:$0xff] %vm2220, %v2098
        %2228 = vst.msk [vmem:[#allocation2 + $0x38] sm:$0xff] %vm2220, %v2099
        %2229 = vst.msk [vmem:[#allocation2 + $0x40] sm:$0xff] %vm2220, %v2100
        %2230 = vst.msk [vmem:[#allocation2 + $0x48] sm:$0xff] %vm2220, %v2101
        %2231 = vst.msk [vmem:[#allocation2 + $0x50] sm:$0xff] %vm2220, %v2102
        %2232 = vst.msk [vmem:[#allocation2 + $0x58] sm:$0xff] %vm2220, %v2103
        %2233 = vst.msk [vmem:[#allocation2 + $0x60] sm:$0xff] %vm2220, %v2104
        %2234 = vst.msk [vmem:[#allocation2 + $0x68] sm:$0xff] %vm2220, %v2105
        %2235 = vst.msk [vmem:[#allocation2 + $0x70] sm:$0xff] %vm2220, %v2106
        %2236 = vst.msk [vmem:[#allocation2 + $0x78] sm:$0xff] %vm2220, %v2107
        %2237 = vst.msk [vmem:[#allocation2 + $0x80] sm:$0xff] %vm2220, %v2108
        %2238 = vst.msk [vmem:[#allocation2 + $0x88] sm:$0xff] %vm2220, %v2109
        %2239 = vst.msk [vmem:[#allocation2 + $0x90] sm:$0xff] %vm2220, %v2110
        %2240 = vst.msk [vmem:[#allocation2 + $0x98] sm:$0xff] %vm2220, %v2111
        %2241 = vst.msk [vmem:[#allocation2 + $0xa0] sm:$0xff] %vm2220, %v2112
        %2242 = vst.msk [vmem:[#allocation2 + $0xa8] sm:$0xff] %vm2220, %v2113
        %2243 = vst.msk [vmem:[#allocation2 + $0xb0] sm:$0xff] %vm2220, %v2114
        %2244 = vst.msk [vmem:[#allocation2 + $0xb8] sm:$0xff] %vm2220, %v2115
        %2245 = vst.msk [vmem:[#allocation2 + $0xc0] sm:$0xff] %vm2220, %v2116
        %2246 = vst.msk [vmem:[#allocation2 + $0xc8] sm:$0xff] %vm2220, %v2117
        %2247 = vst.msk [vmem:[#allocation2 + $0xd0] sm:$0xff] %vm2220, %v2118
        %2248 = vst.msk [vmem:[#allocation2 + $0xd8] sm:$0xff] %vm2220, %v2119
        %2249 = vst.msk [vmem:[#allocation2 + $0xe0] sm:$0xff] %vm2220, %v2120
        %2250 = vst.msk [vmem:[#allocation2 + $0xe8] sm:$0xff] %vm2220, %v2121
        %2251 = vst.msk [vmem:[#allocation2 + $0xf0] sm:$0xff] %vm2220, %v2122
        %2252 = vst.msk [vmem:[#allocation2 + $0xf8] sm:$0xff] %vm2220, %v2123
        %2253 = vst.msk [vmem:[#allocation2 + $0x100] sm:$0xff] %vm2220, %v2124
        %2254 = vst.msk [vmem:[#allocation2 + $0x108] sm:$0xff] %vm2220, %v2125
        %2255 = vst.msk [vmem:[#allocation2 + $0x110] sm:$0xff] %vm2220, %v2126
        %2256 = vst.msk [vmem:[#allocation2 + $0x118] sm:$0xff] %vm2220, %v2127
        %2257 = vst.msk [vmem:[#allocation2 + $0x120] sm:$0xff] %vm2220, %v2128
        %2258 = vst.msk [vmem:[#allocation2 + $0x128] sm:$0xff] %vm2220, %v2129
        %2259 = vst.msk [vmem:[#allocation2 + $0x130] sm:$0xff] %vm2220, %v2130
        %2260 = vst.msk [vmem:[#allocation2 + $0x138] sm:$0xff] %vm2220, %v2131
        %2261 = vst.msk [vmem:[#allocation2 + $0x140] sm:$0xff] %vm2220, %v2132
        %2262 = vst.msk [vmem:[#allocation2 + $0x148] sm:$0xff] %vm2220, %v2133
        %2263 = vst.msk [vmem:[#allocation2 + $0x150] sm:$0xff] %vm2220, %v2134
        %2264 = vst.msk [vmem:[#allocation2 + $0x158] sm:$0xff] %vm2220, %v2135
        %2265 = vst.msk [vmem:[#allocation2 + $0x160] sm:$0xff] %vm2220, %v2136
        %2266 = vst.msk [vmem:[#allocation2 + $0x168] sm:$0xff] %vm2220, %v2137
        %2267 = vst.msk [vmem:[#allocation2 + $0x170] sm:$0xff] %vm2220, %v2138
        %2268 = vst.msk [vmem:[#allocation2 + $0x178] sm:$0xff] %vm2220, %v2139
        %2269 = vst.msk [vmem:[#allocation2 + $0x180] sm:$0xff] %vm2220, %v2140
        %2270 = vst.msk [vmem:[#allocation2 + $0x188] sm:$0xff] %vm2220, %v2141
        %2271 = vst.msk [vmem:[#allocation2 + $0x190] sm:$0xff] %vm2220, %v2142
        %2272 = vst.msk [vmem:[#allocation2 + $0x198] sm:$0xff] %vm2220, %v2143
        %2273 = vst.msk [vmem:[#allocation2 + $0x1a0] sm:$0xff] %vm2220, %v2144
        %2274 = vst.msk [vmem:[#allocation2 + $0x1a8] sm:$0xff] %vm2220, %v2145
        %2275 = vst.msk [vmem:[#allocation2 + $0x1b0] sm:$0xff] %vm2220, %v2146
        %2276 = vst.msk [vmem:[#allocation2 + $0x1b8] sm:$0xff] %vm2220, %v2147
        %2277 = vst.msk [vmem:[#allocation2 + $0x1c0] sm:$0xff] %vm2220, %v2148
        %2278 = vst.msk [vmem:[#allocation2 + $0x1c8] sm:$0xff] %vm2220, %v2149
        %2279 = vst.msk [vmem:[#allocation2 + $0x1d0] sm:$0xff] %vm2220, %v2150
        %2280 = vst.msk [vmem:[#allocation2 + $0x1d8] sm:$0xff] %vm2220, %v2151
        %2281 = vst.msk [vmem:[#allocation2 + $0x1e0] sm:$0xff] %vm2220, %v2152
        %2282 = vst.msk [vmem:[#allocation2 + $0x1e8] sm:$0xff] %vm2220, %v2153
        %2283 = vst.msk [vmem:[#allocation2 + $0x1f0] sm:$0xff] %vm2220, %v2154
        %2284 = vst.msk [vmem:[#allocation2 + $0x1f8] sm:$0xff] %vm2220, %v2155
        %2285 = vst.msk [vmem:[#allocation2 + $0x200] sm:$0xff] %vm2220, %v2156
        %2286 = vst.msk [vmem:[#allocation2 + $0x208] sm:$0xff] %vm2220, %v2157
        %2287 = vst.msk [vmem:[#allocation2 + $0x210] sm:$0xff] %vm2220, %v2158
        %2288 = vst.msk [vmem:[#allocation2 + $0x218] sm:$0xff] %vm2220, %v2159
        %2289 = vst.msk [vmem:[#allocation2 + $0x220] sm:$0xff] %vm2220, %v2160
        %2290 = vst.msk [vmem:[#allocation2 + $0x228] sm:$0xff] %vm2220, %v2161
        %2291 = vst.msk [vmem:[#allocation2 + $0x230] sm:$0xff] %vm2220, %v2162
        %2292 = vst.msk [vmem:[#allocation2 + $0x238] sm:$0xff] %vm2220, %v2163
        %2293 = vst.msk [vmem:[#allocation2 + $0x240] sm:$0xff] %vm2220, %v2164
        %2294 = vst.msk [vmem:[#allocation2 + $0x248] sm:$0xff] %vm2220, %v2165
        %2295 = vst.msk [vmem:[#allocation2 + $0x250] sm:$0xff] %vm2220, %v2166
        %2296 = vst.msk [vmem:[#allocation2 + $0x258] sm:$0xff] %vm2220, %v2167
        %2297 = vst.msk [vmem:[#allocation2 + $0x260] sm:$0xff] %vm2220, %v2168
        %2298 = vst.msk [vmem:[#allocation2 + $0x268] sm:$0xff] %vm2220, %v2169
        %2299 = vst.msk [vmem:[#allocation2 + $0x270] sm:$0xff] %vm2220, %v2170
        %2300 = vst.msk [vmem:[#allocation2 + $0x278] sm:$0xff] %vm2220, %v2171
        %2301 = vst.msk [vmem:[#allocation2 + $0x280] sm:$0xff] %vm2220, %v2172
        %2302 = vst.msk [vmem:[#allocation2 + $0x288] sm:$0xff] %vm2220, %v2173
        %2303 = vst.msk [vmem:[#allocation2 + $0x290] sm:$0xff] %vm2220, %v2174
        %2304 = vst.msk [vmem:[#allocation2 + $0x298] sm:$0xff] %vm2220, %v2175
        %2305 = vst.msk [vmem:[#allocation2 + $0x2a0] sm:$0xff] %vm2220, %v2176
        %2306 = vst.msk [vmem:[#allocation2 + $0x2a8] sm:$0xff] %vm2220, %v2177
        %2307 = vst.msk [vmem:[#allocation2 + $0x2b0] sm:$0xff] %vm2220, %v2178
        %2308 = vst.msk [vmem:[#allocation2 + $0x2b8] sm:$0xff] %vm2220, %v2179
        %2309 = vst.msk [vmem:[#allocation2 + $0x2c0] sm:$0xff] %vm2220, %v2180
        %2310 = vst.msk [vmem:[#allocation2 + $0x2c8] sm:$0xff] %vm2220, %v2181
        %2311 = vst.msk [vmem:[#allocation2 + $0x2d0] sm:$0xff] %vm2220, %v2182
        %2312 = vst.msk [vmem:[#allocation2 + $0x2d8] sm:$0xff] %vm2220, %v2183
        %2313 = vst.msk [vmem:[#allocation2 + $0x2e0] sm:$0xff] %vm2220, %v2184
        %2314 = vst.msk [vmem:[#allocation2 + $0x2e8] sm:$0xff] %vm2220, %v2185
        %2315 = vst.msk [vmem:[#allocation2 + $0x2f0] sm:$0xff] %vm2220, %v2186
        %2316 = vst.msk [vmem:[#allocation2 + $0x2f8] sm:$0xff] %vm2220, %v2187
        %2317 = vst.msk [vmem:[#allocation2 + $0x300] sm:$0xff] %vm2220, %v2188
        %2318 = vst.msk [vmem:[#allocation2 + $0x308] sm:$0xff] %vm2220, %v2189
        %2319 = vst.msk [vmem:[#allocation2 + $0x310] sm:$0xff] %vm2220, %v2190
        %2320 = vst.msk [vmem:[#allocation2 + $0x318] sm:$0xff] %vm2220, %v2191
        %2321 = vst.msk [vmem:[#allocation2 + $0x320] sm:$0xff] %vm2220, %v2192
        %2322 = vst.msk [vmem:[#allocation2 + $0x328] sm:$0xff] %vm2220, %v2193
        %2323 = vst.msk [vmem:[#allocation2 + $0x330] sm:$0xff] %vm2220, %v2194
        %2324 = vst.msk [vmem:[#allocation2 + $0x338] sm:$0xff] %vm2220, %v2195
        %2325 = vst.msk [vmem:[#allocation2 + $0x340] sm:$0xff] %vm2220, %v2196
        %2326 = vst.msk [vmem:[#allocation2 + $0x348] sm:$0xff] %vm2220, %v2197
        %2327 = vst.msk [vmem:[#allocation2 + $0x350] sm:$0xff] %vm2220, %v2198
        %2328 = vst.msk [vmem:[#allocation2 + $0x358] sm:$0xff] %vm2220, %v2199
        %2329 = vst.msk [vmem:[#allocation2 + $0x360] sm:$0xff] %vm2220, %v2200
        %2330 = vst.msk [vmem:[#allocation2 + $0x368] sm:$0xff] %vm2220, %v2201
        %2331 = vst.msk [vmem:[#allocation2 + $0x370] sm:$0xff] %vm2220, %v2202
        %2332 = vst.msk [vmem:[#allocation2 + $0x378] sm:$0xff] %vm2220, %v2203
        %2333 = vst.msk [vmem:[#allocation2 + $0x380] sm:$0xff] %vm2220, %v2204
        %2334 = vst.msk [vmem:[#allocation2 + $0x388] sm:$0xff] %vm2220, %v2205
        %2335 = vst.msk [vmem:[#allocation2 + $0x390] sm:$0xff] %vm2220, %v2206
        %2336 = vst.msk [vmem:[#allocation2 + $0x398] sm:$0xff] %vm2220, %v2207
        %2337 = vst.msk [vmem:[#allocation2 + $0x3a0] sm:$0xff] %vm2220, %v2208
        %2338 = vst.msk [vmem:[#allocation2 + $0x3a8] sm:$0xff] %vm2220, %v2209
        %2339 = vst.msk [vmem:[#allocation2 + $0x3b0] sm:$0xff] %vm2220, %v2210
        %2340 = vst.msk [vmem:[#allocation2 + $0x3b8] sm:$0xff] %vm2220, %v2211
        %2341 = vst.msk [vmem:[#allocation2 + $0x3c0] sm:$0xff] %vm2220, %v2212
        %2342 = vst.msk [vmem:[#allocation2 + $0x3c8] sm:$0xff] %vm2220, %v2213
        %2343 = vst.msk [vmem:[#allocation2 + $0x3d0] sm:$0xff] %vm2220, %v2214
        %2344 = vst.msk [vmem:[#allocation2 + $0x3d8] sm:$0xff] %vm2220, %v2215
        %2345 = vst.msk [vmem:[#allocation2 + $0x3e0] sm:$0xff] %vm2220, %v2216
        %2346 = vst.msk [vmem:[#allocation2 + $0x3e8] sm:$0xff] %vm2220, %v2217
        %2347 = vst.msk [vmem:[#allocation2 + $0x3f0] sm:$0xff] %vm2220, %v2218
        %2348 = vst.msk [vmem:[#allocation2 + $0x3f8] sm:$0xff] %vm2220, %v2219
        // Predicated region
        $region53: #{tpu_custom_call.1} parent=35 // pred_check
          %p2349 = pneg %p306
        $region54: #{tpu_custom_call.1} parent=35 // pred_check_branch
          %2351 = sbr.rel (%p2349) target = $region56
        $region55: #{tpu_custom_call.1} parent=35 // pred_region
          %v2352 = vld [vmem:[#allocation2] sm:$0xff]
          %v2353 = vld [vmem:[#allocation2 + $0x8] sm:$0xff]
          %v2354 = vld [vmem:[#allocation2 + $0x10] sm:$0xff]
          %v2355 = vld [vmem:[#allocation2 + $0x18] sm:$0xff]
          %v2356 = vld [vmem:[#allocation2 + $0x20] sm:$0xff]
          %v2357 = vld [vmem:[#allocation2 + $0x28] sm:$0xff]
          %v2358 = vld [vmem:[#allocation2 + $0x30] sm:$0xff]
          %v2359 = vld [vmem:[#allocation2 + $0x38] sm:$0xff]
          %v2360 = vld [vmem:[#allocation2 + $0x40] sm:$0xff]
          %v2361 = vld [vmem:[#allocation2 + $0x48] sm:$0xff]
          %v2362 = vld [vmem:[#allocation2 + $0x50] sm:$0xff]
          %v2363 = vld [vmem:[#allocation2 + $0x58] sm:$0xff]
          %v2364 = vld [vmem:[#allocation2 + $0x60] sm:$0xff]
          %v2365 = vld [vmem:[#allocation2 + $0x68] sm:$0xff]
          %v2366 = vld [vmem:[#allocation2 + $0x70] sm:$0xff]
          %v2367 = vld [vmem:[#allocation2 + $0x78] sm:$0xff]
          %v2368 = vld [vmem:[#allocation2 + $0x80] sm:$0xff]
          %v2369 = vld [vmem:[#allocation2 + $0x88] sm:$0xff]
          %v2370 = vld [vmem:[#allocation2 + $0x90] sm:$0xff]
          %v2371 = vld [vmem:[#allocation2 + $0x98] sm:$0xff]
          %v2372 = vld [vmem:[#allocation2 + $0xa0] sm:$0xff]
          %v2373 = vld [vmem:[#allocation2 + $0xa8] sm:$0xff]
          %v2374 = vld [vmem:[#allocation2 + $0xb0] sm:$0xff]
          %v2375 = vld [vmem:[#allocation2 + $0xb8] sm:$0xff]
          %v2376 = vld [vmem:[#allocation2 + $0xc0] sm:$0xff]
          %v2377 = vld [vmem:[#allocation2 + $0xc8] sm:$0xff]
          %v2378 = vld [vmem:[#allocation2 + $0xd0] sm:$0xff]
          %v2379 = vld [vmem:[#allocation2 + $0xd8] sm:$0xff]
          %v2380 = vld [vmem:[#allocation2 + $0xe0] sm:$0xff]
          %v2381 = vld [vmem:[#allocation2 + $0xe8] sm:$0xff]
          %v2382 = vld [vmem:[#allocation2 + $0xf0] sm:$0xff]
          %v2383 = vld [vmem:[#allocation2 + $0xf8] sm:$0xff]
          %v2384 = vld [vmem:[#allocation2 + $0x100] sm:$0xff]
          %v2385 = vld [vmem:[#allocation2 + $0x108] sm:$0xff]
          %v2386 = vld [vmem:[#allocation2 + $0x110] sm:$0xff]
          %v2387 = vld [vmem:[#allocation2 + $0x118] sm:$0xff]
          %v2388 = vld [vmem:[#allocation2 + $0x120] sm:$0xff]
          %v2389 = vld [vmem:[#allocation2 + $0x128] sm:$0xff]
          %v2390 = vld [vmem:[#allocation2 + $0x130] sm:$0xff]
          %v2391 = vld [vmem:[#allocation2 + $0x138] sm:$0xff]
          %v2392 = vld [vmem:[#allocation2 + $0x140] sm:$0xff]
          %v2393 = vld [vmem:[#allocation2 + $0x148] sm:$0xff]
          %v2394 = vld [vmem:[#allocation2 + $0x150] sm:$0xff]
          %v2395 = vld [vmem:[#allocation2 + $0x158] sm:$0xff]
          %v2396 = vld [vmem:[#allocation2 + $0x160] sm:$0xff]
          %v2397 = vld [vmem:[#allocation2 + $0x168] sm:$0xff]
          %v2398 = vld [vmem:[#allocation2 + $0x170] sm:$0xff]
          %v2399 = vld [vmem:[#allocation2 + $0x178] sm:$0xff]
          %v2400 = vld [vmem:[#allocation2 + $0x180] sm:$0xff]
          %v2401 = vld [vmem:[#allocation2 + $0x188] sm:$0xff]
          %v2402 = vld [vmem:[#allocation2 + $0x190] sm:$0xff]
          %v2403 = vld [vmem:[#allocation2 + $0x198] sm:$0xff]
          %v2404 = vld [vmem:[#allocation2 + $0x1a0] sm:$0xff]
          %v2405 = vld [vmem:[#allocation2 + $0x1a8] sm:$0xff]
          %v2406 = vld [vmem:[#allocation2 + $0x1b0] sm:$0xff]
          %v2407 = vld [vmem:[#allocation2 + $0x1b8] sm:$0xff]
          %v2408 = vld [vmem:[#allocation2 + $0x1c0] sm:$0xff]
          %v2409 = vld [vmem:[#allocation2 + $0x1c8] sm:$0xff]
          %v2410 = vld [vmem:[#allocation2 + $0x1d0] sm:$0xff]
          %v2411 = vld [vmem:[#allocation2 + $0x1d8] sm:$0xff]
          %v2412 = vld [vmem:[#allocation2 + $0x1e0] sm:$0xff]
          %v2413 = vld [vmem:[#allocation2 + $0x1e8] sm:$0xff]
          %v2414 = vld [vmem:[#allocation2 + $0x1f0] sm:$0xff]
          %v2415 = vld [vmem:[#allocation2 + $0x1f8] sm:$0xff]
          %v2416 = vld [vmem:[#allocation2 + $0x200] sm:$0xff]
          %v2417 = vld [vmem:[#allocation2 + $0x208] sm:$0xff]
          %v2418 = vld [vmem:[#allocation2 + $0x210] sm:$0xff]
          %v2419 = vld [vmem:[#allocation2 + $0x218] sm:$0xff]
          %v2420 = vld [vmem:[#allocation2 + $0x220] sm:$0xff]
          %v2421 = vld [vmem:[#allocation2 + $0x228] sm:$0xff]
          %v2422 = vld [vmem:[#allocation2 + $0x230] sm:$0xff]
          %v2423 = vld [vmem:[#allocation2 + $0x238] sm:$0xff]
          %v2424 = vld [vmem:[#allocation2 + $0x240] sm:$0xff]
          %v2425 = vld [vmem:[#allocation2 + $0x248] sm:$0xff]
          %v2426 = vld [vmem:[#allocation2 + $0x250] sm:$0xff]
          %v2427 = vld [vmem:[#allocation2 + $0x258] sm:$0xff]
          %v2428 = vld [vmem:[#allocation2 + $0x260] sm:$0xff]
          %v2429 = vld [vmem:[#allocation2 + $0x268] sm:$0xff]
          %v2430 = vld [vmem:[#allocation2 + $0x270] sm:$0xff]
          %v2431 = vld [vmem:[#allocation2 + $0x278] sm:$0xff]
          %v2432 = vld [vmem:[#allocation2 + $0x280] sm:$0xff]
          %v2433 = vld [vmem:[#allocation2 + $0x288] sm:$0xff]
          %v2434 = vld [vmem:[#allocation2 + $0x290] sm:$0xff]
          %v2435 = vld [vmem:[#allocation2 + $0x298] sm:$0xff]
          %v2436 = vld [vmem:[#allocation2 + $0x2a0] sm:$0xff]
          %v2437 = vld [vmem:[#allocation2 + $0x2a8] sm:$0xff]
          %v2438 = vld [vmem:[#allocation2 + $0x2b0] sm:$0xff]
          %v2439 = vld [vmem:[#allocation2 + $0x2b8] sm:$0xff]
          %v2440 = vld [vmem:[#allocation2 + $0x2c0] sm:$0xff]
          %v2441 = vld [vmem:[#allocation2 + $0x2c8] sm:$0xff]
          %v2442 = vld [vmem:[#allocation2 + $0x2d0] sm:$0xff]
          %v2443 = vld [vmem:[#allocation2 + $0x2d8] sm:$0xff]
          %v2444 = vld [vmem:[#allocation2 + $0x2e0] sm:$0xff]
          %v2445 = vld [vmem:[#allocation2 + $0x2e8] sm:$0xff]
          %v2446 = vld [vmem:[#allocation2 + $0x2f0] sm:$0xff]
          %v2447 = vld [vmem:[#allocation2 + $0x2f8] sm:$0xff]
          %v2448 = vld [vmem:[#allocation2 + $0x300] sm:$0xff]
          %v2449 = vld [vmem:[#allocation2 + $0x308] sm:$0xff]
          %v2450 = vld [vmem:[#allocation2 + $0x310] sm:$0xff]
          %v2451 = vld [vmem:[#allocation2 + $0x318] sm:$0xff]
          %v2452 = vld [vmem:[#allocation2 + $0x320] sm:$0xff]
          %v2453 = vld [vmem:[#allocation2 + $0x328] sm:$0xff]
          %v2454 = vld [vmem:[#allocation2 + $0x330] sm:$0xff]
          %v2455 = vld [vmem:[#allocation2 + $0x338] sm:$0xff]
          %v2456 = vld [vmem:[#allocation2 + $0x340] sm:$0xff]
          %v2457 = vld [vmem:[#allocation2 + $0x348] sm:$0xff]
          %v2458 = vld [vmem:[#allocation2 + $0x350] sm:$0xff]
          %v2459 = vld [vmem:[#allocation2 + $0x358] sm:$0xff]
          %v2460 = vld [vmem:[#allocation2 + $0x360] sm:$0xff]
          %v2461 = vld [vmem:[#allocation2 + $0x368] sm:$0xff]
          %v2462 = vld [vmem:[#allocation2 + $0x370] sm:$0xff]
          %v2463 = vld [vmem:[#allocation2 + $0x378] sm:$0xff]
          %v2464 = vld [vmem:[#allocation2 + $0x380] sm:$0xff]
          %v2465 = vld [vmem:[#allocation2 + $0x388] sm:$0xff]
          %v2466 = vld [vmem:[#allocation2 + $0x390] sm:$0xff]
          %v2467 = vld [vmem:[#allocation2 + $0x398] sm:$0xff]
          %v2468 = vld [vmem:[#allocation2 + $0x3a0] sm:$0xff]
          %v2469 = vld [vmem:[#allocation2 + $0x3a8] sm:$0xff]
          %v2470 = vld [vmem:[#allocation2 + $0x3b0] sm:$0xff]
          %v2471 = vld [vmem:[#allocation2 + $0x3b8] sm:$0xff]
          %v2472 = vld [vmem:[#allocation2 + $0x3c0] sm:$0xff]
          %v2473 = vld [vmem:[#allocation2 + $0x3c8] sm:$0xff]
          %v2474 = vld [vmem:[#allocation2 + $0x3d0] sm:$0xff]
          %v2475 = vld [vmem:[#allocation2 + $0x3d8] sm:$0xff]
          %v2476 = vld [vmem:[#allocation2 + $0x3e0] sm:$0xff]
          %v2477 = vld [vmem:[#allocation2 + $0x3e8] sm:$0xff]
          %v2478 = vld [vmem:[#allocation2 + $0x3f0] sm:$0xff]
          %v2479 = vld [vmem:[#allocation2 + $0x3f8] sm:$0xff]
          %v2480 = vld [vmem:[#allocation6] sm:$0x1]
          %v2482 = vlaneseq
          %v2483 = vshrl.u32 %v2482, 7
          %v2484 = vsub.s32 0, %v2483
          %v2485 = vrot.slane %v2480, %v2484
          %v2487 = vmul.f32 %v2352, %v2485
          %v2488 = vmul.f32 %v2353, %v2485
          %v2489 = vmul.f32 %v2354, %v2485
          %v2490 = vmul.f32 %v2355, %v2485
          %v2491 = vmul.f32 %v2356, %v2485
          %v2492 = vmul.f32 %v2357, %v2485
          %v2493 = vmul.f32 %v2358, %v2485
          %v2494 = vmul.f32 %v2359, %v2485
          %v2495 = vmul.f32 %v2360, %v2485
          %v2496 = vmul.f32 %v2361, %v2485
          %v2497 = vmul.f32 %v2362, %v2485
          %v2498 = vmul.f32 %v2363, %v2485
          %v2499 = vmul.f32 %v2364, %v2485
          %v2500 = vmul.f32 %v2365, %v2485
          %v2501 = vmul.f32 %v2366, %v2485
          %v2502 = vmul.f32 %v2367, %v2485
          %v2503 = vmul.f32 %v2368, %v2485
          %v2504 = vmul.f32 %v2369, %v2485
          %v2505 = vmul.f32 %v2370, %v2485
          %v2506 = vmul.f32 %v2371, %v2485
          %v2507 = vmul.f32 %v2372, %v2485
          %v2508 = vmul.f32 %v2373, %v2485
          %v2509 = vmul.f32 %v2374, %v2485
          %v2510 = vmul.f32 %v2375, %v2485
          %v2511 = vmul.f32 %v2376, %v2485
          %v2512 = vmul.f32 %v2377, %v2485
          %v2513 = vmul.f32 %v2378, %v2485
          %v2514 = vmul.f32 %v2379, %v2485
          %v2515 = vmul.f32 %v2380, %v2485
          %v2516 = vmul.f32 %v2381, %v2485
          %v2517 = vmul.f32 %v2382, %v2485
          %v2518 = vmul.f32 %v2383, %v2485
          %v2519 = vmul.f32 %v2384, %v2485
          %v2520 = vmul.f32 %v2385, %v2485
          %v2521 = vmul.f32 %v2386, %v2485
          %v2522 = vmul.f32 %v2387, %v2485
          %v2523 = vmul.f32 %v2388, %v2485
          %v2524 = vmul.f32 %v2389, %v2485
          %v2525 = vmul.f32 %v2390, %v2485
          %v2526 = vmul.f32 %v2391, %v2485
          %v2527 = vmul.f32 %v2392, %v2485
          %v2528 = vmul.f32 %v2393, %v2485
          %v2529 = vmul.f32 %v2394, %v2485
          %v2530 = vmul.f32 %v2395, %v2485
          %v2531 = vmul.f32 %v2396, %v2485
          %v2532 = vmul.f32 %v2397, %v2485
          %v2533 = vmul.f32 %v2398, %v2485
          %v2534 = vmul.f32 %v2399, %v2485
          %v2535 = vmul.f32 %v2400, %v2485
          %v2536 = vmul.f32 %v2401, %v2485
          %v2537 = vmul.f32 %v2402, %v2485
          %v2538 = vmul.f32 %v2403, %v2485
          %v2539 = vmul.f32 %v2404, %v2485
          %v2540 = vmul.f32 %v2405, %v2485
          %v2541 = vmul.f32 %v2406, %v2485
          %v2542 = vmul.f32 %v2407, %v2485
          %v2543 = vmul.f32 %v2408, %v2485
          %v2544 = vmul.f32 %v2409, %v2485
          %v2545 = vmul.f32 %v2410, %v2485
          %v2546 = vmul.f32 %v2411, %v2485
          %v2547 = vmul.f32 %v2412, %v2485
          %v2548 = vmul.f32 %v2413, %v2485
          %v2549 = vmul.f32 %v2414, %v2485
          %v2550 = vmul.f32 %v2415, %v2485
          %v2551 = vmul.f32 %v2416, %v2485
          %v2552 = vmul.f32 %v2417, %v2485
          %v2553 = vmul.f32 %v2418, %v2485
          %v2554 = vmul.f32 %v2419, %v2485
          %v2555 = vmul.f32 %v2420, %v2485
          %v2556 = vmul.f32 %v2421, %v2485
          %v2557 = vmul.f32 %v2422, %v2485
          %v2558 = vmul.f32 %v2423, %v2485
          %v2559 = vmul.f32 %v2424, %v2485
          %v2560 = vmul.f32 %v2425, %v2485
          %v2561 = vmul.f32 %v2426, %v2485
          %v2562 = vmul.f32 %v2427, %v2485
          %v2563 = vmul.f32 %v2428, %v2485
          %v2564 = vmul.f32 %v2429, %v2485
          %v2565 = vmul.f32 %v2430, %v2485
          %v2566 = vmul.f32 %v2431, %v2485
          %v2567 = vmul.f32 %v2432, %v2485
          %v2568 = vmul.f32 %v2433, %v2485
          %v2569 = vmul.f32 %v2434, %v2485
          %v2570 = vmul.f32 %v2435, %v2485
          %v2571 = vmul.f32 %v2436, %v2485
          %v2572 = vmul.f32 %v2437, %v2485
          %v2573 = vmul.f32 %v2438, %v2485
          %v2574 = vmul.f32 %v2439, %v2485
          %v2575 = vmul.f32 %v2440, %v2485
          %v2576 = vmul.f32 %v2441, %v2485
          %v2577 = vmul.f32 %v2442, %v2485
          %v2578 = vmul.f32 %v2443, %v2485
          %v2579 = vmul.f32 %v2444, %v2485
          %v2580 = vmul.f32 %v2445, %v2485
          %v2581 = vmul.f32 %v2446, %v2485
          %v2582 = vmul.f32 %v2447, %v2485
          %v2583 = vmul.f32 %v2448, %v2485
          %v2584 = vmul.f32 %v2449, %v2485
          %v2585 = vmul.f32 %v2450, %v2485
          %v2586 = vmul.f32 %v2451, %v2485
          %v2587 = vmul.f32 %v2452, %v2485
          %v2588 = vmul.f32 %v2453, %v2485
          %v2589 = vmul.f32 %v2454, %v2485
          %v2590 = vmul.f32 %v2455, %v2485
          %v2591 = vmul.f32 %v2456, %v2485
          %v2592 = vmul.f32 %v2457, %v2485
          %v2593 = vmul.f32 %v2458, %v2485
          %v2594 = vmul.f32 %v2459, %v2485
          %v2595 = vmul.f32 %v2460, %v2485
          %v2596 = vmul.f32 %v2461, %v2485
          %v2597 = vmul.f32 %v2462, %v2485
          %v2598 = vmul.f32 %v2463, %v2485
          %v2599 = vmul.f32 %v2464, %v2485
          %v2600 = vmul.f32 %v2465, %v2485
          %v2601 = vmul.f32 %v2466, %v2485
          %v2602 = vmul.f32 %v2467, %v2485
          %v2603 = vmul.f32 %v2468, %v2485
          %v2604 = vmul.f32 %v2469, %v2485
          %v2605 = vmul.f32 %v2470, %v2485
          %v2606 = vmul.f32 %v2471, %v2485
          %v2607 = vmul.f32 %v2472, %v2485
          %v2608 = vmul.f32 %v2473, %v2485
          %v2609 = vmul.f32 %v2474, %v2485
          %v2610 = vmul.f32 %v2475, %v2485
          %v2611 = vmul.f32 %v2476, %v2485
          %v2612 = vmul.f32 %v2477, %v2485
          %v2613 = vmul.f32 %v2478, %v2485
          %v2614 = vmul.f32 %v2479, %v2485
          %v2615 = vld [vmem:[#allocation8] sm:$0x1]
          %v2617 = vlaneseq
          %v2618 = vshrl.u32 %v2617, 7
          %v2619 = vsub.s32 0, %v2618
          %v2620 = vrot.slane %v2615, %v2619
          %v2622 = vadd.f32 %v2487, %v2620
          %v2623 = vadd.f32 %v2488, %v2620
          %v2624 = vadd.f32 %v2489, %v2620
          %v2625 = vadd.f32 %v2490, %v2620
          %v2626 = vadd.f32 %v2491, %v2620
          %v2627 = vadd.f32 %v2492, %v2620
          %v2628 = vadd.f32 %v2493, %v2620
          %v2629 = vadd.f32 %v2494, %v2620
          %v2630 = vadd.f32 %v2495, %v2620
          %v2631 = vadd.f32 %v2496, %v2620
          %v2632 = vadd.f32 %v2497, %v2620
          %v2633 = vadd.f32 %v2498, %v2620
          %v2634 = vadd.f32 %v2499, %v2620
          %v2635 = vadd.f32 %v2500, %v2620
          %v2636 = vadd.f32 %v2501, %v2620
          %v2637 = vadd.f32 %v2502, %v2620
          %v2638 = vadd.f32 %v2503, %v2620
          %v2639 = vadd.f32 %v2504, %v2620
          %v2640 = vadd.f32 %v2505, %v2620
          %v2641 = vadd.f32 %v2506, %v2620
          %v2642 = vadd.f32 %v2507, %v2620
          %v2643 = vadd.f32 %v2508, %v2620
          %v2644 = vadd.f32 %v2509, %v2620
          %v2645 = vadd.f32 %v2510, %v2620
          %v2646 = vadd.f32 %v2511, %v2620
          %v2647 = vadd.f32 %v2512, %v2620
          %v2648 = vadd.f32 %v2513, %v2620
          %v2649 = vadd.f32 %v2514, %v2620
          %v2650 = vadd.f32 %v2515, %v2620
          %v2651 = vadd.f32 %v2516, %v2620
          %v2652 = vadd.f32 %v2517, %v2620
          %v2653 = vadd.f32 %v2518, %v2620
          %v2654 = vadd.f32 %v2519, %v2620
          %v2655 = vadd.f32 %v2520, %v2620
          %v2656 = vadd.f32 %v2521, %v2620
          %v2657 = vadd.f32 %v2522, %v2620
          %v2658 = vadd.f32 %v2523, %v2620
          %v2659 = vadd.f32 %v2524, %v2620
          %v2660 = vadd.f32 %v2525, %v2620
          %v2661 = vadd.f32 %v2526, %v2620
          %v2662 = vadd.f32 %v2527, %v2620
          %v2663 = vadd.f32 %v2528, %v2620
          %v2664 = vadd.f32 %v2529, %v2620
          %v2665 = vadd.f32 %v2530, %v2620
          %v2666 = vadd.f32 %v2531, %v2620
          %v2667 = vadd.f32 %v2532, %v2620
          %v2668 = vadd.f32 %v2533, %v2620
          %v2669 = vadd.f32 %v2534, %v2620
          %v2670 = vadd.f32 %v2535, %v2620
          %v2671 = vadd.f32 %v2536, %v2620
          %v2672 = vadd.f32 %v2537, %v2620
          %v2673 = vadd.f32 %v2538, %v2620
          %v2674 = vadd.f32 %v2539, %v2620
          %v2675 = vadd.f32 %v2540, %v2620
          %v2676 = vadd.f32 %v2541, %v2620
          %v2677 = vadd.f32 %v2542, %v2620
          %v2678 = vadd.f32 %v2543, %v2620
          %v2679 = vadd.f32 %v2544, %v2620
          %v2680 = vadd.f32 %v2545, %v2620
          %v2681 = vadd.f32 %v2546, %v2620
          %v2682 = vadd.f32 %v2547, %v2620
          %v2683 = vadd.f32 %v2548, %v2620
          %v2684 = vadd.f32 %v2549, %v2620
          %v2685 = vadd.f32 %v2550, %v2620
          %v2686 = vadd.f32 %v2551, %v2620
          %v2687 = vadd.f32 %v2552, %v2620
          %v2688 = vadd.f32 %v2553, %v2620
          %v2689 = vadd.f32 %v2554, %v2620
          %v2690 = vadd.f32 %v2555, %v2620
          %v2691 = vadd.f32 %v2556, %v2620
          %v2692 = vadd.f32 %v2557, %v2620
          %v2693 = vadd.f32 %v2558, %v2620
          %v2694 = vadd.f32 %v2559, %v2620
          %v2695 = vadd.f32 %v2560, %v2620
          %v2696 = vadd.f32 %v2561, %v2620
          %v2697 = vadd.f32 %v2562, %v2620
          %v2698 = vadd.f32 %v2563, %v2620
          %v2699 = vadd.f32 %v2564, %v2620
          %v2700 = vadd.f32 %v2565, %v2620
          %v2701 = vadd.f32 %v2566, %v2620
          %v2702 = vadd.f32 %v2567, %v2620
          %v2703 = vadd.f32 %v2568, %v2620
          %v2704 = vadd.f32 %v2569, %v2620
          %v2705 = vadd.f32 %v2570, %v2620
          %v2706 = vadd.f32 %v2571, %v2620
          %v2707 = vadd.f32 %v2572, %v2620
          %v2708 = vadd.f32 %v2573, %v2620
          %v2709 = vadd.f32 %v2574, %v2620
          %v2710 = vadd.f32 %v2575, %v2620
          %v2711 = vadd.f32 %v2576, %v2620
          %v2712 = vadd.f32 %v2577, %v2620
          %v2713 = vadd.f32 %v2578, %v2620
          %v2714 = vadd.f32 %v2579, %v2620
          %v2715 = vadd.f32 %v2580, %v2620
          %v2716 = vadd.f32 %v2581, %v2620
          %v2717 = vadd.f32 %v2582, %v2620
          %v2718 = vadd.f32 %v2583, %v2620
          %v2719 = vadd.f32 %v2584, %v2620
          %v2720 = vadd.f32 %v2585, %v2620
          %v2721 = vadd.f32 %v2586, %v2620
          %v2722 = vadd.f32 %v2587, %v2620
          %v2723 = vadd.f32 %v2588, %v2620
          %v2724 = vadd.f32 %v2589, %v2620
          %v2725 = vadd.f32 %v2590, %v2620
          %v2726 = vadd.f32 %v2591, %v2620
          %v2727 = vadd.f32 %v2592, %v2620
          %v2728 = vadd.f32 %v2593, %v2620
          %v2729 = vadd.f32 %v2594, %v2620
          %v2730 = vadd.f32 %v2595, %v2620
          %v2731 = vadd.f32 %v2596, %v2620
          %v2732 = vadd.f32 %v2597, %v2620
          %v2733 = vadd.f32 %v2598, %v2620
          %v2734 = vadd.f32 %v2599, %v2620
          %v2735 = vadd.f32 %v2600, %v2620
          %v2736 = vadd.f32 %v2601, %v2620
          %v2737 = vadd.f32 %v2602, %v2620
          %v2738 = vadd.f32 %v2603, %v2620
          %v2739 = vadd.f32 %v2604, %v2620
          %v2740 = vadd.f32 %v2605, %v2620
          %v2741 = vadd.f32 %v2606, %v2620
          %v2742 = vadd.f32 %v2607, %v2620
          %v2743 = vadd.f32 %v2608, %v2620
          %v2744 = vadd.f32 %v2609, %v2620
          %v2745 = vadd.f32 %v2610, %v2620
          %v2746 = vadd.f32 %v2611, %v2620
          %v2747 = vadd.f32 %v2612, %v2620
          %v2748 = vadd.f32 %v2613, %v2620
          %v2749 = vadd.f32 %v2614, %v2620
          %v2750 = vmax.f32 %v2622, 0.0
          %v2751 = vmax.f32 %v2623, 0.0
          %v2752 = vmax.f32 %v2624, 0.0
          %v2753 = vmax.f32 %v2625, 0.0
          %v2754 = vmax.f32 %v2626, 0.0
          %v2755 = vmax.f32 %v2627, 0.0
          %v2756 = vmax.f32 %v2628, 0.0
          %v2757 = vmax.f32 %v2629, 0.0
          %v2758 = vmax.f32 %v2630, 0.0
          %v2759 = vmax.f32 %v2631, 0.0
          %v2760 = vmax.f32 %v2632, 0.0
          %v2761 = vmax.f32 %v2633, 0.0
          %v2762 = vmax.f32 %v2634, 0.0
          %v2763 = vmax.f32 %v2635, 0.0
          %v2764 = vmax.f32 %v2636, 0.0
          %v2765 = vmax.f32 %v2637, 0.0
          %v2766 = vmax.f32 %v2638, 0.0
          %v2767 = vmax.f32 %v2639, 0.0
          %v2768 = vmax.f32 %v2640, 0.0
          %v2769 = vmax.f32 %v2641, 0.0
          %v2770 = vmax.f32 %v2642, 0.0
          %v2771 = vmax.f32 %v2643, 0.0
          %v2772 = vmax.f32 %v2644, 0.0
          %v2773 = vmax.f32 %v2645, 0.0
          %v2774 = vmax.f32 %v2646, 0.0
          %v2775 = vmax.f32 %v2647, 0.0
          %v2776 = vmax.f32 %v2648, 0.0
          %v2777 = vmax.f32 %v2649, 0.0
          %v2778 = vmax.f32 %v2650, 0.0
          %v2779 = vmax.f32 %v2651, 0.0
          %v2780 = vmax.f32 %v2652, 0.0
          %v2781 = vmax.f32 %v2653, 0.0
          %v2782 = vmax.f32 %v2654, 0.0
          %v2783 = vmax.f32 %v2655, 0.0
          %v2784 = vmax.f32 %v2656, 0.0
          %v2785 = vmax.f32 %v2657, 0.0
          %v2786 = vmax.f32 %v2658, 0.0
          %v2787 = vmax.f32 %v2659, 0.0
          %v2788 = vmax.f32 %v2660, 0.0
          %v2789 = vmax.f32 %v2661, 0.0
          %v2790 = vmax.f32 %v2662, 0.0
          %v2791 = vmax.f32 %v2663, 0.0
          %v2792 = vmax.f32 %v2664, 0.0
          %v2793 = vmax.f32 %v2665, 0.0
          %v2794 = vmax.f32 %v2666, 0.0
          %v2795 = vmax.f32 %v2667, 0.0
          %v2796 = vmax.f32 %v2668, 0.0
          %v2797 = vmax.f32 %v2669, 0.0
          %v2798 = vmax.f32 %v2670, 0.0
          %v2799 = vmax.f32 %v2671, 0.0
          %v2800 = vmax.f32 %v2672, 0.0
          %v2801 = vmax.f32 %v2673, 0.0
          %v2802 = vmax.f32 %v2674, 0.0
          %v2803 = vmax.f32 %v2675, 0.0
          %v2804 = vmax.f32 %v2676, 0.0
          %v2805 = vmax.f32 %v2677, 0.0
          %v2806 = vmax.f32 %v2678, 0.0
          %v2807 = vmax.f32 %v2679, 0.0
          %v2808 = vmax.f32 %v2680, 0.0
          %v2809 = vmax.f32 %v2681, 0.0
          %v2810 = vmax.f32 %v2682, 0.0
          %v2811 = vmax.f32 %v2683, 0.0
          %v2812 = vmax.f32 %v2684, 0.0
          %v2813 = vmax.f32 %v2685, 0.0
          %v2814 = vmax.f32 %v2686, 0.0
          %v2815 = vmax.f32 %v2687, 0.0
          %v2816 = vmax.f32 %v2688, 0.0
          %v2817 = vmax.f32 %v2689, 0.0
          %v2818 = vmax.f32 %v2690, 0.0
          %v2819 = vmax.f32 %v2691, 0.0
          %v2820 = vmax.f32 %v2692, 0.0
          %v2821 = vmax.f32 %v2693, 0.0
          %v2822 = vmax.f32 %v2694, 0.0
          %v2823 = vmax.f32 %v2695, 0.0
          %v2824 = vmax.f32 %v2696, 0.0
          %v2825 = vmax.f32 %v2697, 0.0
          %v2826 = vmax.f32 %v2698, 0.0
          %v2827 = vmax.f32 %v2699, 0.0
          %v2828 = vmax.f32 %v2700, 0.0
          %v2829 = vmax.f32 %v2701, 0.0
          %v2830 = vmax.f32 %v2702, 0.0
          %v2831 = vmax.f32 %v2703, 0.0
          %v2832 = vmax.f32 %v2704, 0.0
          %v2833 = vmax.f32 %v2705, 0.0
          %v2834 = vmax.f32 %v2706, 0.0
          %v2835 = vmax.f32 %v2707, 0.0
          %v2836 = vmax.f32 %v2708, 0.0
          %v2837 = vmax.f32 %v2709, 0.0
          %v2838 = vmax.f32 %v2710, 0.0
          %v2839 = vmax.f32 %v2711, 0.0
          %v2840 = vmax.f32 %v2712, 0.0
          %v2841 = vmax.f32 %v2713, 0.0
          %v2842 = vmax.f32 %v2714, 0.0
          %v2843 = vmax.f32 %v2715, 0.0
          %v2844 = vmax.f32 %v2716, 0.0
          %v2845 = vmax.f32 %v2717, 0.0
          %v2846 = vmax.f32 %v2718, 0.0
          %v2847 = vmax.f32 %v2719, 0.0
          %v2848 = vmax.f32 %v2720, 0.0
          %v2849 = vmax.f32 %v2721, 0.0
          %v2850 = vmax.f32 %v2722, 0.0
          %v2851 = vmax.f32 %v2723, 0.0
          %v2852 = vmax.f32 %v2724, 0.0
          %v2853 = vmax.f32 %v2725, 0.0
          %v2854 = vmax.f32 %v2726, 0.0
          %v2855 = vmax.f32 %v2727, 0.0
          %v2856 = vmax.f32 %v2728, 0.0
          %v2857 = vmax.f32 %v2729, 0.0
          %v2858 = vmax.f32 %v2730, 0.0
          %v2859 = vmax.f32 %v2731, 0.0
          %v2860 = vmax.f32 %v2732, 0.0
          %v2861 = vmax.f32 %v2733, 0.0
          %v2862 = vmax.f32 %v2734, 0.0
          %v2863 = vmax.f32 %v2735, 0.0
          %v2864 = vmax.f32 %v2736, 0.0
          %v2865 = vmax.f32 %v2737, 0.0
          %v2866 = vmax.f32 %v2738, 0.0
          %v2867 = vmax.f32 %v2739, 0.0
          %v2868 = vmax.f32 %v2740, 0.0
          %v2869 = vmax.f32 %v2741, 0.0
          %v2870 = vmax.f32 %v2742, 0.0
          %v2871 = vmax.f32 %v2743, 0.0
          %v2872 = vmax.f32 %v2744, 0.0
          %v2873 = vmax.f32 %v2745, 0.0
          %v2874 = vmax.f32 %v2746, 0.0
          %v2875 = vmax.f32 %v2747, 0.0
          %v2876 = vmax.f32 %v2748, 0.0
          %v2877 = vmax.f32 %v2749, 0.0
          %v2878 = vpack.c.bf16 %v2751, %v2750
          %v2879 = vpack.c.bf16 %v2753, %v2752
          %v2880 = vpack.c.bf16 %v2755, %v2754
          %v2881 = vpack.c.bf16 %v2757, %v2756
          %v2882 = vpack.c.bf16 %v2759, %v2758
          %v2883 = vpack.c.bf16 %v2761, %v2760
          %v2884 = vpack.c.bf16 %v2763, %v2762
          %v2885 = vpack.c.bf16 %v2765, %v2764
          %v2886 = vpack.c.bf16 %v2767, %v2766
          %v2887 = vpack.c.bf16 %v2769, %v2768
          %v2888 = vpack.c.bf16 %v2771, %v2770
          %v2889 = vpack.c.bf16 %v2773, %v2772
          %v2890 = vpack.c.bf16 %v2775, %v2774
          %v2891 = vpack.c.bf16 %v2777, %v2776
          %v2892 = vpack.c.bf16 %v2779, %v2778
          %v2893 = vpack.c.bf16 %v2781, %v2780
          %v2894 = vpack.c.bf16 %v2783, %v2782
          %v2895 = vpack.c.bf16 %v2785, %v2784
          %v2896 = vpack.c.bf16 %v2787, %v2786
          %v2897 = vpack.c.bf16 %v2789, %v2788
          %v2898 = vpack.c.bf16 %v2791, %v2790
          %v2899 = vpack.c.bf16 %v2793, %v2792
          %v2900 = vpack.c.bf16 %v2795, %v2794
          %v2901 = vpack.c.bf16 %v2797, %v2796
          %v2902 = vpack.c.bf16 %v2799, %v2798
          %v2903 = vpack.c.bf16 %v2801, %v2800
          %v2904 = vpack.c.bf16 %v2803, %v2802
          %v2905 = vpack.c.bf16 %v2805, %v2804
          %v2906 = vpack.c.bf16 %v2807, %v2806
          %v2907 = vpack.c.bf16 %v2809, %v2808
          %v2908 = vpack.c.bf16 %v2811, %v2810
          %v2909 = vpack.c.bf16 %v2813, %v2812
          %v2910 = vpack.c.bf16 %v2815, %v2814
          %v2911 = vpack.c.bf16 %v2817, %v2816
          %v2912 = vpack.c.bf16 %v2819, %v2818
          %v2913 = vpack.c.bf16 %v2821, %v2820
          %v2914 = vpack.c.bf16 %v2823, %v2822
          %v2915 = vpack.c.bf16 %v2825, %v2824
          %v2916 = vpack.c.bf16 %v2827, %v2826
          %v2917 = vpack.c.bf16 %v2829, %v2828
          %v2918 = vpack.c.bf16 %v2831, %v2830
          %v2919 = vpack.c.bf16 %v2833, %v2832
          %v2920 = vpack.c.bf16 %v2835, %v2834
          %v2921 = vpack.c.bf16 %v2837, %v2836
          %v2922 = vpack.c.bf16 %v2839, %v2838
          %v2923 = vpack.c.bf16 %v2841, %v2840
          %v2924 = vpack.c.bf16 %v2843, %v2842
          %v2925 = vpack.c.bf16 %v2845, %v2844
          %v2926 = vpack.c.bf16 %v2847, %v2846
          %v2927 = vpack.c.bf16 %v2849, %v2848
          %v2928 = vpack.c.bf16 %v2851, %v2850
          %v2929 = vpack.c.bf16 %v2853, %v2852
          %v2930 = vpack.c.bf16 %v2855, %v2854
          %v2931 = vpack.c.bf16 %v2857, %v2856
          %v2932 = vpack.c.bf16 %v2859, %v2858
          %v2933 = vpack.c.bf16 %v2861, %v2860
          %v2934 = vpack.c.bf16 %v2863, %v2862
          %v2935 = vpack.c.bf16 %v2865, %v2864
          %v2936 = vpack.c.bf16 %v2867, %v2866
          %v2937 = vpack.c.bf16 %v2869, %v2868
          %v2938 = vpack.c.bf16 %v2871, %v2870
          %v2939 = vpack.c.bf16 %v2873, %v2872
          %v2940 = vpack.c.bf16 %v2875, %v2874
          %v2941 = vpack.c.bf16 %v2877, %v2876
          %v3006 = vunpack.c.l.b16 %v2878
          %v3007 = vunpack.c.h.b16 %v2878
          %v3008 = vunpack.c.l.b16 %v2879
          %v3009 = vunpack.c.h.b16 %v2879
          %v3010 = vunpack.c.l.b16 %v2880
          %v3011 = vunpack.c.h.b16 %v2880
          %v3012 = vunpack.c.l.b16 %v2881
          %v3013 = vunpack.c.h.b16 %v2881
          %v3014 = vunpack.c.l.b16 %v2882
          %v3015 = vunpack.c.h.b16 %v2882
          %v3016 = vunpack.c.l.b16 %v2883
          %v3017 = vunpack.c.h.b16 %v2883
          %v3018 = vunpack.c.l.b16 %v2884
          %v3019 = vunpack.c.h.b16 %v2884
          %v3020 = vunpack.c.l.b16 %v2885
          %v3021 = vunpack.c.h.b16 %v2885
          %v3022 = vunpack.c.l.b16 %v2886
          %v3023 = vunpack.c.h.b16 %v2886
          %v3024 = vunpack.c.l.b16 %v2887
          %v3025 = vunpack.c.h.b16 %v2887
          %v3026 = vunpack.c.l.b16 %v2888
          %v3027 = vunpack.c.h.b16 %v2888
          %v3028 = vunpack.c.l.b16 %v2889
          %v3029 = vunpack.c.h.b16 %v2889
          %v3030 = vunpack.c.l.b16 %v2890
          %v3031 = vunpack.c.h.b16 %v2890
          %v3032 = vunpack.c.l.b16 %v2891
          %v3033 = vunpack.c.h.b16 %v2891
          %v3034 = vunpack.c.l.b16 %v2892
          %v3035 = vunpack.c.h.b16 %v2892
          %v3036 = vunpack.c.l.b16 %v2893
          %v3037 = vunpack.c.h.b16 %v2893
          %v3038 = vunpack.c.l.b16 %v2894
          %v3039 = vunpack.c.h.b16 %v2894
          %v3040 = vunpack.c.l.b16 %v2895
          %v3041 = vunpack.c.h.b16 %v2895
          %v3042 = vunpack.c.l.b16 %v2896
          %v3043 = vunpack.c.h.b16 %v2896
          %v3044 = vunpack.c.l.b16 %v2897
          %v3045 = vunpack.c.h.b16 %v2897
          %v3046 = vunpack.c.l.b16 %v2898
          %v3047 = vunpack.c.h.b16 %v2898
          %v3048 = vunpack.c.l.b16 %v2899
          %v3049 = vunpack.c.h.b16 %v2899
          %v3050 = vunpack.c.l.b16 %v2900
          %v3051 = vunpack.c.h.b16 %v2900
          %v3052 = vunpack.c.l.b16 %v2901
          %v3053 = vunpack.c.h.b16 %v2901
          %v3054 = vunpack.c.l.b16 %v2902
          %v3055 = vunpack.c.h.b16 %v2902
          %v3056 = vunpack.c.l.b16 %v2903
          %v3057 = vunpack.c.h.b16 %v2903
          %v3058 = vunpack.c.l.b16 %v2904
          %v3059 = vunpack.c.h.b16 %v2904
          %v3060 = vunpack.c.l.b16 %v2905
          %v3061 = vunpack.c.h.b16 %v2905
          %v3062 = vunpack.c.l.b16 %v2906
          %v3063 = vunpack.c.h.b16 %v2906
          %v3064 = vunpack.c.l.b16 %v2907
          %v3065 = vunpack.c.h.b16 %v2907
          %v3066 = vunpack.c.l.b16 %v2908
          %v3067 = vunpack.c.h.b16 %v2908
          %v3068 = vunpack.c.l.b16 %v2909
          %v3069 = vunpack.c.h.b16 %v2909
          %v3070 = vunpack.c.l.b16 %v2910
          %v3071 = vunpack.c.h.b16 %v2910
          %v3072 = vunpack.c.l.b16 %v2911
          %v3073 = vunpack.c.h.b16 %v2911
          %v3074 = vunpack.c.l.b16 %v2912
          %v3075 = vunpack.c.h.b16 %v2912
          %v3076 = vunpack.c.l.b16 %v2913
          %v3077 = vunpack.c.h.b16 %v2913
          %v3078 = vunpack.c.l.b16 %v2914
          %v3079 = vunpack.c.h.b16 %v2914
          %v3080 = vunpack.c.l.b16 %v2915
          %v3081 = vunpack.c.h.b16 %v2915
          %v3082 = vunpack.c.l.b16 %v2916
          %v3083 = vunpack.c.h.b16 %v2916
          %v3084 = vunpack.c.l.b16 %v2917
          %v3085 = vunpack.c.h.b16 %v2917
          %v3086 = vunpack.c.l.b16 %v2918
          %v3087 = vunpack.c.h.b16 %v2918
          %v3088 = vunpack.c.l.b16 %v2919
          %v3089 = vunpack.c.h.b16 %v2919
          %v3090 = vunpack.c.l.b16 %v2920
          %v3091 = vunpack.c.h.b16 %v2920
          %v3092 = vunpack.c.l.b16 %v2921
          %v3093 = vunpack.c.h.b16 %v2921
          %v3094 = vunpack.c.l.b16 %v2922
          %v3095 = vunpack.c.h.b16 %v2922
          %v3096 = vunpack.c.l.b16 %v2923
          %v3097 = vunpack.c.h.b16 %v2923
          %v3098 = vunpack.c.l.b16 %v2924
          %v3099 = vunpack.c.h.b16 %v2924
          %v3100 = vunpack.c.l.b16 %v2925
          %v3101 = vunpack.c.h.b16 %v2925
          %v3102 = vunpack.c.l.b16 %v2926
          %v3103 = vunpack.c.h.b16 %v2926
          %v3104 = vunpack.c.l.b16 %v2927
          %v3105 = vunpack.c.h.b16 %v2927
          %v3106 = vunpack.c.l.b16 %v2928
          %v3107 = vunpack.c.h.b16 %v2928
          %v3108 = vunpack.c.l.b16 %v2929
          %v3109 = vunpack.c.h.b16 %v2929
          %v3110 = vunpack.c.l.b16 %v2930
          %v3111 = vunpack.c.h.b16 %v2930
          %v3112 = vunpack.c.l.b16 %v2931
          %v3113 = vunpack.c.h.b16 %v2931
          %v3114 = vunpack.c.l.b16 %v2932
          %v3115 = vunpack.c.h.b16 %v2932
          %v3116 = vunpack.c.l.b16 %v2933
          %v3117 = vunpack.c.h.b16 %v2933
          %v3118 = vunpack.c.l.b16 %v2934
          %v3119 = vunpack.c.h.b16 %v2934
          %v3120 = vunpack.c.l.b16 %v2935
          %v3121 = vunpack.c.h.b16 %v2935
          %v3122 = vunpack.c.l.b16 %v2936
          %v3123 = vunpack.c.h.b16 %v2936
          %v3124 = vunpack.c.l.b16 %v2937
          %v3125 = vunpack.c.h.b16 %v2937
          %v3126 = vunpack.c.l.b16 %v2938
          %v3127 = vunpack.c.h.b16 %v2938
          %v3128 = vunpack.c.l.b16 %v2939
          %v3129 = vunpack.c.h.b16 %v2939
          %v3130 = vunpack.c.l.b16 %v2940
          %v3131 = vunpack.c.h.b16 %v2940
          %v3132 = vunpack.c.l.b16 %v2941
          %v3133 = vunpack.c.h.b16 %v2941
          %v3134 = vpack.c.b16 %v3006, %v3006
          %v3135 = vpack.c.b16 %v3007, %v3007
          %v3136 = vpack.c.b16 %v3008, %v3008
          %v3137 = vpack.c.b16 %v3009, %v3009
          %v3138 = vpack.c.b16 %v3010, %v3010
          %v3139 = vpack.c.b16 %v3011, %v3011
          %v3140 = vpack.c.b16 %v3012, %v3012
          %v3141 = vpack.c.b16 %v3013, %v3013
          %v3142 = vpack.c.b16 %v3014, %v3014
          %v3143 = vpack.c.b16 %v3015, %v3015
          %v3144 = vpack.c.b16 %v3016, %v3016
          %v3145 = vpack.c.b16 %v3017, %v3017
          %v3146 = vpack.c.b16 %v3018, %v3018
          %v3147 = vpack.c.b16 %v3019, %v3019
          %v3148 = vpack.c.b16 %v3020, %v3020
          %v3149 = vpack.c.b16 %v3021, %v3021
          %v3150 = vpack.c.b16 %v3022, %v3022
          %v3151 = vpack.c.b16 %v3023, %v3023
          %v3152 = vpack.c.b16 %v3024, %v3024
          %v3153 = vpack.c.b16 %v3025, %v3025
          %v3154 = vpack.c.b16 %v3026, %v3026
          %v3155 = vpack.c.b16 %v3027, %v3027
          %v3156 = vpack.c.b16 %v3028, %v3028
          %v3157 = vpack.c.b16 %v3029, %v3029
          %v3158 = vpack.c.b16 %v3030, %v3030
          %v3159 = vpack.c.b16 %v3031, %v3031
          %v3160 = vpack.c.b16 %v3032, %v3032
          %v3161 = vpack.c.b16 %v3033, %v3033
          %v3162 = vpack.c.b16 %v3034, %v3034
          %v3163 = vpack.c.b16 %v3035, %v3035
          %v3164 = vpack.c.b16 %v3036, %v3036
          %v3165 = vpack.c.b16 %v3037, %v3037
          %v3166 = vpack.c.b16 %v3038, %v3038
          %v3167 = vpack.c.b16 %v3039, %v3039
          %v3168 = vpack.c.b16 %v3040, %v3040
          %v3169 = vpack.c.b16 %v3041, %v3041
          %v3170 = vpack.c.b16 %v3042, %v3042
          %v3171 = vpack.c.b16 %v3043, %v3043
          %v3172 = vpack.c.b16 %v3044, %v3044
          %v3173 = vpack.c.b16 %v3045, %v3045
          %v3174 = vpack.c.b16 %v3046, %v3046
          %v3175 = vpack.c.b16 %v3047, %v3047
          %v3176 = vpack.c.b16 %v3048, %v3048
          %v3177 = vpack.c.b16 %v3049, %v3049
          %v3178 = vpack.c.b16 %v3050, %v3050
          %v3179 = vpack.c.b16 %v3051, %v3051
          %v3180 = vpack.c.b16 %v3052, %v3052
          %v3181 = vpack.c.b16 %v3053, %v3053
          %v3182 = vpack.c.b16 %v3054, %v3054
          %v3183 = vpack.c.b16 %v3055, %v3055
          %v3184 = vpack.c.b16 %v3056, %v3056
          %v3185 = vpack.c.b16 %v3057, %v3057
          %v3186 = vpack.c.b16 %v3058, %v3058
          %v3187 = vpack.c.b16 %v3059, %v3059
          %v3188 = vpack.c.b16 %v3060, %v3060
          %v3189 = vpack.c.b16 %v3061, %v3061
          %v3190 = vpack.c.b16 %v3062, %v3062
          %v3191 = vpack.c.b16 %v3063, %v3063
          %v3192 = vpack.c.b16 %v3064, %v3064
          %v3193 = vpack.c.b16 %v3065, %v3065
          %v3194 = vpack.c.b16 %v3066, %v3066
          %v3195 = vpack.c.b16 %v3067, %v3067
          %v3196 = vpack.c.b16 %v3068, %v3068
          %v3197 = vpack.c.b16 %v3069, %v3069
          %v3198 = vpack.c.b16 %v3070, %v3070
          %v3199 = vpack.c.b16 %v3071, %v3071
          %v3200 = vpack.c.b16 %v3072, %v3072
          %v3201 = vpack.c.b16 %v3073, %v3073
          %v3202 = vpack.c.b16 %v3074, %v3074
          %v3203 = vpack.c.b16 %v3075, %v3075
          %v3204 = vpack.c.b16 %v3076, %v3076
          %v3205 = vpack.c.b16 %v3077, %v3077
          %v3206 = vpack.c.b16 %v3078, %v3078
          %v3207 = vpack.c.b16 %v3079, %v3079
          %v3208 = vpack.c.b16 %v3080, %v3080
          %v3209 = vpack.c.b16 %v3081, %v3081
          %v3210 = vpack.c.b16 %v3082, %v3082
          %v3211 = vpack.c.b16 %v3083, %v3083
          %v3212 = vpack.c.b16 %v3084, %v3084
          %v3213 = vpack.c.b16 %v3085, %v3085
          %v3214 = vpack.c.b16 %v3086, %v3086
          %v3215 = vpack.c.b16 %v3087, %v3087
          %v3216 = vpack.c.b16 %v3088, %v3088
          %v3217 = vpack.c.b16 %v3089, %v3089
          %v3218 = vpack.c.b16 %v3090, %v3090
          %v3219 = vpack.c.b16 %v3091, %v3091
          %v3220 = vpack.c.b16 %v3092, %v3092
          %v3221 = vpack.c.b16 %v3093, %v3093
          %v3222 = vpack.c.b16 %v3094, %v3094
          %v3223 = vpack.c.b16 %v3095, %v3095
          %v3224 = vpack.c.b16 %v3096, %v3096
          %v3225 = vpack.c.b16 %v3097, %v3097
          %v3226 = vpack.c.b16 %v3098, %v3098
          %v3227 = vpack.c.b16 %v3099, %v3099
          %v3228 = vpack.c.b16 %v3100, %v3100
          %v3229 = vpack.c.b16 %v3101, %v3101
          %v3230 = vpack.c.b16 %v3102, %v3102
          %v3231 = vpack.c.b16 %v3103, %v3103
          %v3232 = vpack.c.b16 %v3104, %v3104
          %v3233 = vpack.c.b16 %v3105, %v3105
          %v3234 = vpack.c.b16 %v3106, %v3106
          %v3235 = vpack.c.b16 %v3107, %v3107
          %v3236 = vpack.c.b16 %v3108, %v3108
          %v3237 = vpack.c.b16 %v3109, %v3109
          %v3238 = vpack.c.b16 %v3110, %v3110
          %v3239 = vpack.c.b16 %v3111, %v3111
          %v3240 = vpack.c.b16 %v3112, %v3112
          %v3241 = vpack.c.b16 %v3113, %v3113
          %v3242 = vpack.c.b16 %v3114, %v3114
          %v3243 = vpack.c.b16 %v3115, %v3115
          %v3244 = vpack.c.b16 %v3116, %v3116
          %v3245 = vpack.c.b16 %v3117, %v3117
          %v3246 = vpack.c.b16 %v3118, %v3118
          %v3247 = vpack.c.b16 %v3119, %v3119
          %v3248 = vpack.c.b16 %v3120, %v3120
          %v3249 = vpack.c.b16 %v3121, %v3121
          %v3250 = vpack.c.b16 %v3122, %v3122
          %v3251 = vpack.c.b16 %v3123, %v3123
          %v3252 = vpack.c.b16 %v3124, %v3124
          %v3253 = vpack.c.b16 %v3125, %v3125
          %v3254 = vpack.c.b16 %v3126, %v3126
          %v3255 = vpack.c.b16 %v3127, %v3127
          %v3256 = vpack.c.b16 %v3128, %v3128
          %v3257 = vpack.c.b16 %v3129, %v3129
          %v3258 = vpack.c.b16 %v3130, %v3130
          %v3259 = vpack.c.b16 %v3131, %v3131
          %v3260 = vpack.c.b16 %v3132, %v3132
          %v3261 = vpack.c.b16 %v3133, %v3133
          %vm3390 = vcmask 519168
          %3391 = vst.msk [vmem:[%s290] sm:$0xf] %vm3390, %v3134
          %3392 = vst.msk [vmem:[%s290 + $0x4] sm:$0xf] %vm3390, %v3135
          %3393 = vst.msk [vmem:[%s290 + $0x8] sm:$0xf] %vm3390, %v3136
          %3394 = vst.msk [vmem:[%s290 + $0xc] sm:$0xf] %vm3390, %v3137
          %3395 = vst.msk [vmem:[%s290 + $0x10] sm:$0xf] %vm3390, %v3138
          %3396 = vst.msk [vmem:[%s290 + $0x14] sm:$0xf] %vm3390, %v3139
          %3397 = vst.msk [vmem:[%s290 + $0x18] sm:$0xf] %vm3390, %v3140
          %3398 = vst.msk [vmem:[%s290 + $0x1c] sm:$0xf] %vm3390, %v3141
          %3399 = vst.msk [vmem:[%s290 + $0x20] sm:$0xf] %vm3390, %v3142
          %3400 = vst.msk [vmem:[%s290 + $0x24] sm:$0xf] %vm3390, %v3143
          %3401 = vst.msk [vmem:[%s290 + $0x28] sm:$0xf] %vm3390, %v3144
          %3402 = vst.msk [vmem:[%s290 + $0x2c] sm:$0xf] %vm3390, %v3145
          %3403 = vst.msk [vmem:[%s290 + $0x30] sm:$0xf] %vm3390, %v3146
          %3404 = vst.msk [vmem:[%s290 + $0x34] sm:$0xf] %vm3390, %v3147
          %3405 = vst.msk [vmem:[%s290 + $0x38] sm:$0xf] %vm3390, %v3148
          %3406 = vst.msk [vmem:[%s290 + $0x3c] sm:$0xf] %vm3390, %v3149
          %3407 = vst.msk [vmem:[%s290 + $0x40] sm:$0xf] %vm3390, %v3150
          %3408 = vst.msk [vmem:[%s290 + $0x44] sm:$0xf] %vm3390, %v3151
          %3409 = vst.msk [vmem:[%s290 + $0x48] sm:$0xf] %vm3390, %v3152
          %3410 = vst.msk [vmem:[%s290 + $0x4c] sm:$0xf] %vm3390, %v3153
          %3411 = vst.msk [vmem:[%s290 + $0x50] sm:$0xf] %vm3390, %v3154
          %3412 = vst.msk [vmem:[%s290 + $0x54] sm:$0xf] %vm3390, %v3155
          %3413 = vst.msk [vmem:[%s290 + $0x58] sm:$0xf] %vm3390, %v3156
          %3414 = vst.msk [vmem:[%s290 + $0x5c] sm:$0xf] %vm3390, %v3157
          %3415 = vst.msk [vmem:[%s290 + $0x60] sm:$0xf] %vm3390, %v3158
          %3416 = vst.msk [vmem:[%s290 + $0x64] sm:$0xf] %vm3390, %v3159
          %3417 = vst.msk [vmem:[%s290 + $0x68] sm:$0xf] %vm3390, %v3160
          %3418 = vst.msk [vmem:[%s290 + $0x6c] sm:$0xf] %vm3390, %v3161
          %3419 = vst.msk [vmem:[%s290 + $0x70] sm:$0xf] %vm3390, %v3162
          %3420 = vst.msk [vmem:[%s290 + $0x74] sm:$0xf] %vm3390, %v3163
          %3421 = vst.msk [vmem:[%s290 + $0x78] sm:$0xf] %vm3390, %v3164
          %3422 = vst.msk [vmem:[%s290 + $0x7c] sm:$0xf] %vm3390, %v3165
          %3423 = vst.msk [vmem:[%s290 + $0x80] sm:$0xf] %vm3390, %v3166
          %3424 = vst.msk [vmem:[%s290 + $0x84] sm:$0xf] %vm3390, %v3167
          %3425 = vst.msk [vmem:[%s290 + $0x88] sm:$0xf] %vm3390, %v3168
          %3426 = vst.msk [vmem:[%s290 + $0x8c] sm:$0xf] %vm3390, %v3169
          %3427 = vst.msk [vmem:[%s290 + $0x90] sm:$0xf] %vm3390, %v3170
          %3428 = vst.msk [vmem:[%s290 + $0x94] sm:$0xf] %vm3390, %v3171
          %3429 = vst.msk [vmem:[%s290 + $0x98] sm:$0xf] %vm3390, %v3172
          %3430 = vst.msk [vmem:[%s290 + $0x9c] sm:$0xf] %vm3390, %v3173
          %3431 = vst.msk [vmem:[%s290 + $0xa0] sm:$0xf] %vm3390, %v3174
          %3432 = vst.msk [vmem:[%s290 + $0xa4] sm:$0xf] %vm3390, %v3175
          %3433 = vst.msk [vmem:[%s290 + $0xa8] sm:$0xf] %vm3390, %v3176
          %3434 = vst.msk [vmem:[%s290 + $0xac] sm:$0xf] %vm3390, %v3177
          %3435 = vst.msk [vmem:[%s290 + $0xb0] sm:$0xf] %vm3390, %v3178
          %3436 = vst.msk [vmem:[%s290 + $0xb4] sm:$0xf] %vm3390, %v3179
          %3437 = vst.msk [vmem:[%s290 + $0xb8] sm:$0xf] %vm3390, %v3180
          %3438 = vst.msk [vmem:[%s290 + $0xbc] sm:$0xf] %vm3390, %v3181
          %3439 = vst.msk [vmem:[%s290 + $0xc0] sm:$0xf] %vm3390, %v3182
          %3440 = vst.msk [vmem:[%s290 + $0xc4] sm:$0xf] %vm3390, %v3183
          %3441 = vst.msk [vmem:[%s290 + $0xc8] sm:$0xf] %vm3390, %v3184
          %3442 = vst.msk [vmem:[%s290 + $0xcc] sm:$0xf] %vm3390, %v3185
          %3443 = vst.msk [vmem:[%s290 + $0xd0] sm:$0xf] %vm3390, %v3186
          %3444 = vst.msk [vmem:[%s290 + $0xd4] sm:$0xf] %vm3390, %v3187
          %3445 = vst.msk [vmem:[%s290 + $0xd8] sm:$0xf] %vm3390, %v3188
          %3446 = vst.msk [vmem:[%s290 + $0xdc] sm:$0xf] %vm3390, %v3189
          %3447 = vst.msk [vmem:[%s290 + $0xe0] sm:$0xf] %vm3390, %v3190
          %3448 = vst.msk [vmem:[%s290 + $0xe4] sm:$0xf] %vm3390, %v3191
          %3449 = vst.msk [vmem:[%s290 + $0xe8] sm:$0xf] %vm3390, %v3192
          %3450 = vst.msk [vmem:[%s290 + $0xec] sm:$0xf] %vm3390, %v3193
          %3451 = vst.msk [vmem:[%s290 + $0xf0] sm:$0xf] %vm3390, %v3194
          %3452 = vst.msk [vmem:[%s290 + $0xf4] sm:$0xf] %vm3390, %v3195
          %3453 = vst.msk [vmem:[%s290 + $0xf8] sm:$0xf] %vm3390, %v3196
          %3454 = vst.msk [vmem:[%s290 + $0xfc] sm:$0xf] %vm3390, %v3197
          %3455 = vst.msk [vmem:[%s290 + $0x100] sm:$0xf] %vm3390, %v3198
          %3456 = vst.msk [vmem:[%s290 + $0x104] sm:$0xf] %vm3390, %v3199
          %3457 = vst.msk [vmem:[%s290 + $0x108] sm:$0xf] %vm3390, %v3200
          %3458 = vst.msk [vmem:[%s290 + $0x10c] sm:$0xf] %vm3390, %v3201
          %3459 = vst.msk [vmem:[%s290 + $0x110] sm:$0xf] %vm3390, %v3202
          %3460 = vst.msk [vmem:[%s290 + $0x114] sm:$0xf] %vm3390, %v3203
          %3461 = vst.msk [vmem:[%s290 + $0x118] sm:$0xf] %vm3390, %v3204
          %3462 = vst.msk [vmem:[%s290 + $0x11c] sm:$0xf] %vm3390, %v3205
          %3463 = vst.msk [vmem:[%s290 + $0x120] sm:$0xf] %vm3390, %v3206
          %3464 = vst.msk [vmem:[%s290 + $0x124] sm:$0xf] %vm3390, %v3207
          %3465 = vst.msk [vmem:[%s290 + $0x128] sm:$0xf] %vm3390, %v3208
          %3466 = vst.msk [vmem:[%s290 + $0x12c] sm:$0xf] %vm3390, %v3209
          %3467 = vst.msk [vmem:[%s290 + $0x130] sm:$0xf] %vm3390, %v3210
          %3468 = vst.msk [vmem:[%s290 + $0x134] sm:$0xf] %vm3390, %v3211
          %3469 = vst.msk [vmem:[%s290 + $0x138] sm:$0xf] %vm3390, %v3212
          %3470 = vst.msk [vmem:[%s290 + $0x13c] sm:$0xf] %vm3390, %v3213
          %3471 = vst.msk [vmem:[%s290 + $0x140] sm:$0xf] %vm3390, %v3214
          %3472 = vst.msk [vmem:[%s290 + $0x144] sm:$0xf] %vm3390, %v3215
          %3473 = vst.msk [vmem:[%s290 + $0x148] sm:$0xf] %vm3390, %v3216
          %3474 = vst.msk [vmem:[%s290 + $0x14c] sm:$0xf] %vm3390, %v3217
          %3475 = vst.msk [vmem:[%s290 + $0x150] sm:$0xf] %vm3390, %v3218
          %3476 = vst.msk [vmem:[%s290 + $0x154] sm:$0xf] %vm3390, %v3219
          %3477 = vst.msk [vmem:[%s290 + $0x158] sm:$0xf] %vm3390, %v3220
          %3478 = vst.msk [vmem:[%s290 + $0x15c] sm:$0xf] %vm3390, %v3221
          %3479 = vst.msk [vmem:[%s290 + $0x160] sm:$0xf] %vm3390, %v3222
          %3480 = vst.msk [vmem:[%s290 + $0x164] sm:$0xf] %vm3390, %v3223
          %3481 = vst.msk [vmem:[%s290 + $0x168] sm:$0xf] %vm3390, %v3224
          %3482 = vst.msk [vmem:[%s290 + $0x16c] sm:$0xf] %vm3390, %v3225
          %3483 = vst.msk [vmem:[%s290 + $0x170] sm:$0xf] %vm3390, %v3226
          %3484 = vst.msk [vmem:[%s290 + $0x174] sm:$0xf] %vm3390, %v3227
          %3485 = vst.msk [vmem:[%s290 + $0x178] sm:$0xf] %vm3390, %v3228
          %3486 = vst.msk [vmem:[%s290 + $0x17c] sm:$0xf] %vm3390, %v3229
          %3487 = vst.msk [vmem:[%s290 + $0x180] sm:$0xf] %vm3390, %v3230
          %3488 = vst.msk [vmem:[%s290 + $0x184] sm:$0xf] %vm3390, %v3231
          %3489 = vst.msk [vmem:[%s290 + $0x188] sm:$0xf] %vm3390, %v3232
          %3490 = vst.msk [vmem:[%s290 + $0x18c] sm:$0xf] %vm3390, %v3233
          %3491 = vst.msk [vmem:[%s290 + $0x190] sm:$0xf] %vm3390, %v3234
          %3492 = vst.msk [vmem:[%s290 + $0x194] sm:$0xf] %vm3390, %v3235
          %3493 = vst.msk [vmem:[%s290 + $0x198] sm:$0xf] %vm3390, %v3236
          %3494 = vst.msk [vmem:[%s290 + $0x19c] sm:$0xf] %vm3390, %v3237
          %3495 = vst.msk [vmem:[%s290 + $0x1a0] sm:$0xf] %vm3390, %v3238
          %3496 = vst.msk [vmem:[%s290 + $0x1a4] sm:$0xf] %vm3390, %v3239
          %3497 = vst.msk [vmem:[%s290 + $0x1a8] sm:$0xf] %vm3390, %v3240
          %3498 = vst.msk [vmem:[%s290 + $0x1ac] sm:$0xf] %vm3390, %v3241
          %3499 = vst.msk [vmem:[%s290 + $0x1b0] sm:$0xf] %vm3390, %v3242
          %3500 = vst.msk [vmem:[%s290 + $0x1b4] sm:$0xf] %vm3390, %v3243
          %3501 = vst.msk [vmem:[%s290 + $0x1b8] sm:$0xf] %vm3390, %v3244
          %3502 = vst.msk [vmem:[%s290 + $0x1bc] sm:$0xf] %vm3390, %v3245
          %3503 = vst.msk [vmem:[%s290 + $0x1c0] sm:$0xf] %vm3390, %v3246
          %3504 = vst.msk [vmem:[%s290 + $0x1c4] sm:$0xf] %vm3390, %v3247
          %3505 = vst.msk [vmem:[%s290 + $0x1c8] sm:$0xf] %vm3390, %v3248
          %3506 = vst.msk [vmem:[%s290 + $0x1cc] sm:$0xf] %vm3390, %v3249
          %3507 = vst.msk [vmem:[%s290 + $0x1d0] sm:$0xf] %vm3390, %v3250
          %3508 = vst.msk [vmem:[%s290 + $0x1d4] sm:$0xf] %vm3390, %v3251
          %3509 = vst.msk [vmem:[%s290 + $0x1d8] sm:$0xf] %vm3390, %v3252
          %3510 = vst.msk [vmem:[%s290 + $0x1dc] sm:$0xf] %vm3390, %v3253
          %3511 = vst.msk [vmem:[%s290 + $0x1e0] sm:$0xf] %vm3390, %v3254
          %3512 = vst.msk [vmem:[%s290 + $0x1e4] sm:$0xf] %vm3390, %v3255
          %3513 = vst.msk [vmem:[%s290 + $0x1e8] sm:$0xf] %vm3390, %v3256
          %3514 = vst.msk [vmem:[%s290 + $0x1ec] sm:$0xf] %vm3390, %v3257
          %3515 = vst.msk [vmem:[%s290 + $0x1f0] sm:$0xf] %vm3390, %v3258
          %3516 = vst.msk [vmem:[%s290 + $0x1f4] sm:$0xf] %vm3390, %v3259
          %3517 = vst.msk [vmem:[%s290 + $0x1f8] sm:$0xf] %vm3390, %v3260
          %3518 = vst.msk [vmem:[%s290 + $0x1fc] sm:$0xf] %vm3390, %v3261
        $region56: #{tpu_custom_call.1} parent=35 // pred_fallthru
          _
        %s3519 = sand.u32 %s157, 1
        %s3520 = scalar_lea.sflag [#allocation5], %s3519
        %s3521 = sand.u32 %s157, 1
        %s3522 = smul.addr %s3521, 512
        %s3523 = scalar_lea.vmem [#allocation9], %s3522
        // Predicated region
        $region57: #{tpu_custom_call.1} parent=35 // pred_check
          %p3524 = pneg %p167
        $region58: #{tpu_custom_call.1} parent=35 // pred_check_branch
          %3526 = sbr.rel (%p3524) target = $region60
        $region59: #{tpu_custom_call.1} parent=35 // pred_region
          %s3527 = smul.u32 128, %s25
          %s3529 = ssub.s32 8192, 8192
          %3530 = vsyncadd %s3520, %s3529
          %s3531 = sadd.s32 %s26, %s3527
          %s3532 = smul.addr %s3531, 64
          %s3533 = scalar_lea.hbm %s4, %s3532
          %s3534 = sshll.u32 %s3523, 4
          %s3535 = int_to_ptr.vmem [resolvable:$true] %s3534
          %3540 = dma.vmem_to_hbm [thread:$0]  %s3535, 8192, %s3533, %s3520, 64, 64, 4
        $region60: #{tpu_custom_call.1} parent=35 // pred_fallthru
          _
      $region36: #{tpu_custom_call.1} parent=5 // pred_fallthru
        _
      %p3541 = scmp.le.s32.totalorder 2, %s15
      // Predicated region
      $region61: #{tpu_custom_call.1} parent=5 // pred_check
        %p3542 = pneg %p3541
      $region62: #{tpu_custom_call.1} parent=5 // pred_check_branch
        %3544 = sbr.rel (%p3542) target = $region64
      $region63: #{tpu_custom_call.1} parent=5 // pred_region
        %s3545 = ssub.s32 %s15, 2
        // Predicated region
        $region65: #{tpu_custom_call.1} parent=63 // pred_check
          %p3546 = pneg %p173
        $region66: #{tpu_custom_call.1} parent=63 // pred_check_branch
          %3548 = sbr.rel (%p3546) target = $region68
        $region67: #{tpu_custom_call.1} parent=63 // pred_region
          %s3549 = sand.u32 %s158, 1
          %s3550 = scalar_lea.sflag [#allocation5], %s3549
          %s3551 = sand.u32 %s158, 1
          %s3552 = smul.addr %s3551, 512
          %s3553 = scalar_lea.vmem [#allocation9], %s3552
          %3554 = dma.done %s3550, 8192
        $region68: #{tpu_custom_call.1} parent=63 // pred_fallthru
          _
      $region64: #{tpu_custom_call.1} parent=5 // pred_fallthru
        _
    $region6: #{tpu_custom_call.1} parent=1 // loop_footer
      %s19 = sadd.s32 1, %s15
    $region7: #{tpu_custom_call.1} parent=1 // loop_footer_branch
      %14 = sbr.rel target = $region3
    $region8: #{tpu_custom_call.1} parent=1 // loop_exit
      _
    %3555 = vsyncpa [#allocation4], 1
    %s3556 = scalar_lea.sflag [#allocation4], 1
    %3557 = vsyncpa %s3556, 1
    %3558 = vsyncpa [#allocation7], 1
    %3559 = vsyncpa [#allocation5], 1
    %s3560 = scalar_lea.sflag [#allocation5], 1
    %3561 = vsyncpa %s3560, 1

</llo_original>
